<compile_context>
chip_gen: v5e
topology: v5e:2x2
jax: 0.10.0
libtpu: 0.0.40
codegen_flags: <defaults>
</compile_context>

<pallas_src>
import math
import functools

import jax
import jax.numpy as jnp
import numpy as np
from jax.experimental import pallas as pl
from jax.experimental.pallas import tpu as pltpu

_LN2 = math.log(2.0)


def _ssp(x):
    # shifted softplus: log(1 + exp(x)) - log(2), numerically stable. ssp(0)=0.
    return jnp.maximum(x, 0.0) + jnp.log(1.0 + jnp.exp(-jnp.abs(x))) - _LN2


def _schnet_kernel(n_atoms, n_pad, b_blk, n_interactions,
                   x0_ref, rbf_ref,
                   wf1_ref, bf1_ref, wf2_ref, bf2_ref,
                   w_in2f_ref, w_f2out_ref, b_f2out_ref,
                   w_out_ref, b_out_ref,
                   w_aw1_ref, b_aw1_ref, w_aw2_ref, b_aw2_ref,
                   o_ref, wfilt_ref):
    N, NP, BB = n_atoms, n_pad, b_blk
    FP = x0_ref.shape[-1]            # lane-padded feature width (128)
    G = rbf_ref.shape[-1]            # number of Gaussians
    P = NP * NP                      # pairs per molecule
    BN = BB * NP                     # batched atom rows (MXU M dimension)

    # ---- filter-generating network, all molecules' pairs flattened ---------
    rbf = rbf_ref[...].reshape(BB * P, G)
    h = _ssp(jnp.dot(rbf, wf1_ref[...], preferred_element_type=jnp.float32)
             + bf1_ref[...])
    w_filt = (jnp.dot(h, wf2_ref[...], preferred_element_type=jnp.float32)
              + bf2_ref[...])                                   # [BB*P, FP]

    # Zero padded-neighbor (j >= N) filter columns ONCE; padded x rows can then
    # never leak into the cfconv sum and no per-iteration row mask is needed.
    j_mask = (jax.lax.broadcasted_iota(jnp.int32, (NP, 1), 0)
              < N).astype(jnp.float32)                           # [NP(j), 1]
    wfilt_ref[...] = w_filt.reshape(BB, NP, NP, FP) * j_mask     # keep in VMEM

    # ---- interaction loop ---------------------------------------------------
    # Filters and weights are re-read from VMEM each iteration (vld is cheap),
    # so nothing large stays live in vregs across the unrolled loop.
    def interaction(_, xc):                                      # xc: [BN, FP]
        y = jnp.dot(xc, w_in2f_ref[...], preferred_element_type=jnp.float32)
        # cfconv per molecule: m[b,i,f] = sum_j w_filt[b,i,j,f] * y[b,j,f]
        m = jnp.sum(wfilt_ref[...] * y.reshape(BB, 1, NP, FP), axis=2)
        m = m.reshape(BN, FP)
        v = _ssp(jnp.dot(m, w_f2out_ref[...], preferred_element_type=jnp.float32)
                 + b_f2out_ref[...])
        v = jnp.dot(v, w_out_ref[...], preferred_element_type=jnp.float32) \
            + b_out_ref[...]
        return xc + v                                            # residual add

    x = x0_ref[...].reshape(BN, FP)
    x = jax.lax.fori_loop(0, n_interactions, interaction, x, unroll=True)

    # ---- atom-wise readout (lane-dense [BN, FP] slab, value in column 0) ----
    hh = _ssp(jnp.dot(x, w_aw1_ref[...], preferred_element_type=jnp.float32)
              + b_aw1_ref[...])
    out = (jnp.dot(hh, w_aw2_ref[...], preferred_element_type=jnp.float32)
           + b_aw2_ref[...])
    o_ref[...] = out.reshape(BB, NP, FP)


def init_params(key, n_features=64, n_filters=64, n_gaussians=16, max_z=100):
    ks = jax.random.split(key, 8)

    def dense(k, fin, fout):
        kw, kb = jax.random.split(k)
        w = jax.random.normal(kw, (fin, fout), jnp.float32) / math.sqrt(fin)
        b = 0.01 * jax.random.normal(kb, (1, fout), jnp.float32)
        return w, b

    p = {}
    p["embedding"] = jax.random.normal(ks[0], (max_z, n_features), jnp.float32)
    p["wf1"], p["bf1"] = dense(ks[1], n_gaussians, n_filters)
    p["wf2"], p["bf2"] = dense(ks[2], n_filters, n_filters)
    p["w_in2f"], _ = dense(ks[3], n_features, n_filters)   # in2f has no bias
    p["w_f2out"], p["b_f2out"] = dense(ks[4], n_filters, n_features)
    p["w_out"], p["b_out"] = dense(ks[5], n_features, n_features)
    p["w_aw1"], p["b_aw1"] = dense(ks[6], n_features, n_features)
    p["w_aw2"], p["b_aw2"] = dense(ks[7], n_features, 1)
    return p


def _pad2(a, rows, cols):
    out = jnp.zeros((rows, cols), jnp.float32)
    return out.at[:a.shape[0], :a.shape[1]].set(a)


def pad_params(params):
    """Pad weights to lane-dense 128-wide layout ONCE (hoisted out of forward)."""
    F = params["embedding"].shape[1]
    Ff = params["wf1"].shape[1]
    G = params["wf1"].shape[0]
    FP = ((max(F, Ff) + 127) // 128) * 128
    pp = {"embedding": params["embedding"]}       # gather stays in host glue
    pp["wf1"] = _pad2(params["wf1"], G, FP)
    pp["bf1"] = _pad2(params["bf1"], 1, FP)
    pp["wf2"] = _pad2(params["wf2"], FP, FP)
    pp["bf2"] = _pad2(params["bf2"], 1, FP)
    pp["w_in2f"] = _pad2(params["w_in2f"], FP, FP)
    pp["w_f2out"] = _pad2(params["w_f2out"], FP, FP)
    pp["b_f2out"] = _pad2(params["b_f2out"], 1, FP)
    pp["w_out"] = _pad2(params["w_out"], FP, FP)
    pp["b_out"] = _pad2(params["b_out"], 1, FP)
    pp["w_aw1"] = _pad2(params["w_aw1"], FP, FP)
    pp["b_aw1"] = _pad2(params["b_aw1"], 1, FP)
    pp["w_aw2"] = _pad2(params["w_aw2"], FP, FP)   # real column at index 0
    pp["b_aw2"] = _pad2(params["b_aw2"], 1, FP)
    return pp


def schnet_forward(z, r, padded, *, n_interactions=3, cutoff=5.0):
    """z: [B, N] int32 atomic numbers, r: [B, N, N] f32 interatomic distances.
    `padded` = pad_params(params) (padding done once, not per call)."""
    B, N = z.shape
    F = padded["embedding"].shape[1]
    G = padded["wf1"].shape[0]
    FP = padded["wf1"].shape[1]

    NP = ((N + 7) // 8) * 8                     # sublane-aligned atom count
    P = NP * NP

    # ---- molecules-per-grid-step (fill the MXU M dim, keep >=2 steps for v7x)
    BBLK_MAX = 8
    if B <= 1:
        num_steps = 1
    elif B <= 2 * BBLK_MAX:
        num_steps = 2                            # both v7x TensorCores busy
    else:
        num_steps = pl.cdiv(B, BBLK_MAX)
        num_steps += num_steps % 2               # even number of grid steps
    Bblk = pl.cdiv(B, num_steps)
    Bpad = Bblk * num_steps
    BN = Bblk * NP

    delta = float(cutoff) / float(G - 1)
    gamma = 0.5 / (delta * delta)

    # ---- host glue (plain JAX) ---------------------------------------------
    # TODO(synk): the nn.Embedding gather is data-dependent; doing it in-kernel
    # would need a manual DMA gather, so it stays in host glue.
    x0 = padded["embedding"][z]                                  # [B, N, F]
    x0p = jnp.zeros((Bpad, NP, FP), jnp.float32).at[:B, :N, :F].set(x0)

    # Gaussian RBF expanded in the wrapper: kernel input arrives with G active
    # lanes instead of a 1-of-128-lane strided (B, P, 1) distance block.
    mu = jnp.linspace(0.0, cutoff, G).astype(jnp.float32)
    rp = jnp.zeros((Bpad, NP, NP), jnp.float32).at[:B, :N, :N].set(r)
    rbf = jnp.exp(-gamma * (rp.reshape(Bpad, P, 1) - mu[None, None, :]) ** 2)

    weights = (padded["wf1"], padded["bf1"], padded["wf2"], padded["bf2"],
               padded["w_in2f"], padded["w_f2out"], padded["b_f2out"],
               padded["w_out"], padded["b_out"],
               padded["w_aw1"], padded["b_aw1"],
               padded["w_aw2"], padded["b_aw2"])

    mol_specs = [
        pl.BlockSpec((Bblk, NP, FP), lambda s: (s, 0, 0)),       # embedded atoms
        pl.BlockSpec((Bblk, P, G), lambda s: (s, 0, 0)),         # Gaussian RBF
    ]
    # Constant index_map -> weights stay resident in VMEM across grid steps.
    w_specs = [pl.BlockSpec(w.shape, lambda s: (0, 0)) for w in weights]

    # ---- VMEM budget (generation-aware cap) ----------------------------------
    def tile_bytes(shape, itemsize=4):
        lead = int(np.prod(shape[:-2], dtype=np.int64)) if len(shape) > 2 else 1
        s = ((shape[-2] + 7) // 8) * 8
        l = ((shape[-1] + 127) // 128) * 128
        return itemsize * lead * s * l

    est = (2 * (tile_bytes((Bblk, NP, FP)) + tile_bytes((Bblk, P, G))
                + tile_bytes((Bblk, NP, FP)))                 # double-buffered I/O
           + sum(tile_bytes(w.shape) for w in weights)        # resident weights
           + tile_bytes((Bblk, NP, NP, FP))                   # w_filt scratch
           + 3 * tile_bytes((Bblk * P, FP))                   # filter-net temps
           + 8 * tile_bytes((BN, FP)))                        # interaction temps
    try:
        vmem_cap = int(0.75 * pltpu.get_tpu_info().vmem_capacity_bytes)
    except Exception:
        vmem_cap = 48 * 2 ** 20                               # safe on v7x 64 MiB
    vmem_limit = int(min(vmem_cap, max(16 * 2 ** 20, 2 * est)))

    kernel = functools.partial(_schnet_kernel, N, NP, Bblk, n_interactions)
    # TODO(synk): for large N, add an 'arbitrary' grid axis over atom-row blocks
    # and store w_filt / big weights in bf16 so O(N^2) VMEM stays bounded (v7x).
    out = pl.pallas_call(
        kernel,
        out_shape=jax.ShapeDtypeStruct((Bpad, NP, FP), jnp.float32),
        grid=(num_steps,),
        in_specs=mol_specs + w_specs,
        out_specs=pl.BlockSpec((Bblk, NP, FP), lambda s: (s, 0, 0)),
        scratch_shapes=[pltpu.VMEM((Bblk, NP, NP, FP), jnp.float32)],
        compiler_params=pltpu.CompilerParams(
            dimension_semantics=("parallel",),
            vmem_limit_bytes=vmem_limit),
    )(x0p, rbf, *weights)
    return out[:B, :N, :1]                       # strip padding -> [B, N, 1]


def schnet_reference(z, r, params, *, n_interactions=3, n_gaussians=16, cutoff=5.0):
    # Pure-JAX reference (single molecule) mirroring the kernel math.
    N = z.shape[0]
    hp = jax.lax.Precision.HIGHEST

    def dot(a, b):
        return jnp.dot(a, b, precision=hp)

    x = params["embedding"][z]
    mu = jnp.linspace(0.0, cutoff, n_gaussians)
    delta = mu[1] - mu[0]
    gamma = 0.5 / (delta * delta)
    rbf = jnp.exp(-gamma * (r.reshape(N * N, 1) - mu[None, :]) ** 2)
    h = _ssp(dot(rbf, params["wf1"]) + params["bf1"])
    w_filt = (dot(h, params["wf2"]) + params["bf2"]).reshape(N, N, -1)
    for _ in range(n_interactions):
        y = dot(x, params["w_in2f"])
        m = jnp.sum(w_filt * y[None, :, :], axis=1)
        v = _ssp(dot(m, params["w_f2out"]) + params["b_f2out"])
        v = dot(v, params["w_out"]) + params["b_out"]
        x = x + v
    h = _ssp(dot(x, params["w_aw1"]) + params["b_aw1"])
    return dot(h, params["w_aw2"]) + params["b_aw2"]


if __name__ == "__main__":
    key = jax.random.PRNGKey(0)
    k_z, k_pos, k_p = jax.random.split(key, 3)

    B, N = 4, 10                                   # molecules, atoms (N_pad=16)
    z = jax.random.randint(k_z, (B, N), 1, 10, dtype=jnp.int32)
    pos = jax.random.uniform(k_pos, (B, N, 3), jnp.float32, 0.0, 4.0)
    diff = pos[:, :, None, :] - pos[:, None, :, :]
    r = jnp.sqrt(jnp.sum(diff * diff, axis=-1) + 1e-12)   # [B, N, N] distances

    params = init_params(k_p, n_features=64, n_filters=64, n_gaussians=16)
    padded = pad_params(params)                    # padding hoisted out of forward

    fwd = jax.jit(schnet_forward)
    out = fwd(z, r, padded)
    out = jax.block_until_ready(out)

    ref = jax.vmap(lambda zz, rr: schnet_reference(zz, rr, params))(z, r)
    np.testing.assert_allclose(np.asarray(out), np.asarray(ref),
                               rtol=2e-3, atol=2e-3)
    assert out.shape == (B, N, 1)
    print("KERNEL_OK")
</pallas_src>

<mosaic_0001>
module attributes {stable_mosaic.version = 11 : i64} {
  func.func @_schnet_kernel(%arg0: i32, %arg1: memref<2x16x128xf32, #tpu.memory_space<vmem>>, %arg2: memref<2x256x16xf32, #tpu.memory_space<vmem>>, %arg3: memref<16x128xf32, #tpu.memory_space<vmem>>, %arg4: memref<1x128xf32, #tpu.memory_space<vmem>>, %arg5: memref<128x128xf32, #tpu.memory_space<vmem>>, %arg6: memref<1x128xf32, #tpu.memory_space<vmem>>, %arg7: memref<128x128xf32, #tpu.memory_space<vmem>>, %arg8: memref<128x128xf32, #tpu.memory_space<vmem>>, %arg9: memref<1x128xf32, #tpu.memory_space<vmem>>, %arg10: memref<128x128xf32, #tpu.memory_space<vmem>>, %arg11: memref<1x128xf32, #tpu.memory_space<vmem>>, %arg12: memref<128x128xf32, #tpu.memory_space<vmem>>, %arg13: memref<1x128xf32, #tpu.memory_space<vmem>>, %arg14: memref<128x128xf32, #tpu.memory_space<vmem>>, %arg15: memref<1x128xf32, #tpu.memory_space<vmem>>, %arg16: memref<2x16x128xf32, #tpu.memory_space<vmem>>, %arg17: memref<2x16x16x128xf32, #tpu.memory_space<vmem>>) attributes {dimension_semantics = [#tpu.dimension_semantics<parallel>], iteration_bounds = array<i64: 2>, scalar_prefetch = 0 : i64, scratch_operands = 1 : i64, tpu.core_type = #tpu.core_type<tc>, window_params = [{transform_indices = @transform_0, window_bounds = array<i64: 2, 16, 128>}, {transform_indices = @transform_1, window_bounds = array<i64: 2, 256, 16>}, {pipeline_mode = #tpu.pipeline_mode<synchronous>, transform_indices = @transform_2, window_bounds = array<i64: 16, 128>}, {pipeline_mode = #tpu.pipeline_mode<synchronous>, transform_indices = @transform_3, window_bounds = array<i64: 1, 128>}, {pipeline_mode = #tpu.pipeline_mode<synchronous>, transform_indices = @transform_4, window_bounds = array<i64: 128, 128>}, {pipeline_mode = #tpu.pipeline_mode<synchronous>, transform_indices = @transform_5, window_bounds = array<i64: 1, 128>}, {pipeline_mode = #tpu.pipeline_mode<synchronous>, transform_indices = @transform_6, window_bounds = array<i64: 128, 128>}, {pipeline_mode = #tpu.pipeline_mode<synchronous>, transform_indices = @transform_7, window_bounds = array<i64: 128, 128>}, {pipeline_mode = #tpu.pipeline_mode<synchronous>, transform_indices = @transform_8, window_bounds = array<i64: 1, 128>}, {pipeline_mode = #tpu.pipeline_mode<synchronous>, transform_indices = @transform_9, window_bounds = array<i64: 128, 128>}, {pipeline_mode = #tpu.pipeline_mode<synchronous>, transform_indices = @transform_10, window_bounds = array<i64: 1, 128>}, {pipeline_mode = #tpu.pipeline_mode<synchronous>, transform_indices = @transform_11, window_bounds = array<i64: 128, 128>}, {pipeline_mode = #tpu.pipeline_mode<synchronous>, transform_indices = @transform_12, window_bounds = array<i64: 1, 128>}, {pipeline_mode = #tpu.pipeline_mode<synchronous>, transform_indices = @transform_13, window_bounds = array<i64: 128, 128>}, {pipeline_mode = #tpu.pipeline_mode<synchronous>, transform_indices = @transform_14, window_bounds = array<i64: 1, 128>}, {transform_indices = @transform_15, window_bounds = array<i64: 2, 16, 128>}]} {
    %c0 = arith.constant 0 : index
    %c0_0 = arith.constant 0 : index
    %c0_1 = arith.constant 0 : index
    %0 = vector.load %arg2[%c0, %c0_0, %c0_1] : memref<2x256x16xf32, #tpu.memory_space<vmem>>, vector<2x256x16xf32>
    %1 = vector.shape_cast %0 : vector<2x256x16xf32> to vector<512x16xf32>
    %c0_2 = arith.constant 0 : index
    %c0_3 = arith.constant 0 : index
    %2 = vector.load %arg3[%c0_2, %c0_3] : memref<16x128xf32, #tpu.memory_space<vmem>>, vector<16x128xf32>
    %cst = arith.constant dense<0.000000e+00> : vector<512x128xf32>
    %3 = tpu.matmul %1, %2, %cst {dimension_numbers = #tpu.dot_dimension_numbers<[1], [0], [0], [1], [0, 0, 1, 1], [], []>} : vector<512x16xf32>, vector<16x128xf32>, vector<512x128xf32> -> vector<512x128xf32>
    %c0_4 = arith.constant 0 : index
    %c0_5 = arith.constant 0 : index
    %4 = vector.load %arg4[%c0_4, %c0_5] : memref<1x128xf32, #tpu.memory_space<vmem>>, vector<1x128xf32>
    %5 = vector.broadcast %4 : vector<1x128xf32> to vector<512x128xf32>
    %6 = arith.addf %3, %5 : vector<512x128xf32>
    %cst_6 = arith.constant 0.000000e+00 : f32
    %7 = vector.broadcast %cst_6 : f32 to vector<512x128xf32>
    %8 = arith.maximumf %6, %7 : vector<512x128xf32>
    %9 = math.absf %6 : vector<512x128xf32>
    %cst_7 = arith.constant 0.000000e+00 : f32
    %10 = vector.broadcast %cst_7 : f32 to vector<512x128xf32>
    %11 = arith.subf %10, %9 : vector<512x128xf32>
    %12 = math.exp %11 : vector<512x128xf32>
    %cst_8 = arith.constant 1.000000e+00 : f32
    %13 = vector.broadcast %cst_8 : f32 to vector<512x128xf32>
    %14 = arith.addf %13, %12 : vector<512x128xf32>
    %15 = math.log %14 : vector<512x128xf32>
    %16 = arith.addf %8, %15 : vector<512x128xf32>
    %cst_9 = arith.constant 0.693147182 : f32
    %17 = vector.broadcast %cst_9 : f32 to vector<512x128xf32>
    %18 = arith.subf %16, %17 : vector<512x128xf32>
    %c0_10 = arith.constant 0 : index
    %c0_11 = arith.constant 0 : index
    %19 = vector.load %arg5[%c0_10, %c0_11] : memref<128x128xf32, #tpu.memory_space<vmem>>, vector<128x128xf32>
    %cst_12 = arith.constant dense<0.000000e+00> : vector<512x128xf32>
    %20 = tpu.matmul %18, %19, %cst_12 {dimension_numbers = #tpu.dot_dimension_numbers<[1], [0], [0], [1], [0, 0, 1, 1], [], []>} : vector<512x128xf32>, vector<128x128xf32>, vector<512x128xf32> -> vector<512x128xf32>
    %c0_13 = arith.constant 0 : index
    %c0_14 = arith.constant 0 : index
    %21 = vector.load %arg6[%c0_13, %c0_14] : memref<1x128xf32, #tpu.memory_space<vmem>>, vector<1x128xf32>
    %22 = vector.broadcast %21 : vector<1x128xf32> to vector<512x128xf32>
    %23 = arith.addf %20, %22 : vector<512x128xf32>
    %24 = tpu.iota {dimensions = array<i32: 0>} : vector<16x1xi32>
    %c10_i32 = arith.constant 10 : i32
    %25 = vector.broadcast %c10_i32 : i32 to vector<16x1xi32>
    %26 = arith.cmpi slt, %24, %25 : vector<16x1xi32>
    %27 = arith.extui %26 : vector<16x1xi1> to vector<16x1xi32>
    %28 = arith.sitofp %27 : vector<16x1xi32> to vector<16x1xf32>
    %29 = vector.shape_cast %23 : vector<512x128xf32> to vector<2x16x16x128xf32>
    %30 = vector.shape_cast %28 : vector<16x1xf32> to vector<1x1x16x1xf32>
    %31 = vector.broadcast %30 : vector<1x1x16x1xf32> to vector<2x16x16x128xf32>
    %32 = arith.mulf %29, %31 : vector<2x16x16x128xf32>
    %c0_15 = arith.constant 0 : index
    %c0_16 = arith.constant 0 : index
    %c0_17 = arith.constant 0 : index
    %c0_18 = arith.constant 0 : index
    %33 = vector.load %arg17[%c0_15, %c0_16, %c0_17, %c0_18] : memref<2x16x16x128xf32, #tpu.memory_space<vmem>>, vector<2x16x16x128xf32>
    tpu.vector_store %arg17[%c0_15, %c0_16, %c0_17, %c0_18], %32 {strides = array<i32>} : memref<2x16x16x128xf32, #tpu.memory_space<vmem>>, vector<2x16x16x128xf32>,
    %c0_19 = arith.constant 0 : index
    %c0_20 = arith.constant 0 : index
    %c0_21 = arith.constant 0 : index
    %34 = vector.load %arg1[%c0_19, %c0_20, %c0_21] : memref<2x16x128xf32, #tpu.memory_space<vmem>>, vector<2x16x128xf32>
    %35 = vector.shape_cast %34 : vector<2x16x128xf32> to vector<32x128xf32>
    %c0_i32 = arith.constant 0 : i32
    %c0_22 = arith.constant 0 : index
    %c0_23 = arith.constant 0 : index
    %36 = vector.load %arg7[%c0_22, %c0_23] : memref<128x128xf32, #tpu.memory_space<vmem>>, vector<128x128xf32>
    %cst_24 = arith.constant dense<0.000000e+00> : vector<32x128xf32>
    %37 = tpu.matmul %35, %36, %cst_24 {dimension_numbers = #tpu.dot_dimension_numbers<[1], [0], [0], [1], [0, 0, 1, 1], [], []>} : vector<32x128xf32>, vector<128x128xf32>, vector<32x128xf32> -> vector<32x128xf32>
    %c0_25 = arith.constant 0 : index
    %c0_26 = arith.constant 0 : index
    %c0_27 = arith.constant 0 : index
    %c0_28 = arith.constant 0 : index
    %38 = vector.load %arg17[%c0_25, %c0_26, %c0_27, %c0_28] : memref<2x16x16x128xf32, #tpu.memory_space<vmem>>, vector<2x16x16x128xf32>
    %39 = vector.shape_cast %37 : vector<32x128xf32> to vector<2x1x16x128xf32>
    %40 = vector.broadcast %39 : vector<2x1x16x128xf32> to vector<2x16x16x128xf32>
    %41 = arith.mulf %38, %40 : vector<2x16x16x128xf32>
    %cst_29 = arith.constant dense<0.000000e+00> : vector<2x16x128xf32>
    %42 = vector.multi_reduction <add>, %41, %cst_29 [2] : vector<2x16x16x128xf32> to vector<2x16x128xf32>
    %43 = vector.shape_cast %42 : vector<2x16x128xf32> to vector<32x128xf32>
    %c0_30 = arith.constant 0 : index
    %c0_31 = arith.constant 0 : index
    %44 = vector.load %arg8[%c0_30, %c0_31] : memref<128x128xf32, #tpu.memory_space<vmem>>, vector<128x128xf32>
    %cst_32 = arith.constant dense<0.000000e+00> : vector<32x128xf32>
    %45 = tpu.matmul %43, %44, %cst_32 {dimension_numbers = #tpu.dot_dimension_numbers<[1], [0], [0], [1], [0, 0, 1, 1], [], []>} : vector<32x128xf32>, vector<128x128xf32>, vector<32x128xf32> -> vector<32x128xf32>
    %c0_33 = arith.constant 0 : index
    %c0_34 = arith.constant 0 : index
    %46 = vector.load %arg9[%c0_33, %c0_34] : memref<1x128xf32, #tpu.memory_space<vmem>>, vector<1x128xf32>
    %47 = vector.broadcast %46 : vector<1x128xf32> to vector<32x128xf32>
    %48 = arith.addf %45, %47 : vector<32x128xf32>
    %cst_35 = arith.constant 0.000000e+00 : f32
    %49 = vector.broadcast %cst_35 : f32 to vector<32x128xf32>
    %50 = arith.maximumf %48, %49 : vector<32x128xf32>
    %51 = math.absf %48 : vector<32x128xf32>
    %cst_36 = arith.constant 0.000000e+00 : f32
    %52 = vector.broadcast %cst_36 : f32 to vector<32x128xf32>
    %53 = arith.subf %52, %51 : vector<32x128xf32>
    %54 = math.exp %53 : vector<32x128xf32>
    %cst_37 = arith.constant 1.000000e+00 : f32
    %55 = vector.broadcast %cst_37 : f32 to vector<32x128xf32>
    %56 = arith.addf %55, %54 : vector<32x128xf32>
    %57 = math.log %56 : vector<32x128xf32>
    %58 = arith.addf %50, %57 : vector<32x128xf32>
    %cst_38 = arith.constant 0.693147182 : f32
    %59 = vector.broadcast %cst_38 : f32 to vector<32x128xf32>
    %60 = arith.subf %58, %59 : vector<32x128xf32>
    %c0_39 = arith.constant 0 : index
    %c0_40 = arith.constant 0 : index
    %61 = vector.load %arg10[%c0_39, %c0_40] : memref<128x128xf32, #tpu.memory_space<vmem>>, vector<128x128xf32>
    %cst_41 = arith.constant dense<0.000000e+00> : vector<32x128xf32>
    %62 = tpu.matmul %60, %61, %cst_41 {dimension_numbers = #tpu.dot_dimension_numbers<[1], [0], [0], [1], [0, 0, 1, 1], [], []>} : vector<32x128xf32>, vector<128x128xf32>, vector<32x128xf32> -> vector<32x128xf32>
    %c0_42 = arith.constant 0 : index
    %c0_43 = arith.constant 0 : index
    %63 = vector.load %arg11[%c0_42, %c0_43] : memref<1x128xf32, #tpu.memory_space<vmem>>, vector<1x128xf32>
    %64 = vector.broadcast %63 : vector<1x128xf32> to vector<32x128xf32>
    %65 = arith.addf %62, %64 : vector<32x128xf32>
    %66 = arith.addf %35, %65 : vector<32x128xf32>
    %c1_i32 = arith.constant 1 : i32
    %c0_44 = arith.constant 0 : index
    %c0_45 = arith.constant 0 : index
    %67 = vector.load %arg7[%c0_44, %c0_45] : memref<128x128xf32, #tpu.memory_space<vmem>>, vector<128x128xf32>
    %cst_46 = arith.constant dense<0.000000e+00> : vector<32x128xf32>
    %68 = tpu.matmul %66, %67, %cst_46 {dimension_numbers = #tpu.dot_dimension_numbers<[1], [0], [0], [1], [0, 0, 1, 1], [], []>} : vector<32x128xf32>, vector<128x128xf32>, vector<32x128xf32> -> vector<32x128xf32>
    %c0_47 = arith.constant 0 : index
    %c0_48 = arith.constant 0 : index
    %c0_49 = arith.constant 0 : index
    %c0_50 = arith.constant 0 : index
    %69 = vector.load %arg17[%c0_47, %c0_48, %c0_49, %c0_50] : memref<2x16x16x128xf32, #tpu.memory_space<vmem>>, vector<2x16x16x128xf32>
    %70 = vector.shape_cast %68 : vector<32x128xf32> to vector<2x1x16x128xf32>
    %71 = vector.broadcast %70 : vector<2x1x16x128xf32> to vector<2x16x16x128xf32>
    %72 = arith.mulf %69, %71 : vector<2x16x16x128xf32>
    %cst_51 = arith.constant dense<0.000000e+00> : vector<2x16x128xf32>
    %73 = vector.multi_reduction <add>, %72, %cst_51 [2] : vector<2x16x16x128xf32> to vector<2x16x128xf32>
    %74 = vector.shape_cast %73 : vector<2x16x128xf32> to vector<32x128xf32>
    %c0_52 = arith.constant 0 : index
    %c0_53 = arith.constant 0 : index
    %75 = vector.load %arg8[%c0_52, %c0_53] : memref<128x128xf32, #tpu.memory_space<vmem>>, vector<128x128xf32>
    %cst_54 = arith.constant dense<0.000000e+00> : vector<32x128xf32>
    %76 = tpu.matmul %74, %75, %cst_54 {dimension_numbers = #tpu.dot_dimension_numbers<[1], [0], [0], [1], [0, 0, 1, 1], [], []>} : vector<32x128xf32>, vector<128x128xf32>, vector<32x128xf32> -> vector<32x128xf32>
    %c0_55 = arith.constant 0 : index
    %c0_56 = arith.constant 0 : index
    %77 = vector.load %arg9[%c0_55, %c0_56] : memref<1x128xf32, #tpu.memory_space<vmem>>, vector<1x128xf32>
    %78 = vector.broadcast %77 : vector<1x128xf32> to vector<32x128xf32>
    %79 = arith.addf %76, %78 : vector<32x128xf32>
    %cst_57 = arith.constant 0.000000e+00 : f32
    %80 = vector.broadcast %cst_57 : f32 to vector<32x128xf32>
    %81 = arith.maximumf %79, %80 : vector<32x128xf32>
    %82 = math.absf %79 : vector<32x128xf32>
    %cst_58 = arith.constant 0.000000e+00 : f32
    %83 = vector.broadcast %cst_58 : f32 to vector<32x128xf32>
    %84 = arith.subf %83, %82 : vector<32x128xf32>
    %85 = math.exp %84 : vector<32x128xf32>
    %cst_59 = arith.constant 1.000000e+00 : f32
    %86 = vector.broadcast %cst_59 : f32 to vector<32x128xf32>
    %87 = arith.addf %86, %85 : vector<32x128xf32>
    %88 = math.log %87 : vector<32x128xf32>
    %89 = arith.addf %81, %88 : vector<32x128xf32>
    %cst_60 = arith.constant 0.693147182 : f32
    %90 = vector.broadcast %cst_60 : f32 to vector<32x128xf32>
    %91 = arith.subf %89, %90 : vector<32x128xf32>
    %c0_61 = arith.constant 0 : index
    %c0_62 = arith.constant 0 : index
    %92 = vector.load %arg10[%c0_61, %c0_62] : memref<128x128xf32, #tpu.memory_space<vmem>>, vector<128x128xf32>
    %cst_63 = arith.constant dense<0.000000e+00> : vector<32x128xf32>
    %93 = tpu.matmul %91, %92, %cst_63 {dimension_numbers = #tpu.dot_dimension_numbers<[1], [0], [0], [1], [0, 0, 1, 1], [], []>} : vector<32x128xf32>, vector<128x128xf32>, vector<32x128xf32> -> vector<32x128xf32>
    %c0_64 = arith.constant 0 : index
    %c0_65 = arith.constant 0 : index
    %94 = vector.load %arg11[%c0_64, %c0_65] : memref<1x128xf32, #tpu.memory_space<vmem>>, vector<1x128xf32>
    %95 = vector.broadcast %94 : vector<1x128xf32> to vector<32x128xf32>
    %96 = arith.addf %93, %95 : vector<32x128xf32>
    %97 = arith.addf %66, %96 : vector<32x128xf32>
    %c2_i32 = arith.constant 2 : i32
    %c0_66 = arith.constant 0 : index
    %c0_67 = arith.constant 0 : index
    %98 = vector.load %arg7[%c0_66, %c0_67] : memref<128x128xf32, #tpu.memory_space<vmem>>, vector<128x128xf32>
    %cst_68 = arith.constant dense<0.000000e+00> : vector<32x128xf32>
    %99 = tpu.matmul %97, %98, %cst_68 {dimension_numbers = #tpu.dot_dimension_numbers<[1], [0], [0], [1], [0, 0, 1, 1], [], []>} : vector<32x128xf32>, vector<128x128xf32>, vector<32x128xf32> -> vector<32x128xf32>
    %c0_69 = arith.constant 0 : index
    %c0_70 = arith.constant 0 : index
    %c0_71 = arith.constant 0 : index
    %c0_72 = arith.constant 0 : index
    %100 = vector.load %arg17[%c0_69, %c0_70, %c0_71, %c0_72] : memref<2x16x16x128xf32, #tpu.memory_space<vmem>>, vector<2x16x16x128xf32>
    %101 = vector.shape_cast %99 : vector<32x128xf32> to vector<2x1x16x128xf32>
    %102 = vector.broadcast %101 : vector<2x1x16x128xf32> to vector<2x16x16x128xf32>
    %103 = arith.mulf %100, %102 : vector<2x16x16x128xf32>
    %cst_73 = arith.constant dense<0.000000e+00> : vector<2x16x128xf32>
    %104 = vector.multi_reduction <add>, %103, %cst_73 [2] : vector<2x16x16x128xf32> to vector<2x16x128xf32>
    %105 = vector.shape_cast %104 : vector<2x16x128xf32> to vector<32x128xf32>
    %c0_74 = arith.constant 0 : index
    %c0_75 = arith.constant 0 : index
    %106 = vector.load %arg8[%c0_74, %c0_75] : memref<128x128xf32, #tpu.memory_space<vmem>>, vector<128x128xf32>
    %cst_76 = arith.constant dense<0.000000e+00> : vector<32x128xf32>
    %107 = tpu.matmul %105, %106, %cst_76 {dimension_numbers = #tpu.dot_dimension_numbers<[1], [0], [0], [1], [0, 0, 1, 1], [], []>} : vector<32x128xf32>, vector<128x128xf32>, vector<32x128xf32> -> vector<32x128xf32>
    %c0_77 = arith.constant 0 : index
    %c0_78 = arith.constant 0 : index
    %108 = vector.load %arg9[%c0_77, %c0_78] : memref<1x128xf32, #tpu.memory_space<vmem>>, vector<1x128xf32>
    %109 = vector.broadcast %108 : vector<1x128xf32> to vector<32x128xf32>
    %110 = arith.addf %107, %109 : vector<32x128xf32>
    %cst_79 = arith.constant 0.000000e+00 : f32
    %111 = vector.broadcast %cst_79 : f32 to vector<32x128xf32>
    %112 = arith.maximumf %110, %111 : vector<32x128xf32>
    %113 = math.absf %110 : vector<32x128xf32>
    %cst_80 = arith.constant 0.000000e+00 : f32
    %114 = vector.broadcast %cst_80 : f32 to vector<32x128xf32>
    %115 = arith.subf %114, %113 : vector<32x128xf32>
    %116 = math.exp %115 : vector<32x128xf32>
    %cst_81 = arith.constant 1.000000e+00 : f32
    %117 = vector.broadcast %cst_81 : f32 to vector<32x128xf32>
    %118 = arith.addf %117, %116 : vector<32x128xf32>
    %119 = math.log %118 : vector<32x128xf32>
    %120 = arith.addf %112, %119 : vector<32x128xf32>
    %cst_82 = arith.constant 0.693147182 : f32
    %121 = vector.broadcast %cst_82 : f32 to vector<32x128xf32>
    %122 = arith.subf %120, %121 : vector<32x128xf32>
    %c0_83 = arith.constant 0 : index
    %c0_84 = arith.constant 0 : index
    %123 = vector.load %arg10[%c0_83, %c0_84] : memref<128x128xf32, #tpu.memory_space<vmem>>, vector<128x128xf32>
    %cst_85 = arith.constant dense<0.000000e+00> : vector<32x128xf32>
    %124 = tpu.matmul %122, %123, %cst_85 {dimension_numbers = #tpu.dot_dimension_numbers<[1], [0], [0], [1], [0, 0, 1, 1], [], []>} : vector<32x128xf32>, vector<128x128xf32>, vector<32x128xf32> -> vector<32x128xf32>
    %c0_86 = arith.constant 0 : index
    %c0_87 = arith.constant 0 : index
    %125 = vector.load %arg11[%c0_86, %c0_87] : memref<1x128xf32, #tpu.memory_space<vmem>>, vector<1x128xf32>
    %126 = vector.broadcast %125 : vector<1x128xf32> to vector<32x128xf32>
    %127 = arith.addf %124, %126 : vector<32x128xf32>
    %128 = arith.addf %97, %127 : vector<32x128xf32>
    %c0_88 = arith.constant 0 : index
    %c0_89 = arith.constant 0 : index
    %129 = vector.load %arg12[%c0_88, %c0_89] : memref<128x128xf32, #tpu.memory_space<vmem>>, vector<128x128xf32>
    %cst_90 = arith.constant dense<0.000000e+00> : vector<32x128xf32>
    %130 = tpu.matmul %128, %129, %cst_90 {dimension_numbers = #tpu.dot_dimension_numbers<[1], [0], [0], [1], [0, 0, 1, 1], [], []>} : vector<32x128xf32>, vector<128x128xf32>, vector<32x128xf32> -> vector<32x128xf32>
    %c0_91 = arith.constant 0 : index
    %c0_92 = arith.constant 0 : index
    %131 = vector.load %arg13[%c0_91, %c0_92] : memref<1x128xf32, #tpu.memory_space<vmem>>, vector<1x128xf32>
    %132 = vector.broadcast %131 : vector<1x128xf32> to vector<32x128xf32>
    %133 = arith.addf %130, %132 : vector<32x128xf32>
    %cst_93 = arith.constant 0.000000e+00 : f32
    %134 = vector.broadcast %cst_93 : f32 to vector<32x128xf32>
    %135 = arith.maximumf %133, %134 : vector<32x128xf32>
    %136 = math.absf %133 : vector<32x128xf32>
    %cst_94 = arith.constant 0.000000e+00 : f32
    %137 = vector.broadcast %cst_94 : f32 to vector<32x128xf32>
    %138 = arith.subf %137, %136 : vector<32x128xf32>
    %139 = math.exp %138 : vector<32x128xf32>
    %cst_95 = arith.constant 1.000000e+00 : f32
    %140 = vector.broadcast %cst_95 : f32 to vector<32x128xf32>
    %141 = arith.addf %140, %139 : vector<32x128xf32>
    %142 = math.log %141 : vector<32x128xf32>
    %143 = arith.addf %135, %142 : vector<32x128xf32>
    %cst_96 = arith.constant 0.693147182 : f32
    %144 = vector.broadcast %cst_96 : f32 to vector<32x128xf32>
    %145 = arith.subf %143, %144 : vector<32x128xf32>
    %c0_97 = arith.constant 0 : index
    %c0_98 = arith.constant 0 : index
    %146 = vector.load %arg14[%c0_97, %c0_98] : memref<128x128xf32, #tpu.memory_space<vmem>>, vector<128x128xf32>
    %cst_99 = arith.constant dense<0.000000e+00> : vector<32x128xf32>
    %147 = tpu.matmul %145, %146, %cst_99 {dimension_numbers = #tpu.dot_dimension_numbers<[1], [0], [0], [1], [0, 0, 1, 1], [], []>} : vector<32x128xf32>, vector<128x128xf32>, vector<32x128xf32> -> vector<32x128xf32>
    %c0_100 = arith.constant 0 : index
    %c0_101 = arith.constant 0 : index
    %148 = vector.load %arg15[%c0_100, %c0_101] : memref<1x128xf32, #tpu.memory_space<vmem>>, vector<1x128xf32>
    %149 = vector.broadcast %148 : vector<1x128xf32> to vector<32x128xf32>
    %150 = arith.addf %147, %149 : vector<32x128xf32>
    %151 = vector.shape_cast %150 : vector<32x128xf32> to vector<2x16x128xf32>
    %c0_102 = arith.constant 0 : index
    %c0_103 = arith.constant 0 : index
    %c0_104 = arith.constant 0 : index
    %152 = vector.load %arg16[%c0_102, %c0_103, %c0_104] : memref<2x16x128xf32, #tpu.memory_space<vmem>>, vector<2x16x128xf32>
    tpu.vector_store %arg16[%c0_102, %c0_103, %c0_104], %151 {strides = array<i32>} : memref<2x16x128xf32, #tpu.memory_space<vmem>>, vector<2x16x128xf32>,
    return
  }
  func.func @transform_0(%arg0: i32) -> (i32, i32, i32) {
    %c0_i32 = arith.constant 0 : i32
    %c0_i32_0 = arith.constant 0 : i32
    %c0_i32_1 = arith.constant 0 : i32
    return %arg0, %c0_i32, %c0_i32_0 : i32, i32, i32
  }
  func.func @transform_1(%arg0: i32) -> (i32, i32, i32) {
    %c0_i32 = arith.constant 0 : i32
    %c0_i32_0 = arith.constant 0 : i32
    %c0_i32_1 = arith.constant 0 : i32
    return %arg0, %c0_i32, %c0_i32_0 : i32, i32, i32
  }
  func.func @transform_2(%arg0: i32) -> (i32, i32) {
    %c0_i32 = arith.constant 0 : i32
    %c0_i32_0 = arith.constant 0 : i32
    %c0_i32_1 = arith.constant 0 : i32
    return %c0_i32, %c0_i32_0 : i32, i32
  }
  func.func @transform_3(%arg0: i32) -> (i32, i32) {
    %c0_i32 = arith.constant 0 : i32
    %c0_i32_0 = arith.constant 0 : i32
    %c0_i32_1 = arith.constant 0 : i32
    return %c0_i32, %c0_i32_0 : i32, i32
  }
  func.func @transform_4(%arg0: i32) -> (i32, i32) {
    %c0_i32 = arith.constant 0 : i32
    %c0_i32_0 = arith.constant 0 : i32
    %c0_i32_1 = arith.constant 0 : i32
    return %c0_i32, %c0_i32_0 : i32, i32
  }
  func.func @transform_5(%arg0: i32) -> (i32, i32) {
    %c0_i32 = arith.constant 0 : i32
    %c0_i32_0 = arith.constant 0 : i32
    %c0_i32_1 = arith.constant 0 : i32
    return %c0_i32, %c0_i32_0 : i32, i32
  }
  func.func @transform_6(%arg0: i32) -> (i32, i32) {
    %c0_i32 = arith.constant 0 : i32
    %c0_i32_0 = arith.constant 0 : i32
    %c0_i32_1 = arith.constant 0 : i32
    return %c0_i32, %c0_i32_0 : i32, i32
  }
  func.func @transform_7(%arg0: i32) -> (i32, i32) {
    %c0_i32 = arith.constant 0 : i32
    %c0_i32_0 = arith.constant 0 : i32
    %c0_i32_1 = arith.constant 0 : i32
    return %c0_i32, %c0_i32_0 : i32, i32
  }
  func.func @transform_8(%arg0: i32) -> (i32, i32) {
    %c0_i32 = arith.constant 0 : i32
    %c0_i32_0 = arith.constant 0 : i32
    %c0_i32_1 = arith.constant 0 : i32
    return %c0_i32, %c0_i32_0 : i32, i32
  }
  func.func @transform_9(%arg0: i32) -> (i32, i32) {
    %c0_i32 = arith.constant 0 : i32
    %c0_i32_0 = arith.constant 0 : i32
    %c0_i32_1 = arith.constant 0 : i32
    return %c0_i32, %c0_i32_0 : i32, i32
  }
  func.func @transform_10(%arg0: i32) -> (i32, i32) {
    %c0_i32 = arith.constant 0 : i32
    %c0_i32_0 = arith.constant 0 : i32
    %c0_i32_1 = arith.constant 0 : i32
    return %c0_i32, %c0_i32_0 : i32, i32
  }
  func.func @transform_11(%arg0: i32) -> (i32, i32) {
    %c0_i32 = arith.constant 0 : i32
    %c0_i32_0 = arith.constant 0 : i32
    %c0_i32_1 = arith.constant 0 : i32
    return %c0_i32, %c0_i32_0 : i32, i32
  }
  func.func @transform_12(%arg0: i32) -> (i32, i32) {
    %c0_i32 = arith.constant 0 : i32
    %c0_i32_0 = arith.constant 0 : i32
    %c0_i32_1 = arith.constant 0 : i32
    return %c0_i32, %c0_i32_0 : i32, i32
  }
  func.func @transform_13(%arg0: i32) -> (i32, i32) {
    %c0_i32 = arith.constant 0 : i32
    %c0_i32_0 = arith.constant 0 : i32
    %c0_i32_1 = arith.constant 0 : i32
    return %c0_i32, %c0_i32_0 : i32, i32
  }
  func.func @transform_14(%arg0: i32) -> (i32, i32) {
    %c0_i32 = arith.constant 0 : i32
    %c0_i32_0 = arith.constant 0 : i32
    %c0_i32_1 = arith.constant 0 : i32
    return %c0_i32, %c0_i32_0 : i32, i32
  }
  func.func @transform_15(%arg0: i32) -> (i32, i32, i32) {
    %c0_i32 = arith.constant 0 : i32
    %c0_i32_0 = arith.constant 0 : i32
    %c0_i32_1 = arith.constant 0 : i32
    return %arg0, %c0_i32, %c0_i32_0 : i32, i32, i32
  }
}

</mosaic_0001>

<llo_original>
// kernel: sub.10
$region0: #{sub.10}
  %s0 = inlined_call_operand.vmem [shape: f32[4,16,16], index: 0, kind: input, shape index: {}]
  %s1 = inlined_call_operand.vmem [shape: f32[4,256], index: 1, kind: output, shape index: {}]
  $region1: #{sub.10} parent=0
    #allocation0 [shape = 'u8[8192]{0}', space=vmem, size = 0x2000, scoped, tag = 'scoped mem for output reshape']
    %v2 = vld [vmem:[%s0] ss:$8 sm:$0xf]
    %v3 = vld [vmem:[%s0] ss:$8 sm:$0xf0]
    %vm4 = vcmask 1047556
    %v5 = vsel %vm4, %v3, %v2
    %vm6 = vcmask 130048
    %7 = vst.msk [vmem:[#allocation0] ss:$8 sm:$0x3] %vm6, %v5
    %s8 = scalar_lea.vmem [#allocation0], 4294967281
    %9 = vst.msk [vmem:[%s8] ss:$8 sm:$0xc] %vm6, %v5
    %s10 = scalar_lea.vmem [#allocation0], 4294967266
    %11 = vst.msk [vmem:[%s10] ss:$8 sm:$0x30] %vm6, %v5
    %s12 = scalar_lea.vmem [#allocation0], 4294967251
    %13 = vst.msk [vmem:[%s12] ss:$8 sm:$0xc0] %vm6, %v5
    %s14 = scalar_lea.vmem %s0, 7
    %s15 = smov 3
    %v16 = vld [vmem:[%s14] ss:$16 sm:%s15]
    %s17 = scalar_lea.vmem %s0, 7
    %s18 = smov 12
    %v19 = vld [vmem:[%s17] ss:$16 sm:%s18]
    %vm20 = vcmask 1043458
    %v21 = vsel %vm20, %v19, %v16
    %s22 = scalar_lea.vmem %s0, 4294967247
    %s23 = smov 48
    %v24 = vld [vmem:[%s22] ss:$16 sm:%s23]
    %vm25 = vcmask 1045508
    %v26 = vsel %vm25, %v24, %v21
    %s27 = scalar_lea.vmem %s0, 4294967247
    %s28 = smov 192
    %v29 = vld [vmem:[%s27] ss:$16 sm:%s28]
    %vm30 = vcmask 1047558
    %v31 = vsel %vm30, %v29, %v26
    %32 = vrot.lane.b32.xlu0 %v31, 112
    %v33 = vpop.permute.xlu0 %32
    %vm34 = vcmask 1048448
    %35 = vst.msk [vmem:[#allocation0] sm:$0xf] %vm34, %v33
    %s36 = scalar_lea.vmem [#allocation0], 4
    %37 = vst.msk [vmem:[%s36] sm:$0xf0] %vm34, %v33
    %s38 = scalar_lea.vmem %s0, 6
    %s39 = smov 3
    %v40 = vld [vmem:[%s38] ss:$16 sm:%s39]
    %s41 = scalar_lea.vmem %s0, 6
    %s42 = smov 12
    %v43 = vld [vmem:[%s41] ss:$16 sm:%s42]
    %vm44 = vcmask 1043458
    %v45 = vsel %vm44, %v43, %v40
    %s46 = scalar_lea.vmem %s0, 4294967246
    %s47 = smov 48
    %v48 = vld [vmem:[%s46] ss:$16 sm:%s47]
    %vm49 = vcmask 1045508
    %v50 = vsel %vm49, %v48, %v45
    %s51 = scalar_lea.vmem %s0, 4294967246
    %s52 = smov 192
    %v53 = vld [vmem:[%s51] ss:$16 sm:%s52]
    %vm54 = vcmask 1047558
    %v55 = vsel %vm54, %v53, %v50
    %56 = vrot.lane.b32.xlu0 %v55, 96
    %v57 = vpop.permute.xlu0 %56
    %vm58 = vcmask 917248
    %59 = vst.msk [vmem:[#allocation0] sm:$0xf] %vm58, %v57
    %s60 = scalar_lea.vmem [#allocation0], 4
    %61 = vst.msk [vmem:[%s60] sm:$0xf0] %vm58, %v57
    %s62 = scalar_lea.vmem %s0, 5
    %s63 = smov 3
    %v64 = vld [vmem:[%s62] ss:$16 sm:%s63]
    %s65 = scalar_lea.vmem %s0, 5
    %s66 = smov 12
    %v67 = vld [vmem:[%s65] ss:$16 sm:%s66]
    %vm68 = vcmask 1043458
    %v69 = vsel %vm68, %v67, %v64
    %s70 = scalar_lea.vmem %s0, 4294967245
    %s71 = smov 48
    %v72 = vld [vmem:[%s70] ss:$16 sm:%s71]
    %vm73 = vcmask 1045508
    %v74 = vsel %vm73, %v72, %v69
    %s75 = scalar_lea.vmem %s0, 4294967245
    %s76 = smov 192
    %v77 = vld [vmem:[%s75] ss:$16 sm:%s76]
    %vm78 = vcmask 1047558
    %v79 = vsel %vm78, %v77, %v74
    %80 = vrot.lane.b32.xlu0 %v79, 80
    %v81 = vpop.permute.xlu0 %80
    %vm82 = vcmask 786048
    %83 = vst.msk [vmem:[#allocation0] sm:$0xf] %vm82, %v81
    %s84 = scalar_lea.vmem [#allocation0], 4
    %85 = vst.msk [vmem:[%s84] sm:$0xf0] %vm82, %v81
    %s86 = scalar_lea.vmem %s0, 4
    %s87 = smov 3
    %v88 = vld [vmem:[%s86] ss:$16 sm:%s87]
    %s89 = scalar_lea.vmem %s0, 4
    %s90 = smov 12
    %v91 = vld [vmem:[%s89] ss:$16 sm:%s90]
    %vm92 = vcmask 1043458
    %v93 = vsel %vm92, %v91, %v88
    %s94 = scalar_lea.vmem %s0, 4294967244
    %s95 = smov 48
    %v96 = vld [vmem:[%s94] ss:$16 sm:%s95]
    %vm97 = vcmask 1045508
    %v98 = vsel %vm97, %v96, %v93
    %s99 = scalar_lea.vmem %s0, 4294967244
    %s100 = smov 192
    %v101 = vld [vmem:[%s99] ss:$16 sm:%s100]
    %vm102 = vcmask 1047558
    %v103 = vsel %vm102, %v101, %v98
    %104 = vrot.lane.b32.xlu0 %v103, 64
    %v105 = vpop.permute.xlu0 %104
    %vm106 = vcmask 654848
    %107 = vst.msk [vmem:[#allocation0] sm:$0xf] %vm106, %v105
    %s108 = scalar_lea.vmem [#allocation0], 4
    %109 = vst.msk [vmem:[%s108] sm:$0xf0] %vm106, %v105
    %s110 = scalar_lea.vmem %s0, 3
    %s111 = smov 3
    %v112 = vld [vmem:[%s110] ss:$16 sm:%s111]
    %s113 = scalar_lea.vmem %s0, 3
    %s114 = smov 12
    %v115 = vld [vmem:[%s113] ss:$16 sm:%s114]
    %vm116 = vcmask 1043458
    %v117 = vsel %vm116, %v115, %v112
    %s118 = scalar_lea.vmem %s0, 4294967243
    %s119 = smov 48
    %v120 = vld [vmem:[%s118] ss:$16 sm:%s119]
    %vm121 = vcmask 1045508
    %v122 = vsel %vm121, %v120, %v117
    %s123 = scalar_lea.vmem %s0, 4294967243
    %s124 = smov 192
    %v125 = vld [vmem:[%s123] ss:$16 sm:%s124]
    %vm126 = vcmask 1047558
    %v127 = vsel %vm126, %v125, %v122
    %128 = vrot.lane.b32.xlu0 %v127, 48
    %v129 = vpop.permute.xlu0 %128
    %vm130 = vcmask 523648
    %131 = vst.msk [vmem:[#allocation0] sm:$0xf] %vm130, %v129
    %s132 = scalar_lea.vmem [#allocation0], 4
    %133 = vst.msk [vmem:[%s132] sm:$0xf0] %vm130, %v129
    %s134 = scalar_lea.vmem %s0, 2
    %s135 = smov 3
    %v136 = vld [vmem:[%s134] ss:$16 sm:%s135]
    %s137 = scalar_lea.vmem %s0, 2
    %s138 = smov 12
    %v139 = vld [vmem:[%s137] ss:$16 sm:%s138]
    %vm140 = vcmask 1043458
    %v141 = vsel %vm140, %v139, %v136
    %s142 = scalar_lea.vmem %s0, 4294967242
    %s143 = smov 48
    %v144 = vld [vmem:[%s142] ss:$16 sm:%s143]
    %vm145 = vcmask 1045508
    %v146 = vsel %vm145, %v144, %v141
    %s147 = scalar_lea.vmem %s0, 4294967242
    %s148 = smov 192
    %v149 = vld [vmem:[%s147] ss:$16 sm:%s148]
    %vm150 = vcmask 1047558
    %v151 = vsel %vm150, %v149, %v146
    %152 = vrot.lane.b32.xlu0 %v151, 32
    %v153 = vpop.permute.xlu0 %152
    %vm154 = vcmask 392448
    %155 = vst.msk [vmem:[#allocation0] sm:$0xf] %vm154, %v153
    %s156 = scalar_lea.vmem [#allocation0], 4
    %157 = vst.msk [vmem:[%s156] sm:$0xf0] %vm154, %v153
    %s158 = scalar_lea.vmem %s0, 1
    %s159 = smov 3
    %v160 = vld [vmem:[%s158] ss:$16 sm:%s159]
    %s161 = scalar_lea.vmem %s0, 1
    %s162 = smov 12
    %v163 = vld [vmem:[%s161] ss:$16 sm:%s162]
    %vm164 = vcmask 1043458
    %v165 = vsel %vm164, %v163, %v160
    %s166 = scalar_lea.vmem %s0, 4294967241
    %s167 = smov 48
    %v168 = vld [vmem:[%s166] ss:$16 sm:%s167]
    %vm169 = vcmask 1045508
    %v170 = vsel %vm169, %v168, %v165
    %s171 = scalar_lea.vmem %s0, 4294967241
    %s172 = smov 192
    %v173 = vld [vmem:[%s171] ss:$16 sm:%s172]
    %vm174 = vcmask 1047558
    %v175 = vsel %vm174, %v173, %v170
    %176 = vrot.lane.b32.xlu0 %v175, 16
    %v177 = vpop.permute.xlu0 %176
    %vm178 = vcmask 261248
    %179 = vst.msk [vmem:[#allocation0] sm:$0xf] %vm178, %v177
    %s180 = scalar_lea.vmem [#allocation0], 4
    %181 = vst.msk [vmem:[%s180] sm:$0xf0] %vm178, %v177
    %s183 = ssub.s32 16, 1
    %v184 = vld [vmem:[#allocation0] sm:%s183]
    %s186 = ssub.s32 16, 1
    %187 = vst [vmem:[%s1] sm:%s186] %v184
    %s188 = scalar_lea.vmem [#allocation0], 8
    %v189 = vld [vmem:[%s188] sm:%s183]
    %s191 = ssub.s32 16, 1
    %s192 = scalar_lea.vmem %s1, 4
    %193 = vst [vmem:[%s192] sm:%s191] %v189

// kernel: schnet_forward.1
$region0: #{schnet_forward.1}
  #allocation0 [shape = 'u32[]', space=smem, size = 0x4, offset = 0x4, fixed_abs, tag = 'smem constant byte address 0x4 - core index']
  #allocation1 [shape = 'u32[72,128]{1,0:T(1,128)}', space=vmem, size = 0x9000, scoped, tag = 'internal scratch']
  #allocation2 [shape = 'f32[2,16,16,128]{3,2,1,0:T(8,128)}', space=vmem, size = 0x40000, scoped, tag = 'scratch operand']
  %s0 = inlined_call_operand.vmem [shape: f32[4,16,128], index: 0, kind: input, shape index: {}]
  %s1 = inlined_call_operand.vmem [shape: f32[4,256,16], index: 1, kind: input, shape index: {}]
  %s2 = inlined_call_operand.vmem [shape: f32[16,128], index: 2, kind: input, shape index: {}]
  %s3 = inlined_call_operand.vmem [shape: f32[1,128], index: 3, kind: input, shape index: {}]
  %s4 = inlined_call_operand.vmem [shape: f32[128,128], index: 4, kind: input, shape index: {}]
  %s5 = inlined_call_operand.vmem [shape: f32[1,128], index: 5, kind: input, shape index: {}]
  %s6 = inlined_call_operand.vmem [shape: f32[128,128], index: 6, kind: input, shape index: {}]
  %s7 = inlined_call_operand.vmem [shape: f32[128,128], index: 7, kind: input, shape index: {}]
  %s8 = inlined_call_operand.vmem [shape: f32[1,128], index: 8, kind: input, shape index: {}]
  %s9 = inlined_call_operand.vmem [shape: f32[128,128], index: 9, kind: input, shape index: {}]
  %s10 = inlined_call_operand.vmem [shape: f32[1,128], index: 10, kind: input, shape index: {}]
  %s11 = inlined_call_operand.vmem [shape: f32[128,128], index: 11, kind: input, shape index: {}]
  %s12 = inlined_call_operand.vmem [shape: f32[1,128], index: 12, kind: input, shape index: {}]
  %s13 = inlined_call_operand.vmem [shape: f32[128,128], index: 13, kind: input, shape index: {}]
  %s14 = inlined_call_operand.vmem [shape: f32[1,128], index: 14, kind: input, shape index: {}]
  %s15 = inlined_call_operand.vmem [shape: f32[4,16,128], index: 15, kind: output, shape index: {}]
  %s16 = sld [smem:[#allocation0]]
  $region93: #{schnet_forward.1} parent=0
    _
  %s18 = ssub.s32 1, %s16
  %s19 = scalar_select 0, %s18, %s16
  loop: start=0, step=1, limit=4
  $region2: #{schnet_forward.1} parent=0 // loop_pre_header
    _
  $region3: #{schnet_forward.1} parent=0 // loop_header
    %s21 = sphi 0, %s25
    %p22 = scmp.ge.s32.totalorder %s21, 4
    %s31 = sphi 0, %s33
    %s34 = sphi 0, %s31
    %s35 = sphi 0, %s34
    %s51 = sphi 0, %s35
    %s57 = sphi 0, %s59
    %s60 = sphi 0, %s57
    %s61 = sphi 0, %s60
    %s77 = sphi 0, %s61
    %s81 = sphi 0, %s81
    %s83 = sphi 0, %s81
    %s84 = sphi 0, %s83
    %s98 = sphi 0, %s84
    %s102 = sphi 0, %s102
    %s104 = sphi 0, %s102
    %s105 = sphi 0, %s104
    %s119 = sphi 0, %s105
    %s123 = sphi 0, %s123
    %s125 = sphi 0, %s123
    %s126 = sphi 0, %s125
    %s140 = sphi 0, %s126
    %s144 = sphi 0, %s144
    %s146 = sphi 0, %s144
    %s147 = sphi 0, %s146
    %s161 = sphi 0, %s147
    %s165 = sphi 0, %s165
    %s167 = sphi 0, %s165
    %s168 = sphi 0, %s167
    %s182 = sphi 0, %s168
    %s186 = sphi 0, %s186
    %s188 = sphi 0, %s186
    %s189 = sphi 0, %s188
    %s203 = sphi 0, %s189
    %s207 = sphi 0, %s207
    %s209 = sphi 0, %s207
    %s210 = sphi 0, %s209
    %s224 = sphi 0, %s210
    %s228 = sphi 0, %s228
    %s230 = sphi 0, %s228
    %s231 = sphi 0, %s230
    %s245 = sphi 0, %s231
    %s249 = sphi 0, %s249
    %s251 = sphi 0, %s249
    %s252 = sphi 0, %s251
    %s266 = sphi 0, %s252
    %s270 = sphi 0, %s270
    %s272 = sphi 0, %s270
    %s273 = sphi 0, %s272
    %s287 = sphi 0, %s273
    %s291 = sphi 0, %s291
    %s293 = sphi 0, %s291
    %s294 = sphi 0, %s293
    %s308 = sphi 0, %s294
    %s312 = sphi 0, %s312
    %s314 = sphi 0, %s312
    %s315 = sphi 0, %s314
    %s329 = sphi 0, %s315
    %s333 = sphi 0, %s333
    %s335 = sphi 0, %s333
    %s336 = sphi 0, %s335
    %s350 = sphi 0, %s336
    %s356 = sphi 0, %s358
    %s359 = sphi 0, %s356
    %s360 = sphi 0, %s359
    %s376 = sphi 0, %s360
  $region4: #{schnet_forward.1} parent=0 // loop_header_branch
    %24 = sbr.rel (%p22) target = $region8
  $region5: #{schnet_forward.1} parent=0 // loop_body
    %s26 = ssub.s32 %s21, 1
    %s27 = ssub.s32 %s21, 2
    %s28 = sadd.s32 %s21, 1
    %s29 = ssub.s32 %s21, %s28
    %p30 = scmp.eq.s32.totalorder %s29, 0
    %s32 = sadd.s32 %s31, 1
    %s33 = scalar_select %p30, %s31, %s32
    %p36 = pneg %p30
    %p37 = scmp.eq.s32.totalorder %s21, 1
    %p38 = por %p36, %p37
    %p39 = scmp.ne.s32.totalorder %s31, %s34
    %p40 = scmp.eq.s32.totalorder %s21, 0
    %p41 = por %p39, %p40
    %p42 = scmp.ne.s32.totalorder %s31, %s34
    %p43 = scmp.eq.s32.totalorder %s26, 1
    %p44 = por %p42, %p43
    %p45 = scmp.ne.s32.totalorder %s34, %s35
    %p46 = scmp.eq.s32.totalorder %s26, 0
    %p47 = por %p45, %p46
    %p48 = scmp.ne.s32.totalorder %s34, %s35
    %p49 = scmp.eq.s32.totalorder %s27, 1
    %p50 = por %p48, %p49
    %p52 = scmp.ne.s32.totalorder %s35, %s51
    %p53 = scmp.eq.s32.totalorder %s27, 0
    %p54 = por %p52, %p53
    %s55 = ssub.s32 %s21, %s28
    %p56 = scmp.eq.s32.totalorder %s55, 0
    %s58 = sadd.s32 %s57, 1
    %s59 = scalar_select %p56, %s57, %s58
    %p62 = pneg %p56
    %p63 = scmp.eq.s32.totalorder %s21, 1
    %p64 = por %p62, %p63
    %p65 = scmp.ne.s32.totalorder %s57, %s60
    %p66 = scmp.eq.s32.totalorder %s21, 0
    %p67 = por %p65, %p66
    %p68 = scmp.ne.s32.totalorder %s57, %s60
    %p69 = scmp.eq.s32.totalorder %s26, 1
    %p70 = por %p68, %p69
    %p71 = scmp.ne.s32.totalorder %s60, %s61
    %p72 = scmp.eq.s32.totalorder %s26, 0
    %p73 = por %p71, %p72
    %p74 = scmp.ne.s32.totalorder %s60, %s61
    %p75 = scmp.eq.s32.totalorder %s27, 1
    %p76 = por %p74, %p75
    %p78 = scmp.ne.s32.totalorder %s61, %s77
    %p79 = scmp.eq.s32.totalorder %s27, 0
    %p80 = por %p78, %p79
    %s82 = sadd.s32 %s81, 1
    %p85 = scmp.eq.s32.totalorder %s21, 1
    %p86 = scmp.ne.s32.totalorder %s81, %s83
    %p87 = scmp.eq.s32.totalorder %s21, 0
    %p88 = por %p86, %p87
    %p89 = scmp.ne.s32.totalorder %s81, %s83
    %p90 = scmp.eq.s32.totalorder %s26, 1
    %p91 = por %p89, %p90
    %p92 = scmp.ne.s32.totalorder %s83, %s84
    %p93 = scmp.eq.s32.totalorder %s26, 0
    %p94 = por %p92, %p93
    %p95 = scmp.ne.s32.totalorder %s83, %s84
    %p96 = scmp.eq.s32.totalorder %s27, 1
    %p97 = por %p95, %p96
    %p99 = scmp.ne.s32.totalorder %s84, %s98
    %p100 = scmp.eq.s32.totalorder %s27, 0
    %p101 = por %p99, %p100
    %s103 = sadd.s32 %s102, 1
    %p106 = scmp.eq.s32.totalorder %s21, 1
    %p107 = scmp.ne.s32.totalorder %s102, %s104
    %p108 = scmp.eq.s32.totalorder %s21, 0
    %p109 = por %p107, %p108
    %p110 = scmp.ne.s32.totalorder %s102, %s104
    %p111 = scmp.eq.s32.totalorder %s26, 1
    %p112 = por %p110, %p111
    %p113 = scmp.ne.s32.totalorder %s104, %s105
    %p114 = scmp.eq.s32.totalorder %s26, 0
    %p115 = por %p113, %p114
    %p116 = scmp.ne.s32.totalorder %s104, %s105
    %p117 = scmp.eq.s32.totalorder %s27, 1
    %p118 = por %p116, %p117
    %p120 = scmp.ne.s32.totalorder %s105, %s119
    %p121 = scmp.eq.s32.totalorder %s27, 0
    %p122 = por %p120, %p121
    %s124 = sadd.s32 %s123, 1
    %p127 = scmp.eq.s32.totalorder %s21, 1
    %p128 = scmp.ne.s32.totalorder %s123, %s125
    %p129 = scmp.eq.s32.totalorder %s21, 0
    %p130 = por %p128, %p129
    %p131 = scmp.ne.s32.totalorder %s123, %s125
    %p132 = scmp.eq.s32.totalorder %s26, 1
    %p133 = por %p131, %p132
    %p134 = scmp.ne.s32.totalorder %s125, %s126
    %p135 = scmp.eq.s32.totalorder %s26, 0
    %p136 = por %p134, %p135
    %p137 = scmp.ne.s32.totalorder %s125, %s126
    %p138 = scmp.eq.s32.totalorder %s27, 1
    %p139 = por %p137, %p138
    %p141 = scmp.ne.s32.totalorder %s126, %s140
    %p142 = scmp.eq.s32.totalorder %s27, 0
    %p143 = por %p141, %p142
    %s145 = sadd.s32 %s144, 1
    %p148 = scmp.eq.s32.totalorder %s21, 1
    %p149 = scmp.ne.s32.totalorder %s144, %s146
    %p150 = scmp.eq.s32.totalorder %s21, 0
    %p151 = por %p149, %p150
    %p152 = scmp.ne.s32.totalorder %s144, %s146
    %p153 = scmp.eq.s32.totalorder %s26, 1
    %p154 = por %p152, %p153
    %p155 = scmp.ne.s32.totalorder %s146, %s147
    %p156 = scmp.eq.s32.totalorder %s26, 0
    %p157 = por %p155, %p156
    %p158 = scmp.ne.s32.totalorder %s146, %s147
    %p159 = scmp.eq.s32.totalorder %s27, 1
    %p160 = por %p158, %p159
    %p162 = scmp.ne.s32.totalorder %s147, %s161
    %p163 = scmp.eq.s32.totalorder %s27, 0
    %p164 = por %p162, %p163
    %s166 = sadd.s32 %s165, 1
    %p169 = scmp.eq.s32.totalorder %s21, 1
    %p170 = scmp.ne.s32.totalorder %s165, %s167
    %p171 = scmp.eq.s32.totalorder %s21, 0
    %p172 = por %p170, %p171
    %p173 = scmp.ne.s32.totalorder %s165, %s167
    %p174 = scmp.eq.s32.totalorder %s26, 1
    %p175 = por %p173, %p174
    %p176 = scmp.ne.s32.totalorder %s167, %s168
    %p177 = scmp.eq.s32.totalorder %s26, 0
    %p178 = por %p176, %p177
    %p179 = scmp.ne.s32.totalorder %s167, %s168
    %p180 = scmp.eq.s32.totalorder %s27, 1
    %p181 = por %p179, %p180
    %p183 = scmp.ne.s32.totalorder %s168, %s182
    %p184 = scmp.eq.s32.totalorder %s27, 0
    %p185 = por %p183, %p184
    %s187 = sadd.s32 %s186, 1
    %p190 = scmp.eq.s32.totalorder %s21, 1
    %p191 = scmp.ne.s32.totalorder %s186, %s188
    %p192 = scmp.eq.s32.totalorder %s21, 0
    %p193 = por %p191, %p192
    %p194 = scmp.ne.s32.totalorder %s186, %s188
    %p195 = scmp.eq.s32.totalorder %s26, 1
    %p196 = por %p194, %p195
    %p197 = scmp.ne.s32.totalorder %s188, %s189
    %p198 = scmp.eq.s32.totalorder %s26, 0
    %p199 = por %p197, %p198
    %p200 = scmp.ne.s32.totalorder %s188, %s189
    %p201 = scmp.eq.s32.totalorder %s27, 1
    %p202 = por %p200, %p201
    %p204 = scmp.ne.s32.totalorder %s189, %s203
    %p205 = scmp.eq.s32.totalorder %s27, 0
    %p206 = por %p204, %p205
    %s208 = sadd.s32 %s207, 1
    %p211 = scmp.eq.s32.totalorder %s21, 1
    %p212 = scmp.ne.s32.totalorder %s207, %s209
    %p213 = scmp.eq.s32.totalorder %s21, 0
    %p214 = por %p212, %p213
    %p215 = scmp.ne.s32.totalorder %s207, %s209
    %p216 = scmp.eq.s32.totalorder %s26, 1
    %p217 = por %p215, %p216
    %p218 = scmp.ne.s32.totalorder %s209, %s210
    %p219 = scmp.eq.s32.totalorder %s26, 0
    %p220 = por %p218, %p219
    %p221 = scmp.ne.s32.totalorder %s209, %s210
    %p222 = scmp.eq.s32.totalorder %s27, 1
    %p223 = por %p221, %p222
    %p225 = scmp.ne.s32.totalorder %s210, %s224
    %p226 = scmp.eq.s32.totalorder %s27, 0
    %p227 = por %p225, %p226
    %s229 = sadd.s32 %s228, 1
    %p232 = scmp.eq.s32.totalorder %s21, 1
    %p233 = scmp.ne.s32.totalorder %s228, %s230
    %p234 = scmp.eq.s32.totalorder %s21, 0
    %p235 = por %p233, %p234
    %p236 = scmp.ne.s32.totalorder %s228, %s230
    %p237 = scmp.eq.s32.totalorder %s26, 1
    %p238 = por %p236, %p237
    %p239 = scmp.ne.s32.totalorder %s230, %s231
    %p240 = scmp.eq.s32.totalorder %s26, 0
    %p241 = por %p239, %p240
    %p242 = scmp.ne.s32.totalorder %s230, %s231
    %p243 = scmp.eq.s32.totalorder %s27, 1
    %p244 = por %p242, %p243
    %p246 = scmp.ne.s32.totalorder %s231, %s245
    %p247 = scmp.eq.s32.totalorder %s27, 0
    %p248 = por %p246, %p247
    %s250 = sadd.s32 %s249, 1
    %p253 = scmp.eq.s32.totalorder %s21, 1
    %p254 = scmp.ne.s32.totalorder %s249, %s251
    %p255 = scmp.eq.s32.totalorder %s21, 0
    %p256 = por %p254, %p255
    %p257 = scmp.ne.s32.totalorder %s249, %s251
    %p258 = scmp.eq.s32.totalorder %s26, 1
    %p259 = por %p257, %p258
    %p260 = scmp.ne.s32.totalorder %s251, %s252
    %p261 = scmp.eq.s32.totalorder %s26, 0
    %p262 = por %p260, %p261
    %p263 = scmp.ne.s32.totalorder %s251, %s252
    %p264 = scmp.eq.s32.totalorder %s27, 1
    %p265 = por %p263, %p264
    %p267 = scmp.ne.s32.totalorder %s252, %s266
    %p268 = scmp.eq.s32.totalorder %s27, 0
    %p269 = por %p267, %p268
    %s271 = sadd.s32 %s270, 1
    %p274 = scmp.eq.s32.totalorder %s21, 1
    %p275 = scmp.ne.s32.totalorder %s270, %s272
    %p276 = scmp.eq.s32.totalorder %s21, 0
    %p277 = por %p275, %p276
    %p278 = scmp.ne.s32.totalorder %s270, %s272
    %p279 = scmp.eq.s32.totalorder %s26, 1
    %p280 = por %p278, %p279
    %p281 = scmp.ne.s32.totalorder %s272, %s273
    %p282 = scmp.eq.s32.totalorder %s26, 0
    %p283 = por %p281, %p282
    %p284 = scmp.ne.s32.totalorder %s272, %s273
    %p285 = scmp.eq.s32.totalorder %s27, 1
    %p286 = por %p284, %p285
    %p288 = scmp.ne.s32.totalorder %s273, %s287
    %p289 = scmp.eq.s32.totalorder %s27, 0
    %p290 = por %p288, %p289
    %s292 = sadd.s32 %s291, 1
    %p295 = scmp.eq.s32.totalorder %s21, 1
    %p296 = scmp.ne.s32.totalorder %s291, %s293
    %p297 = scmp.eq.s32.totalorder %s21, 0
    %p298 = por %p296, %p297
    %p299 = scmp.ne.s32.totalorder %s291, %s293
    %p300 = scmp.eq.s32.totalorder %s26, 1
    %p301 = por %p299, %p300
    %p302 = scmp.ne.s32.totalorder %s293, %s294
    %p303 = scmp.eq.s32.totalorder %s26, 0
    %p304 = por %p302, %p303
    %p305 = scmp.ne.s32.totalorder %s293, %s294
    %p306 = scmp.eq.s32.totalorder %s27, 1
    %p307 = por %p305, %p306
    %p309 = scmp.ne.s32.totalorder %s294, %s308
    %p310 = scmp.eq.s32.totalorder %s27, 0
    %p311 = por %p309, %p310
    %s313 = sadd.s32 %s312, 1
    %p316 = scmp.eq.s32.totalorder %s21, 1
    %p317 = scmp.ne.s32.totalorder %s312, %s314
    %p318 = scmp.eq.s32.totalorder %s21, 0
    %p319 = por %p317, %p318
    %p320 = scmp.ne.s32.totalorder %s312, %s314
    %p321 = scmp.eq.s32.totalorder %s26, 1
    %p322 = por %p320, %p321
    %p323 = scmp.ne.s32.totalorder %s314, %s315
    %p324 = scmp.eq.s32.totalorder %s26, 0
    %p325 = por %p323, %p324
    %p326 = scmp.ne.s32.totalorder %s314, %s315
    %p327 = scmp.eq.s32.totalorder %s27, 1
    %p328 = por %p326, %p327
    %p330 = scmp.ne.s32.totalorder %s315, %s329
    %p331 = scmp.eq.s32.totalorder %s27, 0
    %p332 = por %p330, %p331
    %s334 = sadd.s32 %s333, 1
    %p337 = scmp.eq.s32.totalorder %s21, 1
    %p338 = scmp.ne.s32.totalorder %s333, %s335
    %p339 = scmp.eq.s32.totalorder %s21, 0
    %p340 = por %p338, %p339
    %p341 = scmp.ne.s32.totalorder %s333, %s335
    %p342 = scmp.eq.s32.totalorder %s26, 1
    %p343 = por %p341, %p342
    %p344 = scmp.ne.s32.totalorder %s335, %s336
    %p345 = scmp.eq.s32.totalorder %s26, 0
    %p346 = por %p344, %p345
    %p347 = scmp.ne.s32.totalorder %s335, %s336
    %p348 = scmp.eq.s32.totalorder %s27, 1
    %p349 = por %p347, %p348
    %p351 = scmp.ne.s32.totalorder %s336, %s350
    %p352 = scmp.eq.s32.totalorder %s27, 0
    %p353 = por %p351, %p352
    %s354 = ssub.s32 %s21, %s28
    %p355 = scmp.eq.s32.totalorder %s354, 0
    %s357 = sadd.s32 %s356, 1
    %s358 = scalar_select %p355, %s356, %s357
    %p361 = pneg %p355
    %p362 = scmp.eq.s32.totalorder %s21, 1
    %p363 = por %p361, %p362
    %p364 = scmp.ne.s32.totalorder %s356, %s359
    %p365 = scmp.eq.s32.totalorder %s21, 0
    %p366 = por %p364, %p365
    %p367 = scmp.ne.s32.totalorder %s356, %s359
    %p368 = scmp.eq.s32.totalorder %s26, 1
    %p369 = por %p367, %p368
    %p370 = scmp.ne.s32.totalorder %s359, %s360
    %p371 = scmp.eq.s32.totalorder %s26, 0
    %p372 = por %p370, %p371
    %p373 = scmp.ne.s32.totalorder %s359, %s360
    %p374 = scmp.eq.s32.totalorder %s27, 1
    %p375 = por %p373, %p374
    %p377 = scmp.ne.s32.totalorder %s360, %s376
    %p378 = scmp.eq.s32.totalorder %s27, 0
    %p379 = por %p377, %p378
    %p380 = scmp.le.s32.totalorder 1, %s21
    %p381 = scmp.lt.s32.totalorder %s21, 3
    %p382 = pnand %p380, %p381
    %p383 = pneg %p382
    // Predicated region
    $region9: #{schnet_forward.1} parent=5 // pred_check
      _
    $region10: #{schnet_forward.1} parent=5 // pred_check_branch
      %385 = sbr.rel (%p382) target = $region12
    $region11: #{schnet_forward.1} parent=5 // pred_region
      %s386 = ssub.s32 %s21, 1
      // Predicated region
      $region13: #{schnet_forward.1} parent=11 // pred_check
        %p387 = pneg %p94
      $region14: #{schnet_forward.1} parent=11 // pred_check_branch
        %389 = sbr.rel (%p387) target = $region16
      $region15: #{schnet_forward.1} parent=11 // pred_region
        _
      $region16: #{schnet_forward.1} parent=11 // pred_fallthru
        _
      // Predicated region
      $region17: #{schnet_forward.1} parent=11 // pred_check
        %p390 = pneg %p115
      $region18: #{schnet_forward.1} parent=11 // pred_check_branch
        %392 = sbr.rel (%p390) target = $region20
      $region19: #{schnet_forward.1} parent=11 // pred_region
        _
      $region20: #{schnet_forward.1} parent=11 // pred_fallthru
        _
      // Predicated region
      $region21: #{schnet_forward.1} parent=11 // pred_check
        %p393 = pneg %p136
      $region22: #{schnet_forward.1} parent=11 // pred_check_branch
        %395 = sbr.rel (%p393) target = $region24
      $region23: #{schnet_forward.1} parent=11 // pred_region
        _
      $region24: #{schnet_forward.1} parent=11 // pred_fallthru
        _
      // Predicated region
      $region25: #{schnet_forward.1} parent=11 // pred_check
        %p396 = pneg %p157
      $region26: #{schnet_forward.1} parent=11 // pred_check_branch
        %398 = sbr.rel (%p396) target = $region28
      $region27: #{schnet_forward.1} parent=11 // pred_region
        _
      $region28: #{schnet_forward.1} parent=11 // pred_fallthru
        _
      // Predicated region
      $region29: #{schnet_forward.1} parent=11 // pred_check
        %p399 = pneg %p178
      $region30: #{schnet_forward.1} parent=11 // pred_check_branch
        %401 = sbr.rel (%p399) target = $region32
      $region31: #{schnet_forward.1} parent=11 // pred_region
        _
      $region32: #{schnet_forward.1} parent=11 // pred_fallthru
        _
      // Predicated region
      $region33: #{schnet_forward.1} parent=11 // pred_check
        %p402 = pneg %p199
      $region34: #{schnet_forward.1} parent=11 // pred_check_branch
        %404 = sbr.rel (%p402) target = $region36
      $region35: #{schnet_forward.1} parent=11 // pred_region
        _
      $region36: #{schnet_forward.1} parent=11 // pred_fallthru
        _
      // Predicated region
      $region37: #{schnet_forward.1} parent=11 // pred_check
        %p405 = pneg %p220
      $region38: #{schnet_forward.1} parent=11 // pred_check_branch
        %407 = sbr.rel (%p405) target = $region40
      $region39: #{schnet_forward.1} parent=11 // pred_region
        _
      $region40: #{schnet_forward.1} parent=11 // pred_fallthru
        _
      // Predicated region
      $region41: #{schnet_forward.1} parent=11 // pred_check
        %p408 = pneg %p241
      $region42: #{schnet_forward.1} parent=11 // pred_check_branch
        %410 = sbr.rel (%p408) target = $region44
      $region43: #{schnet_forward.1} parent=11 // pred_region
        _
      $region44: #{schnet_forward.1} parent=11 // pred_fallthru
        _
      // Predicated region
      $region45: #{schnet_forward.1} parent=11 // pred_check
        %p411 = pneg %p262
      $region46: #{schnet_forward.1} parent=11 // pred_check_branch
        %413 = sbr.rel (%p411) target = $region48
      $region47: #{schnet_forward.1} parent=11 // pred_region
        _
      $region48: #{schnet_forward.1} parent=11 // pred_fallthru
        _
      // Predicated region
      $region49: #{schnet_forward.1} parent=11 // pred_check
        %p414 = pneg %p283
      $region50: #{schnet_forward.1} parent=11 // pred_check_branch
        %416 = sbr.rel (%p414) target = $region52
      $region51: #{schnet_forward.1} parent=11 // pred_region
        _
      $region52: #{schnet_forward.1} parent=11 // pred_fallthru
        _
      // Predicated region
      $region53: #{schnet_forward.1} parent=11 // pred_check
        %p417 = pneg %p304
      $region54: #{schnet_forward.1} parent=11 // pred_check_branch
        %419 = sbr.rel (%p417) target = $region56
      $region55: #{schnet_forward.1} parent=11 // pred_region
        _
      $region56: #{schnet_forward.1} parent=11 // pred_fallthru
        _
      // Predicated region
      $region57: #{schnet_forward.1} parent=11 // pred_check
        %p420 = pneg %p325
      $region58: #{schnet_forward.1} parent=11 // pred_check_branch
        %422 = sbr.rel (%p420) target = $region60
      $region59: #{schnet_forward.1} parent=11 // pred_region
        _
      $region60: #{schnet_forward.1} parent=11 // pred_fallthru
        _
      // Predicated region
      $region61: #{schnet_forward.1} parent=11 // pred_check
        %p423 = pneg %p346
      $region62: #{schnet_forward.1} parent=11 // pred_check_branch
        %425 = sbr.rel (%p423) target = $region64
      $region63: #{schnet_forward.1} parent=11 // pred_region
        _
      $region64: #{schnet_forward.1} parent=11 // pred_fallthru
        _
    $region12: #{schnet_forward.1} parent=5 // pred_fallthru
      _
    %p426 = scmp.lt.s32.totalorder %s21, 2
    // Predicated region
    $region65: #{schnet_forward.1} parent=5 // pred_check
      %p427 = pneg %p426
    $region66: #{schnet_forward.1} parent=5 // pred_check_branch
      %429 = sbr.rel (%p427) target = $region68
    $region67: #{schnet_forward.1} parent=5 // pred_region
      // Predicated region
      $region69: #{schnet_forward.1} parent=67 // pred_check
        %p430 = pneg %p41
      $region70: #{schnet_forward.1} parent=67 // pred_check_branch
        %432 = sbr.rel (%p430) target = $region72
      $region71: #{schnet_forward.1} parent=67 // pred_region
        %s433 = smul.u32 2, %s21
        %p434 = scmp.lt.s32.totalorder %s433, 3
        %s435 = scalar_select %p434, %s433, 3
        %s436 = smul.addr %s435, 2
        %s437 = smul.addr %s436, 8
        %s438 = scalar_lea.vmem %s0, %s437
        %s439 = smul.u32 2, %s21
      $region72: #{schnet_forward.1} parent=67 // pred_fallthru
        _
      // Predicated region
      $region73: #{schnet_forward.1} parent=67 // pred_check
        %p440 = pneg %p67
      $region74: #{schnet_forward.1} parent=67 // pred_check_branch
        %442 = sbr.rel (%p440) target = $region76
      $region75: #{schnet_forward.1} parent=67 // pred_region
        %s443 = smul.u32 2, %s21
        %p444 = scmp.lt.s32.totalorder %s443, 3
        %s445 = scalar_select %p444, %s443, 3
        %s446 = smul.addr %s445, 32
        %s447 = smul.addr %s446, 8
        %s448 = scalar_lea.vmem %s1, %s447
        %s449 = smul.u32 2, %s21
      $region76: #{schnet_forward.1} parent=67 // pred_fallthru
        _
    $region68: #{schnet_forward.1} parent=5 // pred_fallthru
      _
    %p450 = scmp.le.s32.totalorder 1, %s21
    %p451 = scmp.lt.s32.totalorder %s21, 3
    %p452 = pnand %p450, %p451
    %p453 = pneg %p452
    // Predicated region
    $region77: #{schnet_forward.1} parent=5 // pred_check
      _
    $region78: #{schnet_forward.1} parent=5 // pred_check_branch
      %455 = sbr.rel (%p452) target = $region80
    $region79: #{schnet_forward.1} parent=5 // pred_region
      %s456 = ssub.s32 %s21, 1
      %s457 = smul.u32 2, %s26
      %p458 = scmp.lt.s32.totalorder %s457, 3
      %s459 = scalar_select %p458, %s457, 3
      %s460 = smul.addr %s459, 2
      %s461 = smul.addr %s460, 8
      %s462 = scalar_lea.vmem %s0, %s461
      %p463 = pneg %p47
      %p464 = pneg %p44
      %s465 = smul.u32 2, %s26
      %p466 = scmp.lt.s32.totalorder %s465, 3
      %s467 = scalar_select %p466, %s465, 3
      %s468 = smul.addr %s467, 32
      %s469 = smul.addr %s468, 8
      %s470 = scalar_lea.vmem %s1, %s469
      %p471 = pneg %p73
      %p472 = pneg %p70
      %p473 = pneg %p94
      %p474 = pneg %p91
      %p475 = pneg %p115
      %p476 = pneg %p112
      %p477 = pneg %p136
      %p478 = pneg %p133
      %p479 = pneg %p157
      %p480 = pneg %p154
      %p481 = pneg %p178
      %p482 = pneg %p175
      %p483 = pneg %p199
      %p484 = pneg %p196
      %p485 = pneg %p220
      %p486 = pneg %p217
      %p487 = pneg %p241
      %p488 = pneg %p238
      %p489 = pneg %p262
      %p490 = pneg %p259
      %p491 = pneg %p283
      %p492 = pneg %p280
      %p493 = pneg %p304
      %p494 = pneg %p301
      %p495 = pneg %p325
      %p496 = pneg %p322
      %p497 = pneg %p346
      %p498 = pneg %p343
      %p499 = pneg %p372
      %p500 = pneg %p369
      %s501 = smul.u32 2, %s26
      %p502 = scmp.lt.s32.totalorder %s501, 3
      %s503 = scalar_select %p502, %s501, 3
      %s504 = smul.addr %s503, 2
      %s505 = smul.addr %s504, 8
      %s506 = scalar_lea.vmem %s15, %s505
      %s507 = smul.u32 2, %s26
      %p508 = scmp.lt.s32.totalorder %s507, 3
      %s509 = scalar_select %p508, %s507, 3
      %s510 = smul.addr %s509, 2
      %s511 = smul.addr %s510, 8
      %s512 = scalar_lea.vmem %s0, %s511
      %s513 = smul.u32 2, %s26
      %s514 = smul.u32 2, %s26
      %p515 = scmp.lt.s32.totalorder %s514, 3
      %s516 = scalar_select %p515, %s514, 3
      %s517 = smul.addr %s516, 32
      %s518 = smul.addr %s517, 8
      %s519 = scalar_lea.vmem %s1, %s518
      %s520 = smul.u32 2, %s26
      %s521 = smul.u32 2, %s26
      %p522 = scmp.lt.s32.totalorder %s521, 3
      %s523 = scalar_select %p522, %s521, 3
      %s524 = smul.addr %s523, 2
      %s525 = smul.addr %s524, 8
      %s526 = scalar_lea.vmem %s15, %s525
      %s527 = smul.u32 2, %s26
      %v528 = vld [vmem:[%s519] sm:$0xff]
      %v529 = vld [vmem:[%s519 + $0x8] sm:$0xff]
      %v530 = vld [vmem:[%s519 + $0x10] sm:$0xff]
      %v531 = vld [vmem:[%s519 + $0x18] sm:$0xff]
      %v532 = vld [vmem:[%s519 + $0x20] sm:$0xff]
      %v533 = vld [vmem:[%s519 + $0x28] sm:$0xff]
      %v534 = vld [vmem:[%s519 + $0x30] sm:$0xff]
      %v535 = vld [vmem:[%s519 + $0x38] sm:$0xff]
      %v536 = vld [vmem:[%s519 + $0x40] sm:$0xff]
      %v537 = vld [vmem:[%s519 + $0x48] sm:$0xff]
      %v538 = vld [vmem:[%s519 + $0x50] sm:$0xff]
      %v539 = vld [vmem:[%s519 + $0x58] sm:$0xff]
      %v540 = vld [vmem:[%s519 + $0x60] sm:$0xff]
      %v541 = vld [vmem:[%s519 + $0x68] sm:$0xff]
      %v542 = vld [vmem:[%s519 + $0x70] sm:$0xff]
      %v543 = vld [vmem:[%s519 + $0x78] sm:$0xff]
      %v544 = vld [vmem:[%s519 + $0x80] sm:$0xff]
      %v545 = vld [vmem:[%s519 + $0x88] sm:$0xff]
      %v546 = vld [vmem:[%s519 + $0x90] sm:$0xff]
      %v547 = vld [vmem:[%s519 + $0x98] sm:$0xff]
      %v548 = vld [vmem:[%s519 + $0xa0] sm:$0xff]
      %v549 = vld [vmem:[%s519 + $0xa8] sm:$0xff]
      %v550 = vld [vmem:[%s519 + $0xb0] sm:$0xff]
      %v551 = vld [vmem:[%s519 + $0xb8] sm:$0xff]
      %v552 = vld [vmem:[%s519 + $0xc0] sm:$0xff]
      %v553 = vld [vmem:[%s519 + $0xc8] sm:$0xff]
      %v554 = vld [vmem:[%s519 + $0xd0] sm:$0xff]
      %v555 = vld [vmem:[%s519 + $0xd8] sm:$0xff]
      %v556 = vld [vmem:[%s519 + $0xe0] sm:$0xff]
      %v557 = vld [vmem:[%s519 + $0xe8] sm:$0xff]
      %v558 = vld [vmem:[%s519 + $0xf0] sm:$0xff]
      %v559 = vld [vmem:[%s519 + $0xf8] sm:$0xff]
      %v560 = vld [vmem:[%s519 + $0x100] sm:$0xff]
      %v561 = vld [vmem:[%s519 + $0x108] sm:$0xff]
      %v562 = vld [vmem:[%s519 + $0x110] sm:$0xff]
      %v563 = vld [vmem:[%s519 + $0x118] sm:$0xff]
      %v564 = vld [vmem:[%s519 + $0x120] sm:$0xff]
      %v565 = vld [vmem:[%s519 + $0x128] sm:$0xff]
      %v566 = vld [vmem:[%s519 + $0x130] sm:$0xff]
      %v567 = vld [vmem:[%s519 + $0x138] sm:$0xff]
      %v568 = vld [vmem:[%s519 + $0x140] sm:$0xff]
      %v569 = vld [vmem:[%s519 + $0x148] sm:$0xff]
      %v570 = vld [vmem:[%s519 + $0x150] sm:$0xff]
      %v571 = vld [vmem:[%s519 + $0x158] sm:$0xff]
      %v572 = vld [vmem:[%s519 + $0x160] sm:$0xff]
      %v573 = vld [vmem:[%s519 + $0x168] sm:$0xff]
      %v574 = vld [vmem:[%s519 + $0x170] sm:$0xff]
      %v575 = vld [vmem:[%s519 + $0x178] sm:$0xff]
      %v576 = vld [vmem:[%s519 + $0x180] sm:$0xff]
      %v577 = vld [vmem:[%s519 + $0x188] sm:$0xff]
      %v578 = vld [vmem:[%s519 + $0x190] sm:$0xff]
      %v579 = vld [vmem:[%s519 + $0x198] sm:$0xff]
      %v580 = vld [vmem:[%s519 + $0x1a0] sm:$0xff]
      %v581 = vld [vmem:[%s519 + $0x1a8] sm:$0xff]
      %v582 = vld [vmem:[%s519 + $0x1b0] sm:$0xff]
      %v583 = vld [vmem:[%s519 + $0x1b8] sm:$0xff]
      %v584 = vld [vmem:[%s519 + $0x1c0] sm:$0xff]
      %v585 = vld [vmem:[%s519 + $0x1c8] sm:$0xff]
      %v586 = vld [vmem:[%s519 + $0x1d0] sm:$0xff]
      %v587 = vld [vmem:[%s519 + $0x1d8] sm:$0xff]
      %v588 = vld [vmem:[%s519 + $0x1e0] sm:$0xff]
      %v589 = vld [vmem:[%s519 + $0x1e8] sm:$0xff]
      %v590 = vld [vmem:[%s519 + $0x1f0] sm:$0xff]
      %v591 = vld [vmem:[%s519 + $0x1f8] sm:$0xff]
      %v592 = vld [vmem:[%s2] sm:$0xff]
      %v593 = vld [vmem:[%s2 + $0x8] sm:$0xff]
      %v594 = vld [vmem:[%s3] sm:$0x1]
      %v596 = vperm.slane %v594, 0
      %vm598 = vcmask 130048
      %v600 = vsel %vm598, %v528, 0
      %v603 = vsel %vm598, %v529, 0
      %v606 = vsel %vm598, %v530, 0
      %v609 = vsel %vm598, %v531, 0
      %v612 = vsel %vm598, %v532, 0
      %v615 = vsel %vm598, %v533, 0
      %v618 = vsel %vm598, %v534, 0
      %v621 = vsel %vm598, %v535, 0
      %v624 = vsel %vm598, %v536, 0
      %v627 = vsel %vm598, %v537, 0
      %v630 = vsel %vm598, %v538, 0
      %v633 = vsel %vm598, %v539, 0
      %v636 = vsel %vm598, %v540, 0
      %v639 = vsel %vm598, %v541, 0
      %v642 = vsel %vm598, %v542, 0
      %v645 = vsel %vm598, %v543, 0
      %v648 = vsel %vm598, %v544, 0
      %v651 = vsel %vm598, %v545, 0
      %v654 = vsel %vm598, %v546, 0
      %v657 = vsel %vm598, %v547, 0
      %v660 = vsel %vm598, %v548, 0
      %v663 = vsel %vm598, %v549, 0
      %v666 = vsel %vm598, %v550, 0
      %v669 = vsel %vm598, %v551, 0
      %v672 = vsel %vm598, %v552, 0
      %v675 = vsel %vm598, %v553, 0
      %v678 = vsel %vm598, %v554, 0
      %v681 = vsel %vm598, %v555, 0
      %v684 = vsel %vm598, %v556, 0
      %v687 = vsel %vm598, %v557, 0
      %v690 = vsel %vm598, %v558, 0
      %v693 = vsel %vm598, %v559, 0
      %v696 = vsel %vm598, %v560, 0
      %v699 = vsel %vm598, %v561, 0
      %v702 = vsel %vm598, %v562, 0
      %v705 = vsel %vm598, %v563, 0
      %v708 = vsel %vm598, %v564, 0
      %v711 = vsel %vm598, %v565, 0
      %v714 = vsel %vm598, %v566, 0
      %v717 = vsel %vm598, %v567, 0
      %v720 = vsel %vm598, %v568, 0
      %v723 = vsel %vm598, %v569, 0
      %v726 = vsel %vm598, %v570, 0
      %v729 = vsel %vm598, %v571, 0
      %v732 = vsel %vm598, %v572, 0
      %v735 = vsel %vm598, %v573, 0
      %v738 = vsel %vm598, %v574, 0
      %v741 = vsel %vm598, %v575, 0
      %v744 = vsel %vm598, %v576, 0
      %v747 = vsel %vm598, %v577, 0
      %v750 = vsel %vm598, %v578, 0
      %v753 = vsel %vm598, %v579, 0
      %v756 = vsel %vm598, %v580, 0
      %v759 = vsel %vm598, %v581, 0
      %v762 = vsel %vm598, %v582, 0
      %v765 = vsel %vm598, %v583, 0
      %v768 = vsel %vm598, %v584, 0
      %v771 = vsel %vm598, %v585, 0
      %v774 = vsel %vm598, %v586, 0
      %v777 = vsel %vm598, %v587, 0
      %v780 = vsel %vm598, %v588, 0
      %v783 = vsel %vm598, %v589, 0
      %v786 = vsel %vm598, %v590, 0
      %v789 = vsel %vm598, %v591, 0
      %791 = vmatpush.msra.mxu0 0.0
      %792 = vmatpush.msra.mxu0 0.0
      %793 = vmatpush.msra.mxu0 0.0
      %794 = vmatpush.msra.mxu0 0.0
      %795 = vmatpush.msra.mxu0 0.0
      %796 = vmatpush.msra.mxu0 0.0
      %797 = vmatpush.msra.mxu0 0.0
      %798 = vmatpush.msra.mxu0 0.0
      %799 = vmatpush.msra.mxu0 0.0
      %800 = vmatpush.msra.mxu0 0.0
      %801 = vmatpush.msra.mxu0 0.0
      %802 = vmatpush.msra.mxu0 0.0
      %803 = vmatpush.msra.mxu0 0.0
      %804 = vmatpush.msra.mxu0 0.0
      %805 = vmatpush.msra.mxu0 %v593
      %806 = vmatpush.msra.mxu0 %v592
      %807 = vmatmul.f32.gmra.mxu0 %v600
      %v808 = vpop.f32.mrf.mxu0
      %v809 = vadd.f32 %v596, %v808
      %810 = vmatmul.f32.gmra.mxu0 %v603
      %v811 = vpop.f32.mrf.mxu0
      %v812 = vadd.f32 %v596, %v811
      %813 = vmatmul.f32.gmra.mxu0 %v606
      %v814 = vpop.f32.mrf.mxu0
      %v815 = vadd.f32 %v596, %v814
      %816 = vmatmul.f32.gmra.mxu0 %v609
      %v817 = vpop.f32.mrf.mxu0
      %v818 = vadd.f32 %v596, %v817
      %819 = vmatmul.f32.gmra.mxu0 %v612
      %v820 = vpop.f32.mrf.mxu0
      %v821 = vadd.f32 %v596, %v820
      %822 = vmatmul.f32.gmra.mxu0 %v615
      %v823 = vpop.f32.mrf.mxu0
      %v824 = vadd.f32 %v596, %v823
      %825 = vmatmul.f32.gmra.mxu0 %v618
      %v826 = vpop.f32.mrf.mxu0
      %v827 = vadd.f32 %v596, %v826
      %828 = vmatmul.f32.gmra.mxu0 %v621
      %v829 = vpop.f32.mrf.mxu0
      %v830 = vadd.f32 %v596, %v829
      %831 = vmatmul.f32.gmra.mxu0 %v624
      %v832 = vpop.f32.mrf.mxu0
      %v833 = vadd.f32 %v596, %v832
      %834 = vmatmul.f32.gmra.mxu0 %v627
      %v835 = vpop.f32.mrf.mxu0
      %v836 = vadd.f32 %v596, %v835
      %837 = vmatmul.f32.gmra.mxu0 %v630
      %v838 = vpop.f32.mrf.mxu0
      %v839 = vadd.f32 %v596, %v838
      %840 = vmatmul.f32.gmra.mxu0 %v633
      %v841 = vpop.f32.mrf.mxu0
      %v842 = vadd.f32 %v596, %v841
      %843 = vmatmul.f32.gmra.mxu0 %v636
      %v844 = vpop.f32.mrf.mxu0
      %v845 = vadd.f32 %v596, %v844
      %846 = vmatmul.f32.gmra.mxu0 %v639
      %v847 = vpop.f32.mrf.mxu0
      %v848 = vadd.f32 %v596, %v847
      %849 = vmatmul.f32.gmra.mxu0 %v642
      %v850 = vpop.f32.mrf.mxu0
      %v851 = vadd.f32 %v596, %v850
      %852 = vmatmul.f32.gmra.mxu0 %v645
      %v853 = vpop.f32.mrf.mxu0
      %v854 = vadd.f32 %v596, %v853
      %855 = vmatmul.f32.gmra.mxu0 %v648
      %v856 = vpop.f32.mrf.mxu0
      %v857 = vadd.f32 %v596, %v856
      %858 = vmatmul.f32.gmra.mxu0 %v651
      %v859 = vpop.f32.mrf.mxu0
      %v860 = vadd.f32 %v596, %v859
      %861 = vmatmul.f32.gmra.mxu0 %v654
      %v862 = vpop.f32.mrf.mxu0
      %v863 = vadd.f32 %v596, %v862
      %864 = vmatmul.f32.gmra.mxu0 %v657
      %v865 = vpop.f32.mrf.mxu0
      %v866 = vadd.f32 %v596, %v865
      %867 = vmatmul.f32.gmra.mxu0 %v660
      %v868 = vpop.f32.mrf.mxu0
      %v869 = vadd.f32 %v596, %v868
      %870 = vmatmul.f32.gmra.mxu0 %v663
      %v871 = vpop.f32.mrf.mxu0
      %v872 = vadd.f32 %v596, %v871
      %873 = vmatmul.f32.gmra.mxu0 %v666
      %v874 = vpop.f32.mrf.mxu0
      %v875 = vadd.f32 %v596, %v874
      %876 = vmatmul.f32.gmra.mxu0 %v669
      %v877 = vpop.f32.mrf.mxu0
      %v878 = vadd.f32 %v596, %v877
      %879 = vmatmul.f32.gmra.mxu0 %v672
      %v880 = vpop.f32.mrf.mxu0
      %v881 = vadd.f32 %v596, %v880
      %882 = vmatmul.f32.gmra.mxu0 %v675
      %v883 = vpop.f32.mrf.mxu0
      %v884 = vadd.f32 %v596, %v883
      %885 = vmatmul.f32.gmra.mxu0 %v678
      %v886 = vpop.f32.mrf.mxu0
      %v887 = vadd.f32 %v596, %v886
      %888 = vmatmul.f32.gmra.mxu0 %v681
      %v889 = vpop.f32.mrf.mxu0
      %v890 = vadd.f32 %v596, %v889
      %891 = vmatmul.f32.gmra.mxu0 %v684
      %v892 = vpop.f32.mrf.mxu0
      %v893 = vadd.f32 %v596, %v892
      %894 = vmatmul.f32.gmra.mxu0 %v687
      %v895 = vpop.f32.mrf.mxu0
      %v896 = vadd.f32 %v596, %v895
      %897 = vmatmul.f32.gmra.mxu0 %v690
      %v898 = vpop.f32.mrf.mxu0
      %v899 = vadd.f32 %v596, %v898
      %900 = vmatmul.f32.gmra.mxu0 %v693
      %v901 = vpop.f32.mrf.mxu0
      %v902 = vadd.f32 %v596, %v901
      %903 = vmatmul.f32.gmra.mxu0 %v696
      %v904 = vpop.f32.mrf.mxu0
      %v905 = vadd.f32 %v596, %v904
      %906 = vmatmul.f32.gmra.mxu0 %v699
      %v907 = vpop.f32.mrf.mxu0
      %v908 = vadd.f32 %v596, %v907
      %909 = vmatmul.f32.gmra.mxu0 %v702
      %v910 = vpop.f32.mrf.mxu0
      %v911 = vadd.f32 %v596, %v910
      %912 = vmatmul.f32.gmra.mxu0 %v705
      %v913 = vpop.f32.mrf.mxu0
      %v914 = vadd.f32 %v596, %v913
      %915 = vmatmul.f32.gmra.mxu0 %v708
      %v916 = vpop.f32.mrf.mxu0
      %v917 = vadd.f32 %v596, %v916
      %918 = vmatmul.f32.gmra.mxu0 %v711
      %v919 = vpop.f32.mrf.mxu0
      %v920 = vadd.f32 %v596, %v919
      %921 = vmatmul.f32.gmra.mxu0 %v714
      %v922 = vpop.f32.mrf.mxu0
      %v923 = vadd.f32 %v596, %v922
      %924 = vmatmul.f32.gmra.mxu0 %v717
      %v925 = vpop.f32.mrf.mxu0
      %v926 = vadd.f32 %v596, %v925
      %927 = vmatmul.f32.gmra.mxu0 %v720
      %v928 = vpop.f32.mrf.mxu0
      %v929 = vadd.f32 %v596, %v928
      %930 = vmatmul.f32.gmra.mxu0 %v723
      %v931 = vpop.f32.mrf.mxu0
      %v932 = vadd.f32 %v596, %v931
      %933 = vmatmul.f32.gmra.mxu0 %v726
      %v934 = vpop.f32.mrf.mxu0
      %v935 = vadd.f32 %v596, %v934
      %936 = vmatmul.f32.gmra.mxu0 %v729
      %v937 = vpop.f32.mrf.mxu0
      %v938 = vadd.f32 %v596, %v937
      %939 = vmatmul.f32.gmra.mxu0 %v732
      %v940 = vpop.f32.mrf.mxu0
      %v941 = vadd.f32 %v596, %v940
      %942 = vmatmul.f32.gmra.mxu0 %v735
      %v943 = vpop.f32.mrf.mxu0
      %v944 = vadd.f32 %v596, %v943
      %945 = vmatmul.f32.gmra.mxu0 %v738
      %v946 = vpop.f32.mrf.mxu0
      %v947 = vadd.f32 %v596, %v946
      %948 = vmatmul.f32.gmra.mxu0 %v741
      %v949 = vpop.f32.mrf.mxu0
      %v950 = vadd.f32 %v596, %v949
      %951 = vmatmul.f32.gmra.mxu0 %v744
      %v952 = vpop.f32.mrf.mxu0
      %v953 = vadd.f32 %v596, %v952
      %954 = vmatmul.f32.gmra.mxu0 %v747
      %v955 = vpop.f32.mrf.mxu0
      %v956 = vadd.f32 %v596, %v955
      %957 = vmatmul.f32.gmra.mxu0 %v750
      %v958 = vpop.f32.mrf.mxu0
      %v959 = vadd.f32 %v596, %v958
      %960 = vmatmul.f32.gmra.mxu0 %v753
      %v961 = vpop.f32.mrf.mxu0
      %v962 = vadd.f32 %v596, %v961
      %963 = vmatmul.f32.gmra.mxu0 %v756
      %v964 = vpop.f32.mrf.mxu0
      %v965 = vadd.f32 %v596, %v964
      %966 = vmatmul.f32.gmra.mxu0 %v759
      %v967 = vpop.f32.mrf.mxu0
      %v968 = vadd.f32 %v596, %v967
      %969 = vmatmul.f32.gmra.mxu0 %v762
      %v970 = vpop.f32.mrf.mxu0
      %v971 = vadd.f32 %v596, %v970
      %972 = vmatmul.f32.gmra.mxu0 %v765
      %v973 = vpop.f32.mrf.mxu0
      %v974 = vadd.f32 %v596, %v973
      %975 = vmatmul.f32.gmra.mxu0 %v768
      %v976 = vpop.f32.mrf.mxu0
      %v977 = vadd.f32 %v596, %v976
      %978 = vmatmul.f32.gmra.mxu0 %v771
      %v979 = vpop.f32.mrf.mxu0
      %v980 = vadd.f32 %v596, %v979
      %981 = vmatmul.f32.gmra.mxu0 %v774
      %v982 = vpop.f32.mrf.mxu0
      %v983 = vadd.f32 %v596, %v982
      %984 = vmatmul.f32.gmra.mxu0 %v777
      %v985 = vpop.f32.mrf.mxu0
      %v986 = vadd.f32 %v596, %v985
      %987 = vmatmul.f32.gmra.mxu0 %v780
      %v988 = vpop.f32.mrf.mxu0
      %v989 = vadd.f32 %v596, %v988
      %990 = vmatmul.f32.gmra.mxu0 %v783
      %v991 = vpop.f32.mrf.mxu0
      %v992 = vadd.f32 %v596, %v991
      %993 = vmatmul.f32.gmra.mxu0 %v786
      %v994 = vpop.f32.mrf.mxu0
      %v995 = vadd.f32 %v596, %v994
      %996 = vmatmul.f32.gmra.mxu0 %v789
      %v997 = vpop.f32.mrf.mxu0
      %v998 = vadd.f32 %v596, %v997
      %999 = vdwg.mxu0
      %v1000 = vmax.f32 %v809, 0.0
      %v1001 = vmax.f32 %v812, 0.0
      %v1002 = vmax.f32 %v815, 0.0
      %v1003 = vmax.f32 %v818, 0.0
      %v1004 = vmax.f32 %v821, 0.0
      %v1005 = vmax.f32 %v824, 0.0
      %v1006 = vmax.f32 %v827, 0.0
      %v1007 = vmax.f32 %v830, 0.0
      %v1008 = vmax.f32 %v833, 0.0
      %v1009 = vmax.f32 %v836, 0.0
      %v1010 = vmax.f32 %v839, 0.0
      %v1011 = vmax.f32 %v842, 0.0
      %v1012 = vmax.f32 %v845, 0.0
      %v1013 = vmax.f32 %v848, 0.0
      %v1014 = vmax.f32 %v851, 0.0
      %v1015 = vmax.f32 %v854, 0.0
      %v1016 = vmax.f32 %v857, 0.0
      %v1017 = vmax.f32 %v860, 0.0
      %v1018 = vmax.f32 %v863, 0.0
      %v1019 = vmax.f32 %v866, 0.0
      %v1020 = vmax.f32 %v869, 0.0
      %v1021 = vmax.f32 %v872, 0.0
      %v1022 = vmax.f32 %v875, 0.0
      %v1023 = vmax.f32 %v878, 0.0
      %v1024 = vmax.f32 %v881, 0.0
      %v1025 = vmax.f32 %v884, 0.0
      %v1026 = vmax.f32 %v887, 0.0
      %v1027 = vmax.f32 %v890, 0.0
      %v1028 = vmax.f32 %v893, 0.0
      %v1029 = vmax.f32 %v896, 0.0
      %v1030 = vmax.f32 %v899, 0.0
      %v1031 = vmax.f32 %v902, 0.0
      %v1032 = vmax.f32 %v905, 0.0
      %v1033 = vmax.f32 %v908, 0.0
      %v1034 = vmax.f32 %v911, 0.0
      %v1035 = vmax.f32 %v914, 0.0
      %v1036 = vmax.f32 %v917, 0.0
      %v1037 = vmax.f32 %v920, 0.0
      %v1038 = vmax.f32 %v923, 0.0
      %v1039 = vmax.f32 %v926, 0.0
      %v1040 = vmax.f32 %v929, 0.0
      %v1041 = vmax.f32 %v932, 0.0
      %v1042 = vmax.f32 %v935, 0.0
      %v1043 = vmax.f32 %v938, 0.0
      %v1044 = vmax.f32 %v941, 0.0
      %v1045 = vmax.f32 %v944, 0.0
      %v1046 = vmax.f32 %v947, 0.0
      %v1047 = vmax.f32 %v950, 0.0
      %v1048 = vmax.f32 %v953, 0.0
      %v1049 = vmax.f32 %v956, 0.0
      %v1050 = vmax.f32 %v959, 0.0
      %v1051 = vmax.f32 %v962, 0.0
      %v1052 = vmax.f32 %v965, 0.0
      %v1053 = vmax.f32 %v968, 0.0
      %v1054 = vmax.f32 %v971, 0.0
      %v1055 = vmax.f32 %v974, 0.0
      %v1056 = vmax.f32 %v977, 0.0
      %v1057 = vmax.f32 %v980, 0.0
      %v1058 = vmax.f32 %v983, 0.0
      %v1059 = vmax.f32 %v986, 0.0
      %v1060 = vmax.f32 %v989, 0.0
      %v1061 = vmax.f32 %v992, 0.0
      %v1062 = vmax.f32 %v995, 0.0
      %v1063 = vmax.f32 %v998, 0.0
      %v1064 = vand.u32 2147483647, %v809
      %v1065 = vand.u32 2147483647, %v812
      %v1066 = vand.u32 2147483647, %v815
      %v1067 = vand.u32 2147483647, %v818
      %v1068 = vand.u32 2147483647, %v821
      %v1069 = vand.u32 2147483647, %v824
      %v1070 = vand.u32 2147483647, %v827
      %v1071 = vand.u32 2147483647, %v830
      %v1072 = vand.u32 2147483647, %v833
      %v1073 = vand.u32 2147483647, %v836
      %v1074 = vand.u32 2147483647, %v839
      %v1075 = vand.u32 2147483647, %v842
      %v1076 = vand.u32 2147483647, %v845
      %v1077 = vand.u32 2147483647, %v848
      %v1078 = vand.u32 2147483647, %v851
      %v1079 = vand.u32 2147483647, %v854
      %v1080 = vand.u32 2147483647, %v857
      %v1081 = vand.u32 2147483647, %v860
      %v1082 = vand.u32 2147483647, %v863
      %v1083 = vand.u32 2147483647, %v866
      %v1084 = vand.u32 2147483647, %v869
      %v1085 = vand.u32 2147483647, %v872
      %v1086 = vand.u32 2147483647, %v875
      %v1087 = vand.u32 2147483647, %v878
      %v1088 = vand.u32 2147483647, %v881
      %v1089 = vand.u32 2147483647, %v884
      %v1090 = vand.u32 2147483647, %v887
      %v1091 = vand.u32 2147483647, %v890
      %v1092 = vand.u32 2147483647, %v893
      %v1093 = vand.u32 2147483647, %v896
      %v1094 = vand.u32 2147483647, %v899
      %v1095 = vand.u32 2147483647, %v902
      %v1096 = vand.u32 2147483647, %v905
      %v1097 = vand.u32 2147483647, %v908
      %v1098 = vand.u32 2147483647, %v911
      %v1099 = vand.u32 2147483647, %v914
      %v1100 = vand.u32 2147483647, %v917
      %v1101 = vand.u32 2147483647, %v920
      %v1102 = vand.u32 2147483647, %v923
      %v1103 = vand.u32 2147483647, %v926
      %v1104 = vand.u32 2147483647, %v929
      %v1105 = vand.u32 2147483647, %v932
      %v1106 = vand.u32 2147483647, %v935
      %v1107 = vand.u32 2147483647, %v938
      %v1108 = vand.u32 2147483647, %v941
      %v1109 = vand.u32 2147483647, %v944
      %v1110 = vand.u32 2147483647, %v947
      %v1111 = vand.u32 2147483647, %v950
      %v1112 = vand.u32 2147483647, %v953
      %v1113 = vand.u32 2147483647, %v956
      %v1114 = vand.u32 2147483647, %v959
      %v1115 = vand.u32 2147483647, %v962
      %v1116 = vand.u32 2147483647, %v965
      %v1117 = vand.u32 2147483647, %v968
      %v1118 = vand.u32 2147483647, %v971
      %v1119 = vand.u32 2147483647, %v974
      %v1120 = vand.u32 2147483647, %v977
      %v1121 = vand.u32 2147483647, %v980
      %v1122 = vand.u32 2147483647, %v983
      %v1123 = vand.u32 2147483647, %v986
      %v1124 = vand.u32 2147483647, %v989
      %v1125 = vand.u32 2147483647, %v992
      %v1126 = vand.u32 2147483647, %v995
      %v1127 = vand.u32 2147483647, %v998
      %v1128 = vsub.f32 0.0, %v1064
      %v1129 = vsub.f32 0.0, %v1065
      %v1130 = vsub.f32 0.0, %v1066
      %v1131 = vsub.f32 0.0, %v1067
      %v1132 = vsub.f32 0.0, %v1068
      %v1133 = vsub.f32 0.0, %v1069
      %v1134 = vsub.f32 0.0, %v1070
      %v1135 = vsub.f32 0.0, %v1071
      %v1136 = vsub.f32 0.0, %v1072
      %v1137 = vsub.f32 0.0, %v1073
      %v1138 = vsub.f32 0.0, %v1074
      %v1139 = vsub.f32 0.0, %v1075
      %v1140 = vsub.f32 0.0, %v1076
      %v1141 = vsub.f32 0.0, %v1077
      %v1142 = vsub.f32 0.0, %v1078
      %v1143 = vsub.f32 0.0, %v1079
      %v1144 = vsub.f32 0.0, %v1080
      %v1145 = vsub.f32 0.0, %v1081
      %v1146 = vsub.f32 0.0, %v1082
      %v1147 = vsub.f32 0.0, %v1083
      %v1148 = vsub.f32 0.0, %v1084
      %v1149 = vsub.f32 0.0, %v1085
      %v1150 = vsub.f32 0.0, %v1086
      %v1151 = vsub.f32 0.0, %v1087
      %v1152 = vsub.f32 0.0, %v1088
      %v1153 = vsub.f32 0.0, %v1089
      %v1154 = vsub.f32 0.0, %v1090
      %v1155 = vsub.f32 0.0, %v1091
      %v1156 = vsub.f32 0.0, %v1092
      %v1157 = vsub.f32 0.0, %v1093
      %v1158 = vsub.f32 0.0, %v1094
      %v1159 = vsub.f32 0.0, %v1095
      %v1160 = vsub.f32 0.0, %v1096
      %v1161 = vsub.f32 0.0, %v1097
      %v1162 = vsub.f32 0.0, %v1098
      %v1163 = vsub.f32 0.0, %v1099
      %v1164 = vsub.f32 0.0, %v1100
      %v1165 = vsub.f32 0.0, %v1101
      %v1166 = vsub.f32 0.0, %v1102
      %v1167 = vsub.f32 0.0, %v1103
      %v1168 = vsub.f32 0.0, %v1104
      %v1169 = vsub.f32 0.0, %v1105
      %v1170 = vsub.f32 0.0, %v1106
      %v1171 = vsub.f32 0.0, %v1107
      %v1172 = vsub.f32 0.0, %v1108
      %v1173 = vsub.f32 0.0, %v1109
      %v1174 = vsub.f32 0.0, %v1110
      %v1175 = vsub.f32 0.0, %v1111
      %v1176 = vsub.f32 0.0, %v1112
      %v1177 = vsub.f32 0.0, %v1113
      %v1178 = vsub.f32 0.0, %v1114
      %v1179 = vsub.f32 0.0, %v1115
      %v1180 = vsub.f32 0.0, %v1116
      %v1181 = vsub.f32 0.0, %v1117
      %v1182 = vsub.f32 0.0, %v1118
      %v1183 = vsub.f32 0.0, %v1119
      %v1184 = vsub.f32 0.0, %v1120
      %v1185 = vsub.f32 0.0, %v1121
      %v1186 = vsub.f32 0.0, %v1122
      %v1187 = vsub.f32 0.0, %v1123
      %v1188 = vsub.f32 0.0, %v1124
      %v1189 = vsub.f32 0.0, %v1125
      %v1190 = vsub.f32 0.0, %v1126
      %v1191 = vsub.f32 0.0, %v1127
      %v1192 = vmul.f32 %v1128, 1.442695
      %v1193 = vpow.pop %v1192
      %v1194 = vmul.f32 %v1129, 1.442695
      %v1195 = vpow.pop %v1194
      %v1196 = vmul.f32 %v1130, 1.442695
      %v1197 = vpow.pop %v1196
      %v1198 = vmul.f32 %v1131, 1.442695
      %v1199 = vpow.pop %v1198
      %v1200 = vmul.f32 %v1132, 1.442695
      %v1201 = vpow.pop %v1200
      %v1202 = vmul.f32 %v1133, 1.442695
      %v1203 = vpow.pop %v1202
      %v1204 = vmul.f32 %v1134, 1.442695
      %v1205 = vpow.pop %v1204
      %v1206 = vmul.f32 %v1135, 1.442695
      %v1207 = vpow.pop %v1206
      %v1208 = vmul.f32 %v1136, 1.442695
      %v1209 = vpow.pop %v1208
      %v1210 = vmul.f32 %v1137, 1.442695
      %v1211 = vpow.pop %v1210
      %v1212 = vmul.f32 %v1138, 1.442695
      %v1213 = vpow.pop %v1212
      %v1214 = vmul.f32 %v1139, 1.442695
      %v1215 = vpow.pop %v1214
      %v1216 = vmul.f32 %v1140, 1.442695
      %v1217 = vpow.pop %v1216
      %v1218 = vmul.f32 %v1141, 1.442695
      %v1219 = vpow.pop %v1218
      %v1220 = vmul.f32 %v1142, 1.442695
      %v1221 = vpow.pop %v1220
      %v1222 = vmul.f32 %v1143, 1.442695
      %v1223 = vpow.pop %v1222
      %v1224 = vmul.f32 %v1144, 1.442695
      %v1225 = vpow.pop %v1224
      %v1226 = vmul.f32 %v1145, 1.442695
      %v1227 = vpow.pop %v1226
      %v1228 = vmul.f32 %v1146, 1.442695
      %v1229 = vpow.pop %v1228
      %v1230 = vmul.f32 %v1147, 1.442695
      %v1231 = vpow.pop %v1230
      %v1232 = vmul.f32 %v1148, 1.442695
      %v1233 = vpow.pop %v1232
      %v1234 = vmul.f32 %v1149, 1.442695
      %v1235 = vpow.pop %v1234
      %v1236 = vmul.f32 %v1150, 1.442695
      %v1237 = vpow.pop %v1236
      %v1238 = vmul.f32 %v1151, 1.442695
      %v1239 = vpow.pop %v1238
      %v1240 = vmul.f32 %v1152, 1.442695
      %v1241 = vpow.pop %v1240
      %v1242 = vmul.f32 %v1153, 1.442695
      %v1243 = vpow.pop %v1242
      %v1244 = vmul.f32 %v1154, 1.442695
      %v1245 = vpow.pop %v1244
      %v1246 = vmul.f32 %v1155, 1.442695
      %v1247 = vpow.pop %v1246
      %v1248 = vmul.f32 %v1156, 1.442695
      %v1249 = vpow.pop %v1248
      %v1250 = vmul.f32 %v1157, 1.442695
      %v1251 = vpow.pop %v1250
      %v1252 = vmul.f32 %v1158, 1.442695
      %v1253 = vpow.pop %v1252
      %v1254 = vmul.f32 %v1159, 1.442695
      %v1255 = vpow.pop %v1254
      %v1256 = vmul.f32 %v1160, 1.442695
      %v1257 = vpow.pop %v1256
      %v1258 = vmul.f32 %v1161, 1.442695
      %v1259 = vpow.pop %v1258
      %v1260 = vmul.f32 %v1162, 1.442695
      %v1261 = vpow.pop %v1260
      %v1262 = vmul.f32 %v1163, 1.442695
      %v1263 = vpow.pop %v1262
      %v1264 = vmul.f32 %v1164, 1.442695
      %v1265 = vpow.pop %v1264
      %v1266 = vmul.f32 %v1165, 1.442695
      %v1267 = vpow.pop %v1266
      %v1268 = vmul.f32 %v1166, 1.442695
      %v1269 = vpow.pop %v1268
      %v1270 = vmul.f32 %v1167, 1.442695
      %v1271 = vpow.pop %v1270
      %v1272 = vmul.f32 %v1168, 1.442695
      %v1273 = vpow.pop %v1272
      %v1274 = vmul.f32 %v1169, 1.442695
      %v1275 = vpow.pop %v1274
      %v1276 = vmul.f32 %v1170, 1.442695
      %v1277 = vpow.pop %v1276
      %v1278 = vmul.f32 %v1171, 1.442695
      %v1279 = vpow.pop %v1278
      %v1280 = vmul.f32 %v1172, 1.442695
      %v1281 = vpow.pop %v1280
      %v1282 = vmul.f32 %v1173, 1.442695
      %v1283 = vpow.pop %v1282
      %v1284 = vmul.f32 %v1174, 1.442695
      %v1285 = vpow.pop %v1284
      %v1286 = vmul.f32 %v1175, 1.442695
      %v1287 = vpow.pop %v1286
      %v1288 = vmul.f32 %v1176, 1.442695
      %v1289 = vpow.pop %v1288
      %v1290 = vmul.f32 %v1177, 1.442695
      %v1291 = vpow.pop %v1290
      %v1292 = vmul.f32 %v1178, 1.442695
      %v1293 = vpow.pop %v1292
      %v1294 = vmul.f32 %v1179, 1.442695
      %v1295 = vpow.pop %v1294
      %v1296 = vmul.f32 %v1180, 1.442695
      %v1297 = vpow.pop %v1296
      %v1298 = vmul.f32 %v1181, 1.442695
      %v1299 = vpow.pop %v1298
      %v1300 = vmul.f32 %v1182, 1.442695
      %v1301 = vpow.pop %v1300
      %v1302 = vmul.f32 %v1183, 1.442695
      %v1303 = vpow.pop %v1302
      %v1304 = vmul.f32 %v1184, 1.442695
      %v1305 = vpow.pop %v1304
      %v1306 = vmul.f32 %v1185, 1.442695
      %v1307 = vpow.pop %v1306
      %v1308 = vmul.f32 %v1186, 1.442695
      %v1309 = vpow.pop %v1308
      %v1310 = vmul.f32 %v1187, 1.442695
      %v1311 = vpow.pop %v1310
      %v1312 = vmul.f32 %v1188, 1.442695
      %v1313 = vpow.pop %v1312
      %v1314 = vmul.f32 %v1189, 1.442695
      %v1315 = vpow.pop %v1314
      %v1316 = vmul.f32 %v1190, 1.442695
      %v1317 = vpow.pop %v1316
      %v1318 = vmul.f32 %v1191, 1.442695
      %v1319 = vpow.pop %v1318
      %v1320 = vadd.f32 %v1193, 1.0
      %v1321 = vadd.f32 %v1195, 1.0
      %v1322 = vadd.f32 %v1197, 1.0
      %v1323 = vadd.f32 %v1199, 1.0
      %v1324 = vadd.f32 %v1201, 1.0
      %v1325 = vadd.f32 %v1203, 1.0
      %v1326 = vadd.f32 %v1205, 1.0
      %v1327 = vadd.f32 %v1207, 1.0
      %v1328 = vadd.f32 %v1209, 1.0
      %v1329 = vadd.f32 %v1211, 1.0
      %v1330 = vadd.f32 %v1213, 1.0
      %v1331 = vadd.f32 %v1215, 1.0
      %v1332 = vadd.f32 %v1217, 1.0
      %v1333 = vadd.f32 %v1219, 1.0
      %v1334 = vadd.f32 %v1221, 1.0
      %v1335 = vadd.f32 %v1223, 1.0
      %v1336 = vadd.f32 %v1225, 1.0
      %v1337 = vadd.f32 %v1227, 1.0
      %v1338 = vadd.f32 %v1229, 1.0
      %v1339 = vadd.f32 %v1231, 1.0
      %v1340 = vadd.f32 %v1233, 1.0
      %v1341 = vadd.f32 %v1235, 1.0
      %v1342 = vadd.f32 %v1237, 1.0
      %v1343 = vadd.f32 %v1239, 1.0
      %v1344 = vadd.f32 %v1241, 1.0
      %v1345 = vadd.f32 %v1243, 1.0
      %v1346 = vadd.f32 %v1245, 1.0
      %v1347 = vadd.f32 %v1247, 1.0
      %v1348 = vadd.f32 %v1249, 1.0
      %v1349 = vadd.f32 %v1251, 1.0
      %v1350 = vadd.f32 %v1253, 1.0
      %v1351 = vadd.f32 %v1255, 1.0
      %v1352 = vadd.f32 %v1257, 1.0
      %v1353 = vadd.f32 %v1259, 1.0
      %v1354 = vadd.f32 %v1261, 1.0
      %v1355 = vadd.f32 %v1263, 1.0
      %v1356 = vadd.f32 %v1265, 1.0
      %v1357 = vadd.f32 %v1267, 1.0
      %v1358 = vadd.f32 %v1269, 1.0
      %v1359 = vadd.f32 %v1271, 1.0
      %v1360 = vadd.f32 %v1273, 1.0
      %v1361 = vadd.f32 %v1275, 1.0
      %v1362 = vadd.f32 %v1277, 1.0
      %v1363 = vadd.f32 %v1279, 1.0
      %v1364 = vadd.f32 %v1281, 1.0
      %v1365 = vadd.f32 %v1283, 1.0
      %v1366 = vadd.f32 %v1285, 1.0
      %v1367 = vadd.f32 %v1287, 1.0
      %v1368 = vadd.f32 %v1289, 1.0
      %v1369 = vadd.f32 %v1291, 1.0
      %v1370 = vadd.f32 %v1293, 1.0
      %v1371 = vadd.f32 %v1295, 1.0
      %v1372 = vadd.f32 %v1297, 1.0
      %v1373 = vadd.f32 %v1299, 1.0
      %v1374 = vadd.f32 %v1301, 1.0
      %v1375 = vadd.f32 %v1303, 1.0
      %v1376 = vadd.f32 %v1305, 1.0
      %v1377 = vadd.f32 %v1307, 1.0
      %v1378 = vadd.f32 %v1309, 1.0
      %v1379 = vadd.f32 %v1311, 1.0
      %v1380 = vadd.f32 %v1313, 1.0
      %v1381 = vadd.f32 %v1315, 1.0
      %v1382 = vadd.f32 %v1317, 1.0
      %v1383 = vadd.f32 %v1319, 1.0
      %v1384 = vlog2.pop %v1320
      %v1385 = vmul.f32 %v1384, 0.6931472
      %v1386 = vlog2.pop %v1321
      %v1387 = vmul.f32 %v1386, 0.6931472
      %v1388 = vlog2.pop %v1322
      %v1389 = vmul.f32 %v1388, 0.6931472
      %v1390 = vlog2.pop %v1323
      %v1391 = vmul.f32 %v1390, 0.6931472
      %v1392 = vlog2.pop %v1324
      %v1393 = vmul.f32 %v1392, 0.6931472
      %v1394 = vlog2.pop %v1325
      %v1395 = vmul.f32 %v1394, 0.6931472
      %v1396 = vlog2.pop %v1326
      %v1397 = vmul.f32 %v1396, 0.6931472
      %v1398 = vlog2.pop %v1327
      %v1399 = vmul.f32 %v1398, 0.6931472
      %v1400 = vlog2.pop %v1328
      %v1401 = vmul.f32 %v1400, 0.6931472
      %v1402 = vlog2.pop %v1329
      %v1403 = vmul.f32 %v1402, 0.6931472
      %v1404 = vlog2.pop %v1330
      %v1405 = vmul.f32 %v1404, 0.6931472
      %v1406 = vlog2.pop %v1331
      %v1407 = vmul.f32 %v1406, 0.6931472
      %v1408 = vlog2.pop %v1332
      %v1409 = vmul.f32 %v1408, 0.6931472
      %v1410 = vlog2.pop %v1333
      %v1411 = vmul.f32 %v1410, 0.6931472
      %v1412 = vlog2.pop %v1334
      %v1413 = vmul.f32 %v1412, 0.6931472
      %v1414 = vlog2.pop %v1335
      %v1415 = vmul.f32 %v1414, 0.6931472
      %v1416 = vlog2.pop %v1336
      %v1417 = vmul.f32 %v1416, 0.6931472
      %v1418 = vlog2.pop %v1337
      %v1419 = vmul.f32 %v1418, 0.6931472
      %v1420 = vlog2.pop %v1338
      %v1421 = vmul.f32 %v1420, 0.6931472
      %v1422 = vlog2.pop %v1339
      %v1423 = vmul.f32 %v1422, 0.6931472
      %v1424 = vlog2.pop %v1340
      %v1425 = vmul.f32 %v1424, 0.6931472
      %v1426 = vlog2.pop %v1341
      %v1427 = vmul.f32 %v1426, 0.6931472
      %v1428 = vlog2.pop %v1342
      %v1429 = vmul.f32 %v1428, 0.6931472
      %v1430 = vlog2.pop %v1343
      %v1431 = vmul.f32 %v1430, 0.6931472
      %v1432 = vlog2.pop %v1344
      %v1433 = vmul.f32 %v1432, 0.6931472
      %v1434 = vlog2.pop %v1345
      %v1435 = vmul.f32 %v1434, 0.6931472
      %v1436 = vlog2.pop %v1346
      %v1437 = vmul.f32 %v1436, 0.6931472
      %v1438 = vlog2.pop %v1347
      %v1439 = vmul.f32 %v1438, 0.6931472
      %v1440 = vlog2.pop %v1348
      %v1441 = vmul.f32 %v1440, 0.6931472
      %v1442 = vlog2.pop %v1349
      %v1443 = vmul.f32 %v1442, 0.6931472
      %v1444 = vlog2.pop %v1350
      %v1445 = vmul.f32 %v1444, 0.6931472
      %v1446 = vlog2.pop %v1351
      %v1447 = vmul.f32 %v1446, 0.6931472
      %v1448 = vlog2.pop %v1352
      %v1449 = vmul.f32 %v1448, 0.6931472
      %v1450 = vlog2.pop %v1353
      %v1451 = vmul.f32 %v1450, 0.6931472
      %v1452 = vlog2.pop %v1354
      %v1453 = vmul.f32 %v1452, 0.6931472
      %v1454 = vlog2.pop %v1355
      %v1455 = vmul.f32 %v1454, 0.6931472
      %v1456 = vlog2.pop %v1356
      %v1457 = vmul.f32 %v1456, 0.6931472
      %v1458 = vlog2.pop %v1357
      %v1459 = vmul.f32 %v1458, 0.6931472
      %v1460 = vlog2.pop %v1358
      %v1461 = vmul.f32 %v1460, 0.6931472
      %v1462 = vlog2.pop %v1359
      %v1463 = vmul.f32 %v1462, 0.6931472
      %v1464 = vlog2.pop %v1360
      %v1465 = vmul.f32 %v1464, 0.6931472
      %v1466 = vlog2.pop %v1361
      %v1467 = vmul.f32 %v1466, 0.6931472
      %v1468 = vlog2.pop %v1362
      %v1469 = vmul.f32 %v1468, 0.6931472
      %v1470 = vlog2.pop %v1363
      %v1471 = vmul.f32 %v1470, 0.6931472
      %v1472 = vlog2.pop %v1364
      %v1473 = vmul.f32 %v1472, 0.6931472
      %v1474 = vlog2.pop %v1365
      %v1475 = vmul.f32 %v1474, 0.6931472
      %v1476 = vlog2.pop %v1366
      %v1477 = vmul.f32 %v1476, 0.6931472
      %v1478 = vlog2.pop %v1367
      %v1479 = vmul.f32 %v1478, 0.6931472
      %v1480 = vlog2.pop %v1368
      %v1481 = vmul.f32 %v1480, 0.6931472
      %v1482 = vlog2.pop %v1369
      %v1483 = vmul.f32 %v1482, 0.6931472
      %v1484 = vlog2.pop %v1370
      %v1485 = vmul.f32 %v1484, 0.6931472
      %v1486 = vlog2.pop %v1371
      %v1487 = vmul.f32 %v1486, 0.6931472
      %v1488 = vlog2.pop %v1372
      %v1489 = vmul.f32 %v1488, 0.6931472
      %v1490 = vlog2.pop %v1373
      %v1491 = vmul.f32 %v1490, 0.6931472
      %v1492 = vlog2.pop %v1374
      %v1493 = vmul.f32 %v1492, 0.6931472
      %v1494 = vlog2.pop %v1375
      %v1495 = vmul.f32 %v1494, 0.6931472
      %v1496 = vlog2.pop %v1376
      %v1497 = vmul.f32 %v1496, 0.6931472
      %v1498 = vlog2.pop %v1377
      %v1499 = vmul.f32 %v1498, 0.6931472
      %v1500 = vlog2.pop %v1378
      %v1501 = vmul.f32 %v1500, 0.6931472
      %v1502 = vlog2.pop %v1379
      %v1503 = vmul.f32 %v1502, 0.6931472
      %v1504 = vlog2.pop %v1380
      %v1505 = vmul.f32 %v1504, 0.6931472
      %v1506 = vlog2.pop %v1381
      %v1507 = vmul.f32 %v1506, 0.6931472
      %v1508 = vlog2.pop %v1382
      %v1509 = vmul.f32 %v1508, 0.6931472
      %v1510 = vlog2.pop %v1383
      %v1511 = vmul.f32 %v1510, 0.6931472
      %v1512 = vadd.f32 %v1000, %v1385
      %v1513 = vadd.f32 %v1001, %v1387
      %v1514 = vadd.f32 %v1002, %v1389
      %v1515 = vadd.f32 %v1003, %v1391
      %v1516 = vadd.f32 %v1004, %v1393
      %v1517 = vadd.f32 %v1005, %v1395
      %v1518 = vadd.f32 %v1006, %v1397
      %v1519 = vadd.f32 %v1007, %v1399
      %v1520 = vadd.f32 %v1008, %v1401
      %v1521 = vadd.f32 %v1009, %v1403
      %v1522 = vadd.f32 %v1010, %v1405
      %v1523 = vadd.f32 %v1011, %v1407
      %v1524 = vadd.f32 %v1012, %v1409
      %v1525 = vadd.f32 %v1013, %v1411
      %v1526 = vadd.f32 %v1014, %v1413
      %v1527 = vadd.f32 %v1015, %v1415
      %v1528 = vadd.f32 %v1016, %v1417
      %v1529 = vadd.f32 %v1017, %v1419
      %v1530 = vadd.f32 %v1018, %v1421
      %v1531 = vadd.f32 %v1019, %v1423
      %v1532 = vadd.f32 %v1020, %v1425
      %v1533 = vadd.f32 %v1021, %v1427
      %v1534 = vadd.f32 %v1022, %v1429
      %v1535 = vadd.f32 %v1023, %v1431
      %v1536 = vadd.f32 %v1024, %v1433
      %v1537 = vadd.f32 %v1025, %v1435
      %v1538 = vadd.f32 %v1026, %v1437
      %v1539 = vadd.f32 %v1027, %v1439
      %v1540 = vadd.f32 %v1028, %v1441
      %v1541 = vadd.f32 %v1029, %v1443
      %v1542 = vadd.f32 %v1030, %v1445
      %v1543 = vadd.f32 %v1031, %v1447
      %v1544 = vadd.f32 %v1032, %v1449
      %v1545 = vadd.f32 %v1033, %v1451
      %v1546 = vadd.f32 %v1034, %v1453
      %v1547 = vadd.f32 %v1035, %v1455
      %v1548 = vadd.f32 %v1036, %v1457
      %v1549 = vadd.f32 %v1037, %v1459
      %v1550 = vadd.f32 %v1038, %v1461
      %v1551 = vadd.f32 %v1039, %v1463
      %v1552 = vadd.f32 %v1040, %v1465
      %v1553 = vadd.f32 %v1041, %v1467
      %v1554 = vadd.f32 %v1042, %v1469
      %v1555 = vadd.f32 %v1043, %v1471
      %v1556 = vadd.f32 %v1044, %v1473
      %v1557 = vadd.f32 %v1045, %v1475
      %v1558 = vadd.f32 %v1046, %v1477
      %v1559 = vadd.f32 %v1047, %v1479
      %v1560 = vadd.f32 %v1048, %v1481
      %v1561 = vadd.f32 %v1049, %v1483
      %v1562 = vadd.f32 %v1050, %v1485
      %v1563 = vadd.f32 %v1051, %v1487
      %v1564 = vadd.f32 %v1052, %v1489
      %v1565 = vadd.f32 %v1053, %v1491
      %v1566 = vadd.f32 %v1054, %v1493
      %v1567 = vadd.f32 %v1055, %v1495
      %v1568 = vadd.f32 %v1056, %v1497
      %v1569 = vadd.f32 %v1057, %v1499
      %v1570 = vadd.f32 %v1058, %v1501
      %v1571 = vadd.f32 %v1059, %v1503
      %v1572 = vadd.f32 %v1060, %v1505
      %v1573 = vadd.f32 %v1061, %v1507
      %v1574 = vadd.f32 %v1062, %v1509
      %v1575 = vadd.f32 %v1063, %v1511
      %v1576 = vsub.f32 %v1512, 0.6931472
      %v1577 = vsub.f32 %v1513, 0.6931472
      %v1578 = vsub.f32 %v1514, 0.6931472
      %v1579 = vsub.f32 %v1515, 0.6931472
      %v1580 = vsub.f32 %v1516, 0.6931472
      %v1581 = vsub.f32 %v1517, 0.6931472
      %v1582 = vsub.f32 %v1518, 0.6931472
      %v1583 = vsub.f32 %v1519, 0.6931472
      %v1584 = vsub.f32 %v1520, 0.6931472
      %v1585 = vsub.f32 %v1521, 0.6931472
      %v1586 = vsub.f32 %v1522, 0.6931472
      %v1587 = vsub.f32 %v1523, 0.6931472
      %v1588 = vsub.f32 %v1524, 0.6931472
      %v1589 = vsub.f32 %v1525, 0.6931472
      %v1590 = vsub.f32 %v1526, 0.6931472
      %v1591 = vsub.f32 %v1527, 0.6931472
      %v1592 = vsub.f32 %v1528, 0.6931472
      %v1593 = vsub.f32 %v1529, 0.6931472
      %v1594 = vsub.f32 %v1530, 0.6931472
      %v1595 = vsub.f32 %v1531, 0.6931472
      %v1596 = vsub.f32 %v1532, 0.6931472
      %v1597 = vsub.f32 %v1533, 0.6931472
      %v1598 = vsub.f32 %v1534, 0.6931472
      %v1599 = vsub.f32 %v1535, 0.6931472
      %v1600 = vsub.f32 %v1536, 0.6931472
      %v1601 = vsub.f32 %v1537, 0.6931472
      %v1602 = vsub.f32 %v1538, 0.6931472
      %v1603 = vsub.f32 %v1539, 0.6931472
      %v1604 = vsub.f32 %v1540, 0.6931472
      %v1605 = vsub.f32 %v1541, 0.6931472
      %v1606 = vsub.f32 %v1542, 0.6931472
      %v1607 = vsub.f32 %v1543, 0.6931472
      %v1608 = vsub.f32 %v1544, 0.6931472
      %v1609 = vsub.f32 %v1545, 0.6931472
      %v1610 = vsub.f32 %v1546, 0.6931472
      %v1611 = vsub.f32 %v1547, 0.6931472
      %v1612 = vsub.f32 %v1548, 0.6931472
      %v1613 = vsub.f32 %v1549, 0.6931472
      %v1614 = vsub.f32 %v1550, 0.6931472
      %v1615 = vsub.f32 %v1551, 0.6931472
      %v1616 = vsub.f32 %v1552, 0.6931472
      %v1617 = vsub.f32 %v1553, 0.6931472
      %v1618 = vsub.f32 %v1554, 0.6931472
      %v1619 = vsub.f32 %v1555, 0.6931472
      %v1620 = vsub.f32 %v1556, 0.6931472
      %v1621 = vsub.f32 %v1557, 0.6931472
      %v1622 = vsub.f32 %v1558, 0.6931472
      %v1623 = vsub.f32 %v1559, 0.6931472
      %v1624 = vsub.f32 %v1560, 0.6931472
      %v1625 = vsub.f32 %v1561, 0.6931472
      %v1626 = vsub.f32 %v1562, 0.6931472
      %v1627 = vsub.f32 %v1563, 0.6931472
      %v1628 = vsub.f32 %v1564, 0.6931472
      %v1629 = vsub.f32 %v1565, 0.6931472
      %v1630 = vsub.f32 %v1566, 0.6931472
      %v1631 = vsub.f32 %v1567, 0.6931472
      %v1632 = vsub.f32 %v1568, 0.6931472
      %v1633 = vsub.f32 %v1569, 0.6931472
      %v1634 = vsub.f32 %v1570, 0.6931472
      %v1635 = vsub.f32 %v1571, 0.6931472
      %v1636 = vsub.f32 %v1572, 0.6931472
      %v1637 = vsub.f32 %v1573, 0.6931472
      %v1638 = vsub.f32 %v1574, 0.6931472
      %v1639 = vsub.f32 %v1575, 0.6931472
      %v1640 = vld [vmem:[%s4] sm:$0xff]
      %v1641 = vld [vmem:[%s4 + $0x8] sm:$0xff]
      %v1642 = vld [vmem:[%s4 + $0x10] sm:$0xff]
      %v1643 = vld [vmem:[%s4 + $0x18] sm:$0xff]
      %v1644 = vld [vmem:[%s4 + $0x20] sm:$0xff]
      %v1645 = vld [vmem:[%s4 + $0x28] sm:$0xff]
      %v1646 = vld [vmem:[%s4 + $0x30] sm:$0xff]
      %v1647 = vld [vmem:[%s4 + $0x38] sm:$0xff]
      %v1648 = vld [vmem:[%s4 + $0x40] sm:$0xff]
      %v1649 = vld [vmem:[%s4 + $0x48] sm:$0xff]
      %v1650 = vld [vmem:[%s4 + $0x50] sm:$0xff]
      %v1651 = vld [vmem:[%s4 + $0x58] sm:$0xff]
      %v1652 = vld [vmem:[%s4 + $0x60] sm:$0xff]
      %v1653 = vld [vmem:[%s4 + $0x68] sm:$0xff]
      %v1654 = vld [vmem:[%s4 + $0x70] sm:$0xff]
      %v1655 = vld [vmem:[%s4 + $0x78] sm:$0xff]
      %v1656 = vld [vmem:[%s5] sm:$0x1]
      %v1658 = vperm.slane %v1656, 0
      %1660 = vmatpush.msra.mxu0 %v1655
      %1661 = vmatpush.msra.mxu0 %v1654
      %1662 = vmatpush.msra.mxu0 %v1653
      %1663 = vmatpush.msra.mxu0 %v1652
      %1664 = vmatpush.msra.mxu0 %v1651
      %1665 = vmatpush.msra.mxu0 %v1650
      %1666 = vmatpush.msra.mxu0 %v1649
      %1667 = vmatpush.msra.mxu0 %v1648
      %1668 = vmatpush.msra.mxu0 %v1647
      %1669 = vmatpush.msra.mxu0 %v1646
      %1670 = vmatpush.msra.mxu0 %v1645
      %1671 = vmatpush.msra.mxu0 %v1644
      %1672 = vmatpush.msra.mxu0 %v1643
      %1673 = vmatpush.msra.mxu0 %v1642
      %1674 = vmatpush.msra.mxu0 %v1641
      %1675 = vmatpush.msra.mxu0 %v1640
      %1676 = vmatmul.f32.gmra.mxu0 %v1576
      %v1677 = vpop.f32.mrf.mxu0
      %v1678 = vadd.f32 %v1658, %v1677
      %1679 = vmatmul.f32.gmra.mxu0 %v1577
      %v1680 = vpop.f32.mrf.mxu0
      %v1681 = vadd.f32 %v1658, %v1680
      %1682 = vmatmul.f32.gmra.mxu0 %v1578
      %v1683 = vpop.f32.mrf.mxu0
      %v1684 = vadd.f32 %v1658, %v1683
      %1685 = vmatmul.f32.gmra.mxu0 %v1579
      %v1686 = vpop.f32.mrf.mxu0
      %v1687 = vadd.f32 %v1658, %v1686
      %1688 = vmatmul.f32.gmra.mxu0 %v1580
      %v1689 = vpop.f32.mrf.mxu0
      %v1690 = vadd.f32 %v1658, %v1689
      %1691 = vmatmul.f32.gmra.mxu0 %v1581
      %v1692 = vpop.f32.mrf.mxu0
      %v1693 = vadd.f32 %v1658, %v1692
      %1694 = vmatmul.f32.gmra.mxu0 %v1582
      %v1695 = vpop.f32.mrf.mxu0
      %v1696 = vadd.f32 %v1658, %v1695
      %1697 = vmatmul.f32.gmra.mxu0 %v1583
      %v1698 = vpop.f32.mrf.mxu0
      %v1699 = vadd.f32 %v1658, %v1698
      %1700 = vmatmul.f32.gmra.mxu0 %v1584
      %v1701 = vpop.f32.mrf.mxu0
      %v1702 = vadd.f32 %v1658, %v1701
      %1703 = vmatmul.f32.gmra.mxu0 %v1585
      %v1704 = vpop.f32.mrf.mxu0
      %v1705 = vadd.f32 %v1658, %v1704
      %1706 = vmatmul.f32.gmra.mxu0 %v1586
      %v1707 = vpop.f32.mrf.mxu0
      %v1708 = vadd.f32 %v1658, %v1707
      %1709 = vmatmul.f32.gmra.mxu0 %v1587
      %v1710 = vpop.f32.mrf.mxu0
      %v1711 = vadd.f32 %v1658, %v1710
      %1712 = vmatmul.f32.gmra.mxu0 %v1588
      %v1713 = vpop.f32.mrf.mxu0
      %v1714 = vadd.f32 %v1658, %v1713
      %1715 = vmatmul.f32.gmra.mxu0 %v1589
      %v1716 = vpop.f32.mrf.mxu0
      %v1717 = vadd.f32 %v1658, %v1716
      %1718 = vmatmul.f32.gmra.mxu0 %v1590
      %v1719 = vpop.f32.mrf.mxu0
      %v1720 = vadd.f32 %v1658, %v1719
      %1721 = vmatmul.f32.gmra.mxu0 %v1591
      %v1722 = vpop.f32.mrf.mxu0
      %v1723 = vadd.f32 %v1658, %v1722
      %1724 = vmatmul.f32.gmra.mxu0 %v1592
      %v1725 = vpop.f32.mrf.mxu0
      %v1726 = vadd.f32 %v1658, %v1725
      %1727 = vmatmul.f32.gmra.mxu0 %v1593
      %v1728 = vpop.f32.mrf.mxu0
      %v1729 = vadd.f32 %v1658, %v1728
      %1730 = vmatmul.f32.gmra.mxu0 %v1594
      %v1731 = vpop.f32.mrf.mxu0
      %v1732 = vadd.f32 %v1658, %v1731
      %1733 = vmatmul.f32.gmra.mxu0 %v1595
      %v1734 = vpop.f32.mrf.mxu0
      %v1735 = vadd.f32 %v1658, %v1734
      %1736 = vmatmul.f32.gmra.mxu0 %v1596
      %v1737 = vpop.f32.mrf.mxu0
      %v1738 = vadd.f32 %v1658, %v1737
      %1739 = vmatmul.f32.gmra.mxu0 %v1597
      %v1740 = vpop.f32.mrf.mxu0
      %v1741 = vadd.f32 %v1658, %v1740
      %1742 = vmatmul.f32.gmra.mxu0 %v1598
      %v1743 = vpop.f32.mrf.mxu0
      %v1744 = vadd.f32 %v1658, %v1743
      %1745 = vmatmul.f32.gmra.mxu0 %v1599
      %v1746 = vpop.f32.mrf.mxu0
      %v1747 = vadd.f32 %v1658, %v1746
      %1748 = vmatmul.f32.gmra.mxu0 %v1600
      %v1749 = vpop.f32.mrf.mxu0
      %v1750 = vadd.f32 %v1658, %v1749
      %1751 = vmatmul.f32.gmra.mxu0 %v1601
      %v1752 = vpop.f32.mrf.mxu0
      %v1753 = vadd.f32 %v1658, %v1752
      %1754 = vmatmul.f32.gmra.mxu0 %v1602
      %v1755 = vpop.f32.mrf.mxu0
      %v1756 = vadd.f32 %v1658, %v1755
      %1757 = vmatmul.f32.gmra.mxu0 %v1603
      %v1758 = vpop.f32.mrf.mxu0
      %v1759 = vadd.f32 %v1658, %v1758
      %1760 = vmatmul.f32.gmra.mxu0 %v1604
      %v1761 = vpop.f32.mrf.mxu0
      %v1762 = vadd.f32 %v1658, %v1761
      %1763 = vmatmul.f32.gmra.mxu0 %v1605
      %v1764 = vpop.f32.mrf.mxu0
      %v1765 = vadd.f32 %v1658, %v1764
      %1766 = vmatmul.f32.gmra.mxu0 %v1606
      %v1767 = vpop.f32.mrf.mxu0
      %v1768 = vadd.f32 %v1658, %v1767
      %1769 = vmatmul.f32.gmra.mxu0 %v1607
      %v1770 = vpop.f32.mrf.mxu0
      %v1771 = vadd.f32 %v1658, %v1770
      %1772 = vmatmul.f32.gmra.mxu0 %v1608
      %v1773 = vpop.f32.mrf.mxu0
      %v1774 = vadd.f32 %v1658, %v1773
      %1775 = vmatmul.f32.gmra.mxu0 %v1609
      %v1776 = vpop.f32.mrf.mxu0
      %v1777 = vadd.f32 %v1658, %v1776
      %1778 = vmatmul.f32.gmra.mxu0 %v1610
      %v1779 = vpop.f32.mrf.mxu0
      %v1780 = vadd.f32 %v1658, %v1779
      %1781 = vmatmul.f32.gmra.mxu0 %v1611
      %v1782 = vpop.f32.mrf.mxu0
      %v1783 = vadd.f32 %v1658, %v1782
      %1784 = vmatmul.f32.gmra.mxu0 %v1612
      %v1785 = vpop.f32.mrf.mxu0
      %v1786 = vadd.f32 %v1658, %v1785
      %1787 = vmatmul.f32.gmra.mxu0 %v1613
      %v1788 = vpop.f32.mrf.mxu0
      %v1789 = vadd.f32 %v1658, %v1788
      %1790 = vmatmul.f32.gmra.mxu0 %v1614
      %v1791 = vpop.f32.mrf.mxu0
      %v1792 = vadd.f32 %v1658, %v1791
      %1793 = vmatmul.f32.gmra.mxu0 %v1615
      %v1794 = vpop.f32.mrf.mxu0
      %v1795 = vadd.f32 %v1658, %v1794
      %1796 = vmatmul.f32.gmra.mxu0 %v1616
      %v1797 = vpop.f32.mrf.mxu0
      %v1798 = vadd.f32 %v1658, %v1797
      %1799 = vmatmul.f32.gmra.mxu0 %v1617
      %v1800 = vpop.f32.mrf.mxu0
      %v1801 = vadd.f32 %v1658, %v1800
      %1802 = vmatmul.f32.gmra.mxu0 %v1618
      %v1803 = vpop.f32.mrf.mxu0
      %v1804 = vadd.f32 %v1658, %v1803
      %1805 = vmatmul.f32.gmra.mxu0 %v1619
      %v1806 = vpop.f32.mrf.mxu0
      %v1807 = vadd.f32 %v1658, %v1806
      %1808 = vmatmul.f32.gmra.mxu0 %v1620
      %v1809 = vpop.f32.mrf.mxu0
      %v1810 = vadd.f32 %v1658, %v1809
      %1811 = vmatmul.f32.gmra.mxu0 %v1621
      %v1812 = vpop.f32.mrf.mxu0
      %v1813 = vadd.f32 %v1658, %v1812
      %1814 = vmatmul.f32.gmra.mxu0 %v1622
      %v1815 = vpop.f32.mrf.mxu0
      %v1816 = vadd.f32 %v1658, %v1815
      %1817 = vmatmul.f32.gmra.mxu0 %v1623
      %v1818 = vpop.f32.mrf.mxu0
      %v1819 = vadd.f32 %v1658, %v1818
      %1820 = vmatmul.f32.gmra.mxu0 %v1624
      %v1821 = vpop.f32.mrf.mxu0
      %v1822 = vadd.f32 %v1658, %v1821
      %1823 = vmatmul.f32.gmra.mxu0 %v1625
      %v1824 = vpop.f32.mrf.mxu0
      %v1825 = vadd.f32 %v1658, %v1824
      %1826 = vmatmul.f32.gmra.mxu0 %v1626
      %v1827 = vpop.f32.mrf.mxu0
      %v1828 = vadd.f32 %v1658, %v1827
      %1829 = vmatmul.f32.gmra.mxu0 %v1627
      %v1830 = vpop.f32.mrf.mxu0
      %v1831 = vadd.f32 %v1658, %v1830
      %1832 = vmatmul.f32.gmra.mxu0 %v1628
      %v1833 = vpop.f32.mrf.mxu0
      %v1834 = vadd.f32 %v1658, %v1833
      %1835 = vmatmul.f32.gmra.mxu0 %v1629
      %v1836 = vpop.f32.mrf.mxu0
      %v1837 = vadd.f32 %v1658, %v1836
      %1838 = vmatmul.f32.gmra.mxu0 %v1630
      %v1839 = vpop.f32.mrf.mxu0
      %v1840 = vadd.f32 %v1658, %v1839
      %1841 = vmatmul.f32.gmra.mxu0 %v1631
      %v1842 = vpop.f32.mrf.mxu0
      %v1843 = vadd.f32 %v1658, %v1842
      %1844 = vmatmul.f32.gmra.mxu0 %v1632
      %v1845 = vpop.f32.mrf.mxu0
      %v1846 = vadd.f32 %v1658, %v1845
      %1847 = vmatmul.f32.gmra.mxu0 %v1633
      %v1848 = vpop.f32.mrf.mxu0
      %v1849 = vadd.f32 %v1658, %v1848
      %1850 = vmatmul.f32.gmra.mxu0 %v1634
      %v1851 = vpop.f32.mrf.mxu0
      %v1852 = vadd.f32 %v1658, %v1851
      %1853 = vmatmul.f32.gmra.mxu0 %v1635
      %v1854 = vpop.f32.mrf.mxu0
      %v1855 = vadd.f32 %v1658, %v1854
      %1856 = vmatmul.f32.gmra.mxu0 %v1636
      %v1857 = vpop.f32.mrf.mxu0
      %v1858 = vadd.f32 %v1658, %v1857
      %1859 = vmatmul.f32.gmra.mxu0 %v1637
      %v1860 = vpop.f32.mrf.mxu0
      %v1861 = vadd.f32 %v1658, %v1860
      %1862 = vmatmul.f32.gmra.mxu0 %v1638
      %v1863 = vpop.f32.mrf.mxu0
      %v1864 = vadd.f32 %v1658, %v1863
      %1865 = vmatmul.f32.gmra.mxu0 %v1639
      %v1866 = vpop.f32.mrf.mxu0
      %v1867 = vadd.f32 %v1658, %v1866
      %1868 = vdwg.mxu0
      %v1869 = vlaneseq
      %v1870 = vshrl.u32 %v1869, 7
      %v1871 = vadd.s32 %v1870, 8
      %vm1872 = vcmp.lt.s32.totalorder %v1870, 10
      %vm1873 = vcmp.lt.s32.totalorder %v1871, 10
      %v1874 = vsel %vm1872, 1, 0
      %v1875 = vsel %vm1873, 1, 0
      %v1876 = vcvt.s32.f32 %v1874
      %v1877 = vcvt.s32.f32 %v1875
      %v1878 = vmul.f32 %v1678, %v1876
      %v1879 = vmul.f32 %v1681, %v1877
      %v1880 = vmul.f32 %v1684, %v1876
      %v1881 = vmul.f32 %v1687, %v1877
      %v1882 = vmul.f32 %v1690, %v1876
      %v1883 = vmul.f32 %v1693, %v1877
      %v1884 = vmul.f32 %v1696, %v1876
      %v1885 = vmul.f32 %v1699, %v1877
      %v1886 = vmul.f32 %v1702, %v1876
      %v1887 = vmul.f32 %v1705, %v1877
      %v1888 = vmul.f32 %v1708, %v1876
      %v1889 = vmul.f32 %v1711, %v1877
      %v1890 = vmul.f32 %v1714, %v1876
      %v1891 = vmul.f32 %v1717, %v1877
      %v1892 = vmul.f32 %v1720, %v1876
      %v1893 = vmul.f32 %v1723, %v1877
      %v1894 = vmul.f32 %v1726, %v1876
      %v1895 = vmul.f32 %v1729, %v1877
      %v1896 = vmul.f32 %v1732, %v1876
      %v1897 = vmul.f32 %v1735, %v1877
      %v1898 = vmul.f32 %v1738, %v1876
      %v1899 = vmul.f32 %v1741, %v1877
      %v1900 = vmul.f32 %v1744, %v1876
      %v1901 = vmul.f32 %v1747, %v1877
      %v1902 = vmul.f32 %v1750, %v1876
      %v1903 = vmul.f32 %v1753, %v1877
      %v1904 = vmul.f32 %v1756, %v1876
      %v1905 = vmul.f32 %v1759, %v1877
      %v1906 = vmul.f32 %v1762, %v1876
      %v1907 = vmul.f32 %v1765, %v1877
      %v1908 = vmul.f32 %v1768, %v1876
      %v1909 = vmul.f32 %v1771, %v1877
      %v1910 = vmul.f32 %v1774, %v1876
      %v1911 = vmul.f32 %v1777, %v1877
      %v1912 = vmul.f32 %v1780, %v1876
      %v1913 = vmul.f32 %v1783, %v1877
      %v1914 = vmul.f32 %v1786, %v1876
      %v1915 = vmul.f32 %v1789, %v1877
      %v1916 = vmul.f32 %v1792, %v1876
      %v1917 = vmul.f32 %v1795, %v1877
      %v1918 = vmul.f32 %v1798, %v1876
      %v1919 = vmul.f32 %v1801, %v1877
      %v1920 = vmul.f32 %v1804, %v1876
      %v1921 = vmul.f32 %v1807, %v1877
      %v1922 = vmul.f32 %v1810, %v1876
      %v1923 = vmul.f32 %v1813, %v1877
      %v1924 = vmul.f32 %v1816, %v1876
      %v1925 = vmul.f32 %v1819, %v1877
      %v1926 = vmul.f32 %v1822, %v1876
      %v1927 = vmul.f32 %v1825, %v1877
      %v1928 = vmul.f32 %v1828, %v1876
      %v1929 = vmul.f32 %v1831, %v1877
      %v1930 = vmul.f32 %v1834, %v1876
      %v1931 = vmul.f32 %v1837, %v1877
      %v1932 = vmul.f32 %v1840, %v1876
      %v1933 = vmul.f32 %v1843, %v1877
      %v1934 = vmul.f32 %v1846, %v1876
      %v1935 = vmul.f32 %v1849, %v1877
      %v1936 = vmul.f32 %v1852, %v1876
      %v1937 = vmul.f32 %v1855, %v1877
      %v1938 = vmul.f32 %v1858, %v1876
      %v1939 = vmul.f32 %v1861, %v1877
      %v1940 = vmul.f32 %v1864, %v1876
      %v1941 = vmul.f32 %v1867, %v1877
      %1942 = vst [vmem:[#allocation2] sm:$0xff] %v1878
      %1943 = vst [vmem:[#allocation2 + $0x8] sm:$0xff] %v1879
      %1944 = vst [vmem:[#allocation2 + $0x10] sm:$0xff] %v1880
      %1945 = vst [vmem:[#allocation2 + $0x18] sm:$0xff] %v1881
      %1946 = vst [vmem:[#allocation2 + $0x20] sm:$0xff] %v1882
      %1947 = vst [vmem:[#allocation2 + $0x28] sm:$0xff] %v1883
      %1948 = vst [vmem:[#allocation2 + $0x30] sm:$0xff] %v1884
      %1949 = vst [vmem:[#allocation2 + $0x38] sm:$0xff] %v1885
      %1950 = vst [vmem:[#allocation2 + $0x40] sm:$0xff] %v1886
      %1951 = vst [vmem:[#allocation2 + $0x48] sm:$0xff] %v1887
      %1952 = vst [vmem:[#allocation2 + $0x50] sm:$0xff] %v1888
      %1953 = vst [vmem:[#allocation2 + $0x58] sm:$0xff] %v1889
      %1954 = vst [vmem:[#allocation2 + $0x60] sm:$0xff] %v1890
      %1955 = vst [vmem:[#allocation2 + $0x68] sm:$0xff] %v1891
      %1956 = vst [vmem:[#allocation2 + $0x70] sm:$0xff] %v1892
      %1957 = vst [vmem:[#allocation2 + $0x78] sm:$0xff] %v1893
      %1958 = vst [vmem:[#allocation2 + $0x80] sm:$0xff] %v1894
      %1959 = vst [vmem:[#allocation2 + $0x88] sm:$0xff] %v1895
      %1960 = vst [vmem:[#allocation2 + $0x90] sm:$0xff] %v1896
      %1961 = vst [vmem:[#allocation2 + $0x98] sm:$0xff] %v1897
      %1962 = vst [vmem:[#allocation2 + $0xa0] sm:$0xff] %v1898
      %1963 = vst [vmem:[#allocation2 + $0xa8] sm:$0xff] %v1899
      %1964 = vst [vmem:[#allocation2 + $0xb0] sm:$0xff] %v1900
      %1965 = vst [vmem:[#allocation2 + $0xb8] sm:$0xff] %v1901
      %1966 = vst [vmem:[#allocation2 + $0xc0] sm:$0xff] %v1902
      %1967 = vst [vmem:[#allocation2 + $0xc8] sm:$0xff] %v1903
      %1968 = vst [vmem:[#allocation2 + $0xd0] sm:$0xff] %v1904
      %1969 = vst [vmem:[#allocation2 + $0xd8] sm:$0xff] %v1905
      %1970 = vst [vmem:[#allocation2 + $0xe0] sm:$0xff] %v1906
      %1971 = vst [vmem:[#allocation2 + $0xe8] sm:$0xff] %v1907
      %1972 = vst [vmem:[#allocation2 + $0xf0] sm:$0xff] %v1908
      %1973 = vst [vmem:[#allocation2 + $0xf8] sm:$0xff] %v1909
      %1974 = vst [vmem:[#allocation2 + $0x100] sm:$0xff] %v1910
      %1975 = vst [vmem:[#allocation2 + $0x108] sm:$0xff] %v1911
      %1976 = vst [vmem:[#allocation2 + $0x110] sm:$0xff] %v1912
      %1977 = vst [vmem:[#allocation2 + $0x118] sm:$0xff] %v1913
      %1978 = vst [vmem:[#allocation2 + $0x120] sm:$0xff] %v1914
      %1979 = vst [vmem:[#allocation2 + $0x128] sm:$0xff] %v1915
      %1980 = vst [vmem:[#allocation2 + $0x130] sm:$0xff] %v1916
      %1981 = vst [vmem:[#allocation2 + $0x138] sm:$0xff] %v1917
      %1982 = vst [vmem:[#allocation2 + $0x140] sm:$0xff] %v1918
      %1983 = vst [vmem:[#allocation2 + $0x148] sm:$0xff] %v1919
      %1984 = vst [vmem:[#allocation2 + $0x150] sm:$0xff] %v1920
      %1985 = vst [vmem:[#allocation2 + $0x158] sm:$0xff] %v1921
      %1986 = vst [vmem:[#allocation2 + $0x160] sm:$0xff] %v1922
      %1987 = vst [vmem:[#allocation2 + $0x168] sm:$0xff] %v1923
      %1988 = vst [vmem:[#allocation2 + $0x170] sm:$0xff] %v1924
      %1989 = vst [vmem:[#allocation2 + $0x178] sm:$0xff] %v1925
      %1990 = vst [vmem:[#allocation2 + $0x180] sm:$0xff] %v1926
      %1991 = vst [vmem:[#allocation2 + $0x188] sm:$0xff] %v1927
      %1992 = vst [vmem:[#allocation2 + $0x190] sm:$0xff] %v1928
      %1993 = vst [vmem:[#allocation2 + $0x198] sm:$0xff] %v1929
      %1994 = vst [vmem:[#allocation2 + $0x1a0] sm:$0xff] %v1930
      %1995 = vst [vmem:[#allocation2 + $0x1a8] sm:$0xff] %v1931
      %1996 = vst [vmem:[#allocation2 + $0x1b0] sm:$0xff] %v1932
      %1997 = vst [vmem:[#allocation2 + $0x1b8] sm:$0xff] %v1933
      %1998 = vst [vmem:[#allocation2 + $0x1c0] sm:$0xff] %v1934
      %1999 = vst [vmem:[#allocation2 + $0x1c8] sm:$0xff] %v1935
      %2000 = vst [vmem:[#allocation2 + $0x1d0] sm:$0xff] %v1936
      %2001 = vst [vmem:[#allocation2 + $0x1d8] sm:$0xff] %v1937
      %2002 = vst [vmem:[#allocation2 + $0x1e0] sm:$0xff] %v1938
      %2003 = vst [vmem:[#allocation2 + $0x1e8] sm:$0xff] %v1939
      %2004 = vst [vmem:[#allocation2 + $0x1f0] sm:$0xff] %v1940
      %2005 = vst [vmem:[#allocation2 + $0x1f8] sm:$0xff] %v1941
      %v2006 = vld [vmem:[%s512] sm:$0xff]
      %v2007 = vld [vmem:[%s512 + $0x8] sm:$0xff]
      %v2008 = vld [vmem:[%s512 + $0x10] sm:$0xff]
      %v2009 = vld [vmem:[%s512 + $0x18] sm:$0xff]
      %v2010 = vld [vmem:[%s6] sm:$0xff]
      %v2011 = vld [vmem:[%s6 + $0x8] sm:$0xff]
      %v2012 = vld [vmem:[%s6 + $0x10] sm:$0xff]
      %v2013 = vld [vmem:[%s6 + $0x18] sm:$0xff]
      %v2014 = vld [vmem:[%s6 + $0x20] sm:$0xff]
      %v2015 = vld [vmem:[%s6 + $0x28] sm:$0xff]
      %v2016 = vld [vmem:[%s6 + $0x30] sm:$0xff]
      %v2017 = vld [vmem:[%s6 + $0x38] sm:$0xff]
      %v2018 = vld [vmem:[%s6 + $0x40] sm:$0xff]
      %v2019 = vld [vmem:[%s6 + $0x48] sm:$0xff]
      %v2020 = vld [vmem:[%s6 + $0x50] sm:$0xff]
      %v2021 = vld [vmem:[%s6 + $0x58] sm:$0xff]
      %v2022 = vld [vmem:[%s6 + $0x60] sm:$0xff]
      %v2023 = vld [vmem:[%s6 + $0x68] sm:$0xff]
      %v2024 = vld [vmem:[%s6 + $0x70] sm:$0xff]
      %v2025 = vld [vmem:[%s6 + $0x78] sm:$0xff]
      %2026 = vmatpush.msra.mxu0 %v2025
      %2027 = vmatpush.msra.mxu0 %v2024
      %2028 = vmatpush.msra.mxu0 %v2023
      %2029 = vmatpush.msra.mxu0 %v2022
      %2030 = vmatpush.msra.mxu0 %v2021
      %2031 = vmatpush.msra.mxu0 %v2020
      %2032 = vmatpush.msra.mxu0 %v2019
      %2033 = vmatpush.msra.mxu0 %v2018
      %2034 = vmatpush.msra.mxu0 %v2017
      %2035 = vmatpush.msra.mxu0 %v2016
      %2036 = vmatpush.msra.mxu0 %v2015
      %2037 = vmatpush.msra.mxu0 %v2014
      %2038 = vmatpush.msra.mxu0 %v2013
      %2039 = vmatpush.msra.mxu0 %v2012
      %2040 = vmatpush.msra.mxu0 %v2011
      %2041 = vmatpush.msra.mxu0 %v2010
      %2042 = vmatmul.f32.gmra.mxu0 %v2006
      %v2043 = vpop.f32.mrf.mxu0
      %v2044 = vadd.f32 0.0, %v2043
      %2045 = vmatmul.f32.gmra.mxu0 %v2007
      %v2046 = vpop.f32.mrf.mxu0
      %v2047 = vadd.f32 0.0, %v2046
      %2048 = vmatmul.f32.gmra.mxu0 %v2008
      %v2049 = vpop.f32.mrf.mxu0
      %v2050 = vadd.f32 0.0, %v2049
      %2051 = vmatmul.f32.gmra.mxu0 %v2009
      %v2052 = vpop.f32.mrf.mxu0
      %v2053 = vadd.f32 0.0, %v2052
      %2054 = vdwg.mxu0
      %v2055 = vld [vmem:[#allocation2] sm:$0xff]
      %v2056 = vld [vmem:[#allocation2 + $0x8] sm:$0xff]
      %v2057 = vld [vmem:[#allocation2 + $0x10] sm:$0xff]
      %v2058 = vld [vmem:[#allocation2 + $0x18] sm:$0xff]
      %v2059 = vld [vmem:[#allocation2 + $0x20] sm:$0xff]
      %v2060 = vld [vmem:[#allocation2 + $0x28] sm:$0xff]
      %v2061 = vld [vmem:[#allocation2 + $0x30] sm:$0xff]
      %v2062 = vld [vmem:[#allocation2 + $0x38] sm:$0xff]
      %v2063 = vld [vmem:[#allocation2 + $0x40] sm:$0xff]
      %v2064 = vld [vmem:[#allocation2 + $0x48] sm:$0xff]
      %v2065 = vld [vmem:[#allocation2 + $0x50] sm:$0xff]
      %v2066 = vld [vmem:[#allocation2 + $0x58] sm:$0xff]
      %v2067 = vld [vmem:[#allocation2 + $0x60] sm:$0xff]
      %v2068 = vld [vmem:[#allocation2 + $0x68] sm:$0xff]
      %v2069 = vld [vmem:[#allocation2 + $0x70] sm:$0xff]
      %v2070 = vld [vmem:[#allocation2 + $0x78] sm:$0xff]
      %v2071 = vld [vmem:[#allocation2 + $0x80] sm:$0xff]
      %v2072 = vld [vmem:[#allocation2 + $0x88] sm:$0xff]
      %v2073 = vld [vmem:[#allocation2 + $0x90] sm:$0xff]
      %v2074 = vld [vmem:[#allocation2 + $0x98] sm:$0xff]
      %v2075 = vld [vmem:[#allocation2 + $0xa0] sm:$0xff]
      %v2076 = vld [vmem:[#allocation2 + $0xa8] sm:$0xff]
      %v2077 = vld [vmem:[#allocation2 + $0xb0] sm:$0xff]
      %v2078 = vld [vmem:[#allocation2 + $0xb8] sm:$0xff]
      %v2079 = vld [vmem:[#allocation2 + $0xc0] sm:$0xff]
      %v2080 = vld [vmem:[#allocation2 + $0xc8] sm:$0xff]
      %v2081 = vld [vmem:[#allocation2 + $0xd0] sm:$0xff]
      %v2082 = vld [vmem:[#allocation2 + $0xd8] sm:$0xff]
      %v2083 = vld [vmem:[#allocation2 + $0xe0] sm:$0xff]
      %v2084 = vld [vmem:[#allocation2 + $0xe8] sm:$0xff]
      %v2085 = vld [vmem:[#allocation2 + $0xf0] sm:$0xff]
      %v2086 = vld [vmem:[#allocation2 + $0xf8] sm:$0xff]
      %v2087 = vld [vmem:[#allocation2 + $0x100] sm:$0xff]
      %v2088 = vld [vmem:[#allocation2 + $0x108] sm:$0xff]
      %v2089 = vld [vmem:[#allocation2 + $0x110] sm:$0xff]
      %v2090 = vld [vmem:[#allocation2 + $0x118] sm:$0xff]
      %v2091 = vld [vmem:[#allocation2 + $0x120] sm:$0xff]
      %v2092 = vld [vmem:[#allocation2 + $0x128] sm:$0xff]
      %v2093 = vld [vmem:[#allocation2 + $0x130] sm:$0xff]
      %v2094 = vld [vmem:[#allocation2 + $0x138] sm:$0xff]
      %v2095 = vld [vmem:[#allocation2 + $0x140] sm:$0xff]
      %v2096 = vld [vmem:[#allocation2 + $0x148] sm:$0xff]
      %v2097 = vld [vmem:[#allocation2 + $0x150] sm:$0xff]
      %v2098 = vld [vmem:[#allocation2 + $0x158] sm:$0xff]
      %v2099 = vld [vmem:[#allocation2 + $0x160] sm:$0xff]
      %v2100 = vld [vmem:[#allocation2 + $0x168] sm:$0xff]
      %v2101 = vld [vmem:[#allocation2 + $0x170] sm:$0xff]
      %v2102 = vld [vmem:[#allocation2 + $0x178] sm:$0xff]
      %v2103 = vld [vmem:[#allocation2 + $0x180] sm:$0xff]
      %v2104 = vld [vmem:[#allocation2 + $0x188] sm:$0xff]
      %v2105 = vld [vmem:[#allocation2 + $0x190] sm:$0xff]
      %v2106 = vld [vmem:[#allocation2 + $0x198] sm:$0xff]
      %v2107 = vld [vmem:[#allocation2 + $0x1a0] sm:$0xff]
      %v2108 = vld [vmem:[#allocation2 + $0x1a8] sm:$0xff]
      %v2109 = vld [vmem:[#allocation2 + $0x1b0] sm:$0xff]
      %v2110 = vld [vmem:[#allocation2 + $0x1b8] sm:$0xff]
      %v2111 = vld [vmem:[#allocation2 + $0x1c0] sm:$0xff]
      %v2112 = vld [vmem:[#allocation2 + $0x1c8] sm:$0xff]
      %v2113 = vld [vmem:[#allocation2 + $0x1d0] sm:$0xff]
      %v2114 = vld [vmem:[#allocation2 + $0x1d8] sm:$0xff]
      %v2115 = vld [vmem:[#allocation2 + $0x1e0] sm:$0xff]
      %v2116 = vld [vmem:[#allocation2 + $0x1e8] sm:$0xff]
      %v2117 = vld [vmem:[#allocation2 + $0x1f0] sm:$0xff]
      %v2118 = vld [vmem:[#allocation2 + $0x1f8] sm:$0xff]
      %v2119 = vmul.f32 %v2055, %v2044
      %v2120 = vmul.f32 %v2056, %v2047
      %v2121 = vmul.f32 %v2057, %v2044
      %v2122 = vmul.f32 %v2058, %v2047
      %v2123 = vmul.f32 %v2059, %v2044
      %v2124 = vmul.f32 %v2060, %v2047
      %v2125 = vmul.f32 %v2061, %v2044
      %v2126 = vmul.f32 %v2062, %v2047
      %v2127 = vmul.f32 %v2063, %v2044
      %v2128 = vmul.f32 %v2064, %v2047
      %v2129 = vmul.f32 %v2065, %v2044
      %v2130 = vmul.f32 %v2066, %v2047
      %v2131 = vmul.f32 %v2067, %v2044
      %v2132 = vmul.f32 %v2068, %v2047
      %v2133 = vmul.f32 %v2069, %v2044
      %v2134 = vmul.f32 %v2070, %v2047
      %v2135 = vmul.f32 %v2071, %v2044
      %v2136 = vmul.f32 %v2072, %v2047
      %v2137 = vmul.f32 %v2073, %v2044
      %v2138 = vmul.f32 %v2074, %v2047
      %v2139 = vmul.f32 %v2075, %v2044
      %v2140 = vmul.f32 %v2076, %v2047
      %v2141 = vmul.f32 %v2077, %v2044
      %v2142 = vmul.f32 %v2078, %v2047
      %v2143 = vmul.f32 %v2079, %v2044
      %v2144 = vmul.f32 %v2080, %v2047
      %v2145 = vmul.f32 %v2081, %v2044
      %v2146 = vmul.f32 %v2082, %v2047
      %v2147 = vmul.f32 %v2083, %v2044
      %v2148 = vmul.f32 %v2084, %v2047
      %v2149 = vmul.f32 %v2085, %v2044
      %v2150 = vmul.f32 %v2086, %v2047
      %v2151 = vmul.f32 %v2087, %v2050
      %v2152 = vmul.f32 %v2088, %v2053
      %v2153 = vmul.f32 %v2089, %v2050
      %v2154 = vmul.f32 %v2090, %v2053
      %v2155 = vmul.f32 %v2091, %v2050
      %v2156 = vmul.f32 %v2092, %v2053
      %v2157 = vmul.f32 %v2093, %v2050
      %v2158 = vmul.f32 %v2094, %v2053
      %v2159 = vmul.f32 %v2095, %v2050
      %v2160 = vmul.f32 %v2096, %v2053
      %v2161 = vmul.f32 %v2097, %v2050
      %v2162 = vmul.f32 %v2098, %v2053
      %v2163 = vmul.f32 %v2099, %v2050
      %v2164 = vmul.f32 %v2100, %v2053
      %v2165 = vmul.f32 %v2101, %v2050
      %v2166 = vmul.f32 %v2102, %v2053
      %v2167 = vmul.f32 %v2103, %v2050
      %v2168 = vmul.f32 %v2104, %v2053
      %v2169 = vmul.f32 %v2105, %v2050
      %v2170 = vmul.f32 %v2106, %v2053
      %v2171 = vmul.f32 %v2107, %v2050
      %v2172 = vmul.f32 %v2108, %v2053
      %v2173 = vmul.f32 %v2109, %v2050
      %v2174 = vmul.f32 %v2110, %v2053
      %v2175 = vmul.f32 %v2111, %v2050
      %v2176 = vmul.f32 %v2112, %v2053
      %v2177 = vmul.f32 %v2113, %v2050
      %v2178 = vmul.f32 %v2114, %v2053
      %v2179 = vmul.f32 %v2115, %v2050
      %v2180 = vmul.f32 %v2116, %v2053
      %v2181 = vmul.f32 %v2117, %v2050
      %v2182 = vmul.f32 %v2118, %v2053
      %v2183 = vadd.f32 %v2119, %v2120
      %v2184 = vrot.slane %v2183, 4
      %v2185 = vadd.f32 %v2183, %v2184
      %v2186 = vrot.slane %v2185, 2
      %v2187 = vadd.f32 %v2185, %v2186
      %v2188 = vrot.slane %v2187, 1
      %v2189 = vadd.f32 %v2187, %v2188
      %v2190 = vadd.f32 %v2121, %v2122
      %v2191 = vrot.slane %v2190, 4
      %v2192 = vadd.f32 %v2190, %v2191
      %v2193 = vrot.slane %v2192, 2
      %v2194 = vadd.f32 %v2192, %v2193
      %v2195 = vrot.slane %v2194, 1
      %v2196 = vadd.f32 %v2194, %v2195
      %v2197 = vadd.f32 %v2123, %v2124
      %v2198 = vrot.slane %v2197, 4
      %v2199 = vadd.f32 %v2197, %v2198
      %v2200 = vrot.slane %v2199, 2
      %v2201 = vadd.f32 %v2199, %v2200
      %v2202 = vrot.slane %v2201, 1
      %v2203 = vadd.f32 %v2201, %v2202
      %v2204 = vadd.f32 %v2125, %v2126
      %v2205 = vrot.slane %v2204, 4
      %v2206 = vadd.f32 %v2204, %v2205
      %v2207 = vrot.slane %v2206, 2
      %v2208 = vadd.f32 %v2206, %v2207
      %v2209 = vrot.slane %v2208, 1
      %v2210 = vadd.f32 %v2208, %v2209
      %v2211 = vadd.f32 %v2127, %v2128
      %v2212 = vrot.slane %v2211, 4
      %v2213 = vadd.f32 %v2211, %v2212
      %v2214 = vrot.slane %v2213, 2
      %v2215 = vadd.f32 %v2213, %v2214
      %v2216 = vrot.slane %v2215, 1
      %v2217 = vadd.f32 %v2215, %v2216
      %v2218 = vadd.f32 %v2129, %v2130
      %v2219 = vrot.slane %v2218, 4
      %v2220 = vadd.f32 %v2218, %v2219
      %v2221 = vrot.slane %v2220, 2
      %v2222 = vadd.f32 %v2220, %v2221
      %v2223 = vrot.slane %v2222, 1
      %v2224 = vadd.f32 %v2222, %v2223
      %v2225 = vadd.f32 %v2131, %v2132
      %v2226 = vrot.slane %v2225, 4
      %v2227 = vadd.f32 %v2225, %v2226
      %v2228 = vrot.slane %v2227, 2
      %v2229 = vadd.f32 %v2227, %v2228
      %v2230 = vrot.slane %v2229, 1
      %v2231 = vadd.f32 %v2229, %v2230
      %v2232 = vadd.f32 %v2133, %v2134
      %v2233 = vrot.slane %v2232, 4
      %v2234 = vadd.f32 %v2232, %v2233
      %v2235 = vrot.slane %v2234, 2
      %v2236 = vadd.f32 %v2234, %v2235
      %v2237 = vrot.slane %v2236, 1
      %v2238 = vadd.f32 %v2236, %v2237
      %v2239 = vadd.f32 %v2135, %v2136
      %v2240 = vrot.slane %v2239, 4
      %v2241 = vadd.f32 %v2239, %v2240
      %v2242 = vrot.slane %v2241, 2
      %v2243 = vadd.f32 %v2241, %v2242
      %v2244 = vrot.slane %v2243, 1
      %v2245 = vadd.f32 %v2243, %v2244
      %v2246 = vadd.f32 %v2137, %v2138
      %v2247 = vrot.slane %v2246, 4
      %v2248 = vadd.f32 %v2246, %v2247
      %v2249 = vrot.slane %v2248, 2
      %v2250 = vadd.f32 %v2248, %v2249
      %v2251 = vrot.slane %v2250, 1
      %v2252 = vadd.f32 %v2250, %v2251
      %v2253 = vadd.f32 %v2139, %v2140
      %v2254 = vrot.slane %v2253, 4
      %v2255 = vadd.f32 %v2253, %v2254
      %v2256 = vrot.slane %v2255, 2
      %v2257 = vadd.f32 %v2255, %v2256
      %v2258 = vrot.slane %v2257, 1
      %v2259 = vadd.f32 %v2257, %v2258
      %v2260 = vadd.f32 %v2141, %v2142
      %v2261 = vrot.slane %v2260, 4
      %v2262 = vadd.f32 %v2260, %v2261
      %v2263 = vrot.slane %v2262, 2
      %v2264 = vadd.f32 %v2262, %v2263
      %v2265 = vrot.slane %v2264, 1
      %v2266 = vadd.f32 %v2264, %v2265
      %v2267 = vadd.f32 %v2143, %v2144
      %v2268 = vrot.slane %v2267, 4
      %v2269 = vadd.f32 %v2267, %v2268
      %v2270 = vrot.slane %v2269, 2
      %v2271 = vadd.f32 %v2269, %v2270
      %v2272 = vrot.slane %v2271, 1
      %v2273 = vadd.f32 %v2271, %v2272
      %v2274 = vadd.f32 %v2145, %v2146
      %v2275 = vrot.slane %v2274, 4
      %v2276 = vadd.f32 %v2274, %v2275
      %v2277 = vrot.slane %v2276, 2
      %v2278 = vadd.f32 %v2276, %v2277
      %v2279 = vrot.slane %v2278, 1
      %v2280 = vadd.f32 %v2278, %v2279
      %v2281 = vadd.f32 %v2147, %v2148
      %v2282 = vrot.slane %v2281, 4
      %v2283 = vadd.f32 %v2281, %v2282
      %v2284 = vrot.slane %v2283, 2
      %v2285 = vadd.f32 %v2283, %v2284
      %v2286 = vrot.slane %v2285, 1
      %v2287 = vadd.f32 %v2285, %v2286
      %v2288 = vadd.f32 %v2149, %v2150
      %v2289 = vrot.slane %v2288, 4
      %v2290 = vadd.f32 %v2288, %v2289
      %v2291 = vrot.slane %v2290, 2
      %v2292 = vadd.f32 %v2290, %v2291
      %v2293 = vrot.slane %v2292, 1
      %v2294 = vadd.f32 %v2292, %v2293
      %v2295 = vadd.f32 %v2151, %v2152
      %v2296 = vrot.slane %v2295, 4
      %v2297 = vadd.f32 %v2295, %v2296
      %v2298 = vrot.slane %v2297, 2
      %v2299 = vadd.f32 %v2297, %v2298
      %v2300 = vrot.slane %v2299, 1
      %v2301 = vadd.f32 %v2299, %v2300
      %v2302 = vadd.f32 %v2153, %v2154
      %v2303 = vrot.slane %v2302, 4
      %v2304 = vadd.f32 %v2302, %v2303
      %v2305 = vrot.slane %v2304, 2
      %v2306 = vadd.f32 %v2304, %v2305
      %v2307 = vrot.slane %v2306, 1
      %v2308 = vadd.f32 %v2306, %v2307
      %v2309 = vadd.f32 %v2155, %v2156
      %v2310 = vrot.slane %v2309, 4
      %v2311 = vadd.f32 %v2309, %v2310
      %v2312 = vrot.slane %v2311, 2
      %v2313 = vadd.f32 %v2311, %v2312
      %v2314 = vrot.slane %v2313, 1
      %v2315 = vadd.f32 %v2313, %v2314
      %v2316 = vadd.f32 %v2157, %v2158
      %v2317 = vrot.slane %v2316, 4
      %v2318 = vadd.f32 %v2316, %v2317
      %v2319 = vrot.slane %v2318, 2
      %v2320 = vadd.f32 %v2318, %v2319
      %v2321 = vrot.slane %v2320, 1
      %v2322 = vadd.f32 %v2320, %v2321
      %v2323 = vadd.f32 %v2159, %v2160
      %v2324 = vrot.slane %v2323, 4
      %v2325 = vadd.f32 %v2323, %v2324
      %v2326 = vrot.slane %v2325, 2
      %v2327 = vadd.f32 %v2325, %v2326
      %v2328 = vrot.slane %v2327, 1
      %v2329 = vadd.f32 %v2327, %v2328
      %v2330 = vadd.f32 %v2161, %v2162
      %v2331 = vrot.slane %v2330, 4
      %v2332 = vadd.f32 %v2330, %v2331
      %v2333 = vrot.slane %v2332, 2
      %v2334 = vadd.f32 %v2332, %v2333
      %v2335 = vrot.slane %v2334, 1
      %v2336 = vadd.f32 %v2334, %v2335
      %v2337 = vadd.f32 %v2163, %v2164
      %v2338 = vrot.slane %v2337, 4
      %v2339 = vadd.f32 %v2337, %v2338
      %v2340 = vrot.slane %v2339, 2
      %v2341 = vadd.f32 %v2339, %v2340
      %v2342 = vrot.slane %v2341, 1
      %v2343 = vadd.f32 %v2341, %v2342
      %v2344 = vadd.f32 %v2165, %v2166
      %v2345 = vrot.slane %v2344, 4
      %v2346 = vadd.f32 %v2344, %v2345
      %v2347 = vrot.slane %v2346, 2
      %v2348 = vadd.f32 %v2346, %v2347
      %v2349 = vrot.slane %v2348, 1
      %v2350 = vadd.f32 %v2348, %v2349
      %v2351 = vadd.f32 %v2167, %v2168
      %v2352 = vrot.slane %v2351, 4
      %v2353 = vadd.f32 %v2351, %v2352
      %v2354 = vrot.slane %v2353, 2
      %v2355 = vadd.f32 %v2353, %v2354
      %v2356 = vrot.slane %v2355, 1
      %v2357 = vadd.f32 %v2355, %v2356
      %v2358 = vadd.f32 %v2169, %v2170
      %v2359 = vrot.slane %v2358, 4
      %v2360 = vadd.f32 %v2358, %v2359
      %v2361 = vrot.slane %v2360, 2
      %v2362 = vadd.f32 %v2360, %v2361
      %v2363 = vrot.slane %v2362, 1
      %v2364 = vadd.f32 %v2362, %v2363
      %v2365 = vadd.f32 %v2171, %v2172
      %v2366 = vrot.slane %v2365, 4
      %v2367 = vadd.f32 %v2365, %v2366
      %v2368 = vrot.slane %v2367, 2
      %v2369 = vadd.f32 %v2367, %v2368
      %v2370 = vrot.slane %v2369, 1
      %v2371 = vadd.f32 %v2369, %v2370
      %v2372 = vadd.f32 %v2173, %v2174
      %v2373 = vrot.slane %v2372, 4
      %v2374 = vadd.f32 %v2372, %v2373
      %v2375 = vrot.slane %v2374, 2
      %v2376 = vadd.f32 %v2374, %v2375
      %v2377 = vrot.slane %v2376, 1
      %v2378 = vadd.f32 %v2376, %v2377
      %v2379 = vadd.f32 %v2175, %v2176
      %v2380 = vrot.slane %v2379, 4
      %v2381 = vadd.f32 %v2379, %v2380
      %v2382 = vrot.slane %v2381, 2
      %v2383 = vadd.f32 %v2381, %v2382
      %v2384 = vrot.slane %v2383, 1
      %v2385 = vadd.f32 %v2383, %v2384
      %v2386 = vadd.f32 %v2177, %v2178
      %v2387 = vrot.slane %v2386, 4
      %v2388 = vadd.f32 %v2386, %v2387
      %v2389 = vrot.slane %v2388, 2
      %v2390 = vadd.f32 %v2388, %v2389
      %v2391 = vrot.slane %v2390, 1
      %v2392 = vadd.f32 %v2390, %v2391
      %v2393 = vadd.f32 %v2179, %v2180
      %v2394 = vrot.slane %v2393, 4
      %v2395 = vadd.f32 %v2393, %v2394
      %v2396 = vrot.slane %v2395, 2
      %v2397 = vadd.f32 %v2395, %v2396
      %v2398 = vrot.slane %v2397, 1
      %v2399 = vadd.f32 %v2397, %v2398
      %v2400 = vadd.f32 %v2181, %v2182
      %v2401 = vrot.slane %v2400, 4
      %v2402 = vadd.f32 %v2400, %v2401
      %v2403 = vrot.slane %v2402, 2
      %v2404 = vadd.f32 %v2402, %v2403
      %v2405 = vrot.slane %v2404, 1
      %v2406 = vadd.f32 %v2404, %v2405
      %v2407 = vld [vmem:[%s7] sm:$0xff]
      %v2408 = vld [vmem:[%s7 + $0x8] sm:$0xff]
      %v2409 = vld [vmem:[%s7 + $0x10] sm:$0xff]
      %v2410 = vld [vmem:[%s7 + $0x18] sm:$0xff]
      %v2411 = vld [vmem:[%s7 + $0x20] sm:$0xff]
      %v2412 = vld [vmem:[%s7 + $0x28] sm:$0xff]
      %v2413 = vld [vmem:[%s7 + $0x30] sm:$0xff]
      %v2414 = vld [vmem:[%s7 + $0x38] sm:$0xff]
      %v2415 = vld [vmem:[%s7 + $0x40] sm:$0xff]
      %v2416 = vld [vmem:[%s7 + $0x48] sm:$0xff]
      %v2417 = vld [vmem:[%s7 + $0x50] sm:$0xff]
      %v2418 = vld [vmem:[%s7 + $0x58] sm:$0xff]
      %v2419 = vld [vmem:[%s7 + $0x60] sm:$0xff]
      %v2420 = vld [vmem:[%s7 + $0x68] sm:$0xff]
      %v2421 = vld [vmem:[%s7 + $0x70] sm:$0xff]
      %v2422 = vld [vmem:[%s7 + $0x78] sm:$0xff]
      %v2423 = vld [vmem:[%s8] sm:$0x1]
      %v2425 = vperm.slane %v2423, 0
      %vm2459 = vcmask 1041409
      %v2460 = vsel %vm2459, %v2196, %v2189
      %vm2461 = vcmask 1042434
      %v2462 = vsel %vm2461, %v2203, %v2460
      %vm2463 = vcmask 1043459
      %v2464 = vsel %vm2463, %v2210, %v2462
      %vm2465 = vcmask 1044484
      %v2466 = vsel %vm2465, %v2217, %v2464
      %vm2467 = vcmask 1045509
      %v2468 = vsel %vm2467, %v2224, %v2466
      %vm2469 = vcmask 1046534
      %v2470 = vsel %vm2469, %v2231, %v2468
      %vm2471 = vcmask 1047559
      %v2472 = vsel %vm2471, %v2238, %v2470
      %v2473 = vsel %vm2459, %v2252, %v2245
      %v2474 = vsel %vm2461, %v2259, %v2473
      %v2475 = vsel %vm2463, %v2266, %v2474
      %v2476 = vsel %vm2465, %v2273, %v2475
      %v2477 = vsel %vm2467, %v2280, %v2476
      %v2478 = vsel %vm2469, %v2287, %v2477
      %v2479 = vsel %vm2471, %v2294, %v2478
      %v2480 = vsel %vm2459, %v2308, %v2301
      %v2481 = vsel %vm2461, %v2315, %v2480
      %v2482 = vsel %vm2463, %v2322, %v2481
      %v2483 = vsel %vm2465, %v2329, %v2482
      %v2484 = vsel %vm2467, %v2336, %v2483
      %v2485 = vsel %vm2469, %v2343, %v2484
      %v2486 = vsel %vm2471, %v2350, %v2485
      %v2487 = vsel %vm2459, %v2364, %v2357
      %v2488 = vsel %vm2461, %v2371, %v2487
      %v2489 = vsel %vm2463, %v2378, %v2488
      %v2490 = vsel %vm2465, %v2385, %v2489
      %v2491 = vsel %vm2467, %v2392, %v2490
      %v2492 = vsel %vm2469, %v2399, %v2491
      %v2493 = vsel %vm2471, %v2406, %v2492
      %2498 = vmatpush.msra.mxu0 %v2422
      %2499 = vmatpush.msra.mxu0 %v2421
      %2500 = vmatpush.msra.mxu0 %v2420
      %2501 = vmatpush.msra.mxu0 %v2419
      %2502 = vmatpush.msra.mxu0 %v2418
      %2503 = vmatpush.msra.mxu0 %v2417
      %2504 = vmatpush.msra.mxu0 %v2416
      %2505 = vmatpush.msra.mxu0 %v2415
      %2506 = vmatpush.msra.mxu0 %v2414
      %2507 = vmatpush.msra.mxu0 %v2413
      %2508 = vmatpush.msra.mxu0 %v2412
      %2509 = vmatpush.msra.mxu0 %v2411
      %2510 = vmatpush.msra.mxu0 %v2410
      %2511 = vmatpush.msra.mxu0 %v2409
      %2512 = vmatpush.msra.mxu0 %v2408
      %2513 = vmatpush.msra.mxu0 %v2407
      %2514 = vmatmul.f32.gmra.mxu0 %v2472
      %v2515 = vpop.f32.mrf.mxu0
      %v2516 = vadd.f32 %v2425, %v2515
      %2517 = vmatmul.f32.gmra.mxu0 %v2479
      %v2518 = vpop.f32.mrf.mxu0
      %v2519 = vadd.f32 %v2425, %v2518
      %2520 = vmatmul.f32.gmra.mxu0 %v2486
      %v2521 = vpop.f32.mrf.mxu0
      %v2522 = vadd.f32 %v2425, %v2521
      %2523 = vmatmul.f32.gmra.mxu0 %v2493
      %v2524 = vpop.f32.mrf.mxu0
      %v2525 = vadd.f32 %v2425, %v2524
      %2526 = vdwg.mxu0
      %v2527 = vmax.f32 %v2516, 0.0
      %v2528 = vmax.f32 %v2519, 0.0
      %v2529 = vmax.f32 %v2522, 0.0
      %v2530 = vmax.f32 %v2525, 0.0
      %v2531 = vand.u32 2147483647, %v2516
      %v2532 = vand.u32 2147483647, %v2519
      %v2533 = vand.u32 2147483647, %v2522
      %v2534 = vand.u32 2147483647, %v2525
      %v2535 = vsub.f32 0.0, %v2531
      %v2536 = vsub.f32 0.0, %v2532
      %v2537 = vsub.f32 0.0, %v2533
      %v2538 = vsub.f32 0.0, %v2534
      %v2539 = vmul.f32 %v2535, 1.442695
      %v2540 = vpow.pop %v2539
      %v2541 = vmul.f32 %v2536, 1.442695
      %v2542 = vpow.pop %v2541
      %v2543 = vmul.f32 %v2537, 1.442695
      %v2544 = vpow.pop %v2543
      %v2545 = vmul.f32 %v2538, 1.442695
      %v2546 = vpow.pop %v2545
      %v2547 = vadd.f32 %v2540, 1.0
      %v2548 = vadd.f32 %v2542, 1.0
      %v2549 = vadd.f32 %v2544, 1.0
      %v2550 = vadd.f32 %v2546, 1.0
      %v2551 = vlog2.pop %v2547
      %v2552 = vmul.f32 %v2551, 0.6931472
      %v2553 = vlog2.pop %v2548
      %v2554 = vmul.f32 %v2553, 0.6931472
      %v2555 = vlog2.pop %v2549
      %v2556 = vmul.f32 %v2555, 0.6931472
      %v2557 = vlog2.pop %v2550
      %v2558 = vmul.f32 %v2557, 0.6931472
      %v2559 = vadd.f32 %v2527, %v2552
      %v2560 = vadd.f32 %v2528, %v2554
      %v2561 = vadd.f32 %v2529, %v2556
      %v2562 = vadd.f32 %v2530, %v2558
      %v2563 = vsub.f32 %v2559, 0.6931472
      %v2564 = vsub.f32 %v2560, 0.6931472
      %v2565 = vsub.f32 %v2561, 0.6931472
      %v2566 = vsub.f32 %v2562, 0.6931472
      %v2567 = vld [vmem:[%s9] sm:$0xff]
      %v2568 = vld [vmem:[%s9 + $0x8] sm:$0xff]
      %v2569 = vld [vmem:[%s9 + $0x10] sm:$0xff]
      %v2570 = vld [vmem:[%s9 + $0x18] sm:$0xff]
      %v2571 = vld [vmem:[%s9 + $0x20] sm:$0xff]
      %v2572 = vld [vmem:[%s9 + $0x28] sm:$0xff]
      %v2573 = vld [vmem:[%s9 + $0x30] sm:$0xff]
      %v2574 = vld [vmem:[%s9 + $0x38] sm:$0xff]
      %v2575 = vld [vmem:[%s9 + $0x40] sm:$0xff]
      %v2576 = vld [vmem:[%s9 + $0x48] sm:$0xff]
      %v2577 = vld [vmem:[%s9 + $0x50] sm:$0xff]
      %v2578 = vld [vmem:[%s9 + $0x58] sm:$0xff]
      %v2579 = vld [vmem:[%s9 + $0x60] sm:$0xff]
      %v2580 = vld [vmem:[%s9 + $0x68] sm:$0xff]
      %v2581 = vld [vmem:[%s9 + $0x70] sm:$0xff]
      %v2582 = vld [vmem:[%s9 + $0x78] sm:$0xff]
      %v2583 = vld [vmem:[%s10] sm:$0x1]
      %v2585 = vperm.slane %v2583, 0
      %2587 = vmatpush.msra.mxu0 %v2582
      %2588 = vmatpush.msra.mxu0 %v2581
      %2589 = vmatpush.msra.mxu0 %v2580
      %2590 = vmatpush.msra.mxu0 %v2579
      %2591 = vmatpush.msra.mxu0 %v2578
      %2592 = vmatpush.msra.mxu0 %v2577
      %2593 = vmatpush.msra.mxu0 %v2576
      %2594 = vmatpush.msra.mxu0 %v2575
      %2595 = vmatpush.msra.mxu0 %v2574
      %2596 = vmatpush.msra.mxu0 %v2573
      %2597 = vmatpush.msra.mxu0 %v2572
      %2598 = vmatpush.msra.mxu0 %v2571
      %2599 = vmatpush.msra.mxu0 %v2570
      %2600 = vmatpush.msra.mxu0 %v2569
      %2601 = vmatpush.msra.mxu0 %v2568
      %2602 = vmatpush.msra.mxu0 %v2567
      %2603 = vmatmul.f32.gmra.mxu0 %v2563
      %v2604 = vpop.f32.mrf.mxu0
      %v2605 = vadd.f32 %v2585, %v2604
      %2606 = vmatmul.f32.gmra.mxu0 %v2564
      %v2607 = vpop.f32.mrf.mxu0
      %v2608 = vadd.f32 %v2585, %v2607
      %2609 = vmatmul.f32.gmra.mxu0 %v2565
      %v2610 = vpop.f32.mrf.mxu0
      %v2611 = vadd.f32 %v2585, %v2610
      %2612 = vmatmul.f32.gmra.mxu0 %v2566
      %v2613 = vpop.f32.mrf.mxu0
      %v2614 = vadd.f32 %v2585, %v2613
      %2615 = vdwg.mxu0
      %v2616 = vadd.f32 %v2006, %v2605
      %v2617 = vadd.f32 %v2007, %v2608
      %v2618 = vadd.f32 %v2008, %v2611
      %v2619 = vadd.f32 %v2009, %v2614
      %2620 = vmatpush.msra.mxu0 %v2025
      %2621 = vmatpush.msra.mxu0 %v2024
      %2622 = vmatpush.msra.mxu0 %v2023
      %2623 = vmatpush.msra.mxu0 %v2022
      %2624 = vmatpush.msra.mxu0 %v2021
      %2625 = vmatpush.msra.mxu0 %v2020
      %2626 = vmatpush.msra.mxu0 %v2019
      %2627 = vmatpush.msra.mxu0 %v2018
      %2628 = vmatpush.msra.mxu0 %v2017
      %2629 = vmatpush.msra.mxu0 %v2016
      %2630 = vmatpush.msra.mxu0 %v2015
      %2631 = vmatpush.msra.mxu0 %v2014
      %2632 = vmatpush.msra.mxu0 %v2013
      %2633 = vmatpush.msra.mxu0 %v2012
      %2634 = vmatpush.msra.mxu0 %v2011
      %2635 = vmatpush.msra.mxu0 %v2010
      %2636 = vmatmul.f32.gmra.mxu0 %v2616
      %v2637 = vpop.f32.mrf.mxu0
      %v2638 = vadd.f32 0.0, %v2637
      %2639 = vmatmul.f32.gmra.mxu0 %v2617
      %v2640 = vpop.f32.mrf.mxu0
      %v2641 = vadd.f32 0.0, %v2640
      %2642 = vmatmul.f32.gmra.mxu0 %v2618
      %v2643 = vpop.f32.mrf.mxu0
      %v2644 = vadd.f32 0.0, %v2643
      %2645 = vmatmul.f32.gmra.mxu0 %v2619
      %v2646 = vpop.f32.mrf.mxu0
      %v2647 = vadd.f32 0.0, %v2646
      %2648 = vdwg.mxu0
      %v2649 = vmul.f32 %v2055, %v2638
      %v2650 = vmul.f32 %v2056, %v2641
      %v2651 = vmul.f32 %v2057, %v2638
      %v2652 = vmul.f32 %v2058, %v2641
      %v2653 = vmul.f32 %v2059, %v2638
      %v2654 = vmul.f32 %v2060, %v2641
      %v2655 = vmul.f32 %v2061, %v2638
      %v2656 = vmul.f32 %v2062, %v2641
      %v2657 = vmul.f32 %v2063, %v2638
      %v2658 = vmul.f32 %v2064, %v2641
      %v2659 = vmul.f32 %v2065, %v2638
      %v2660 = vmul.f32 %v2066, %v2641
      %v2661 = vmul.f32 %v2067, %v2638
      %v2662 = vmul.f32 %v2068, %v2641
      %v2663 = vmul.f32 %v2069, %v2638
      %v2664 = vmul.f32 %v2070, %v2641
      %v2665 = vmul.f32 %v2071, %v2638
      %v2666 = vmul.f32 %v2072, %v2641
      %v2667 = vmul.f32 %v2073, %v2638
      %v2668 = vmul.f32 %v2074, %v2641
      %v2669 = vmul.f32 %v2075, %v2638
      %v2670 = vmul.f32 %v2076, %v2641
      %v2671 = vmul.f32 %v2077, %v2638
      %v2672 = vmul.f32 %v2078, %v2641
      %v2673 = vmul.f32 %v2079, %v2638
      %v2674 = vmul.f32 %v2080, %v2641
      %v2675 = vmul.f32 %v2081, %v2638
      %v2676 = vmul.f32 %v2082, %v2641
      %v2677 = vmul.f32 %v2083, %v2638
      %v2678 = vmul.f32 %v2084, %v2641
      %v2679 = vmul.f32 %v2085, %v2638
      %v2680 = vmul.f32 %v2086, %v2641
      %v2681 = vmul.f32 %v2087, %v2644
      %v2682 = vmul.f32 %v2088, %v2647
      %v2683 = vmul.f32 %v2089, %v2644
      %v2684 = vmul.f32 %v2090, %v2647
      %v2685 = vmul.f32 %v2091, %v2644
      %v2686 = vmul.f32 %v2092, %v2647
      %v2687 = vmul.f32 %v2093, %v2644
      %v2688 = vmul.f32 %v2094, %v2647
      %v2689 = vmul.f32 %v2095, %v2644
      %v2690 = vmul.f32 %v2096, %v2647
      %v2691 = vmul.f32 %v2097, %v2644
      %v2692 = vmul.f32 %v2098, %v2647
      %v2693 = vmul.f32 %v2099, %v2644
      %v2694 = vmul.f32 %v2100, %v2647
      %v2695 = vmul.f32 %v2101, %v2644
      %v2696 = vmul.f32 %v2102, %v2647
      %v2697 = vmul.f32 %v2103, %v2644
      %v2698 = vmul.f32 %v2104, %v2647
      %v2699 = vmul.f32 %v2105, %v2644
      %v2700 = vmul.f32 %v2106, %v2647
      %v2701 = vmul.f32 %v2107, %v2644
      %v2702 = vmul.f32 %v2108, %v2647
      %v2703 = vmul.f32 %v2109, %v2644
      %v2704 = vmul.f32 %v2110, %v2647
      %v2705 = vmul.f32 %v2111, %v2644
      %v2706 = vmul.f32 %v2112, %v2647
      %v2707 = vmul.f32 %v2113, %v2644
      %v2708 = vmul.f32 %v2114, %v2647
      %v2709 = vmul.f32 %v2115, %v2644
      %v2710 = vmul.f32 %v2116, %v2647
      %v2711 = vmul.f32 %v2117, %v2644
      %v2712 = vmul.f32 %v2118, %v2647
      %v2713 = vadd.f32 %v2649, %v2650
      %v2714 = vrot.slane %v2713, 4
      %v2715 = vadd.f32 %v2713, %v2714
      %v2716 = vrot.slane %v2715, 2
      %v2717 = vadd.f32 %v2715, %v2716
      %v2718 = vrot.slane %v2717, 1
      %v2719 = vadd.f32 %v2717, %v2718
      %v2720 = vadd.f32 %v2651, %v2652
      %v2721 = vrot.slane %v2720, 4
      %v2722 = vadd.f32 %v2720, %v2721
      %v2723 = vrot.slane %v2722, 2
      %v2724 = vadd.f32 %v2722, %v2723
      %v2725 = vrot.slane %v2724, 1
      %v2726 = vadd.f32 %v2724, %v2725
      %v2727 = vadd.f32 %v2653, %v2654
      %v2728 = vrot.slane %v2727, 4
      %v2729 = vadd.f32 %v2727, %v2728
      %v2730 = vrot.slane %v2729, 2
      %v2731 = vadd.f32 %v2729, %v2730
      %v2732 = vrot.slane %v2731, 1
      %v2733 = vadd.f32 %v2731, %v2732
      %v2734 = vadd.f32 %v2655, %v2656
      %v2735 = vrot.slane %v2734, 4
      %v2736 = vadd.f32 %v2734, %v2735
      %v2737 = vrot.slane %v2736, 2
      %v2738 = vadd.f32 %v2736, %v2737
      %v2739 = vrot.slane %v2738, 1
      %v2740 = vadd.f32 %v2738, %v2739
      %v2741 = vadd.f32 %v2657, %v2658
      %v2742 = vrot.slane %v2741, 4
      %v2743 = vadd.f32 %v2741, %v2742
      %v2744 = vrot.slane %v2743, 2
      %v2745 = vadd.f32 %v2743, %v2744
      %v2746 = vrot.slane %v2745, 1
      %v2747 = vadd.f32 %v2745, %v2746
      %v2748 = vadd.f32 %v2659, %v2660
      %v2749 = vrot.slane %v2748, 4
      %v2750 = vadd.f32 %v2748, %v2749
      %v2751 = vrot.slane %v2750, 2
      %v2752 = vadd.f32 %v2750, %v2751
      %v2753 = vrot.slane %v2752, 1
      %v2754 = vadd.f32 %v2752, %v2753
      %v2755 = vadd.f32 %v2661, %v2662
      %v2756 = vrot.slane %v2755, 4
      %v2757 = vadd.f32 %v2755, %v2756
      %v2758 = vrot.slane %v2757, 2
      %v2759 = vadd.f32 %v2757, %v2758
      %v2760 = vrot.slane %v2759, 1
      %v2761 = vadd.f32 %v2759, %v2760
      %v2762 = vadd.f32 %v2663, %v2664
      %v2763 = vrot.slane %v2762, 4
      %v2764 = vadd.f32 %v2762, %v2763
      %v2765 = vrot.slane %v2764, 2
      %v2766 = vadd.f32 %v2764, %v2765
      %v2767 = vrot.slane %v2766, 1
      %v2768 = vadd.f32 %v2766, %v2767
      %v2769 = vadd.f32 %v2665, %v2666
      %v2770 = vrot.slane %v2769, 4
      %v2771 = vadd.f32 %v2769, %v2770
      %v2772 = vrot.slane %v2771, 2
      %v2773 = vadd.f32 %v2771, %v2772
      %v2774 = vrot.slane %v2773, 1
      %v2775 = vadd.f32 %v2773, %v2774
      %v2776 = vadd.f32 %v2667, %v2668
      %v2777 = vrot.slane %v2776, 4
      %v2778 = vadd.f32 %v2776, %v2777
      %v2779 = vrot.slane %v2778, 2
      %v2780 = vadd.f32 %v2778, %v2779
      %v2781 = vrot.slane %v2780, 1
      %v2782 = vadd.f32 %v2780, %v2781
      %v2783 = vadd.f32 %v2669, %v2670
      %v2784 = vrot.slane %v2783, 4
      %v2785 = vadd.f32 %v2783, %v2784
      %v2786 = vrot.slane %v2785, 2
      %v2787 = vadd.f32 %v2785, %v2786
      %v2788 = vrot.slane %v2787, 1
      %v2789 = vadd.f32 %v2787, %v2788
      %v2790 = vadd.f32 %v2671, %v2672
      %v2791 = vrot.slane %v2790, 4
      %v2792 = vadd.f32 %v2790, %v2791
      %v2793 = vrot.slane %v2792, 2
      %v2794 = vadd.f32 %v2792, %v2793
      %v2795 = vrot.slane %v2794, 1
      %v2796 = vadd.f32 %v2794, %v2795
      %v2797 = vadd.f32 %v2673, %v2674
      %v2798 = vrot.slane %v2797, 4
      %v2799 = vadd.f32 %v2797, %v2798
      %v2800 = vrot.slane %v2799, 2
      %v2801 = vadd.f32 %v2799, %v2800
      %v2802 = vrot.slane %v2801, 1
      %v2803 = vadd.f32 %v2801, %v2802
      %v2804 = vadd.f32 %v2675, %v2676
      %v2805 = vrot.slane %v2804, 4
      %v2806 = vadd.f32 %v2804, %v2805
      %v2807 = vrot.slane %v2806, 2
      %v2808 = vadd.f32 %v2806, %v2807
      %v2809 = vrot.slane %v2808, 1
      %v2810 = vadd.f32 %v2808, %v2809
      %v2811 = vadd.f32 %v2677, %v2678
      %v2812 = vrot.slane %v2811, 4
      %v2813 = vadd.f32 %v2811, %v2812
      %v2814 = vrot.slane %v2813, 2
      %v2815 = vadd.f32 %v2813, %v2814
      %v2816 = vrot.slane %v2815, 1
      %v2817 = vadd.f32 %v2815, %v2816
      %v2818 = vadd.f32 %v2679, %v2680
      %v2819 = vrot.slane %v2818, 4
      %v2820 = vadd.f32 %v2818, %v2819
      %v2821 = vrot.slane %v2820, 2
      %v2822 = vadd.f32 %v2820, %v2821
      %v2823 = vrot.slane %v2822, 1
      %v2824 = vadd.f32 %v2822, %v2823
      %v2825 = vadd.f32 %v2681, %v2682
      %v2826 = vrot.slane %v2825, 4
      %v2827 = vadd.f32 %v2825, %v2826
      %v2828 = vrot.slane %v2827, 2
      %v2829 = vadd.f32 %v2827, %v2828
      %v2830 = vrot.slane %v2829, 1
      %v2831 = vadd.f32 %v2829, %v2830
      %v2832 = vadd.f32 %v2683, %v2684
      %v2833 = vrot.slane %v2832, 4
      %v2834 = vadd.f32 %v2832, %v2833
      %v2835 = vrot.slane %v2834, 2
      %v2836 = vadd.f32 %v2834, %v2835
      %v2837 = vrot.slane %v2836, 1
      %v2838 = vadd.f32 %v2836, %v2837
      %v2839 = vadd.f32 %v2685, %v2686
      %v2840 = vrot.slane %v2839, 4
      %v2841 = vadd.f32 %v2839, %v2840
      %v2842 = vrot.slane %v2841, 2
      %v2843 = vadd.f32 %v2841, %v2842
      %v2844 = vrot.slane %v2843, 1
      %v2845 = vadd.f32 %v2843, %v2844
      %v2846 = vadd.f32 %v2687, %v2688
      %v2847 = vrot.slane %v2846, 4
      %v2848 = vadd.f32 %v2846, %v2847
      %v2849 = vrot.slane %v2848, 2
      %v2850 = vadd.f32 %v2848, %v2849
      %v2851 = vrot.slane %v2850, 1
      %v2852 = vadd.f32 %v2850, %v2851
      %v2853 = vadd.f32 %v2689, %v2690
      %v2854 = vrot.slane %v2853, 4
      %v2855 = vadd.f32 %v2853, %v2854
      %v2856 = vrot.slane %v2855, 2
      %v2857 = vadd.f32 %v2855, %v2856
      %v2858 = vrot.slane %v2857, 1
      %v2859 = vadd.f32 %v2857, %v2858
      %v2860 = vadd.f32 %v2691, %v2692
      %v2861 = vrot.slane %v2860, 4
      %v2862 = vadd.f32 %v2860, %v2861
      %v2863 = vrot.slane %v2862, 2
      %v2864 = vadd.f32 %v2862, %v2863
      %v2865 = vrot.slane %v2864, 1
      %v2866 = vadd.f32 %v2864, %v2865
      %v2867 = vadd.f32 %v2693, %v2694
      %v2868 = vrot.slane %v2867, 4
      %v2869 = vadd.f32 %v2867, %v2868
      %v2870 = vrot.slane %v2869, 2
      %v2871 = vadd.f32 %v2869, %v2870
      %v2872 = vrot.slane %v2871, 1
      %v2873 = vadd.f32 %v2871, %v2872
      %v2874 = vadd.f32 %v2695, %v2696
      %v2875 = vrot.slane %v2874, 4
      %v2876 = vadd.f32 %v2874, %v2875
      %v2877 = vrot.slane %v2876, 2
      %v2878 = vadd.f32 %v2876, %v2877
      %v2879 = vrot.slane %v2878, 1
      %v2880 = vadd.f32 %v2878, %v2879
      %v2881 = vadd.f32 %v2697, %v2698
      %v2882 = vrot.slane %v2881, 4
      %v2883 = vadd.f32 %v2881, %v2882
      %v2884 = vrot.slane %v2883, 2
      %v2885 = vadd.f32 %v2883, %v2884
      %v2886 = vrot.slane %v2885, 1
      %v2887 = vadd.f32 %v2885, %v2886
      %v2888 = vadd.f32 %v2699, %v2700
      %v2889 = vrot.slane %v2888, 4
      %v2890 = vadd.f32 %v2888, %v2889
      %v2891 = vrot.slane %v2890, 2
      %v2892 = vadd.f32 %v2890, %v2891
      %v2893 = vrot.slane %v2892, 1
      %v2894 = vadd.f32 %v2892, %v2893
      %v2895 = vadd.f32 %v2701, %v2702
      %v2896 = vrot.slane %v2895, 4
      %v2897 = vadd.f32 %v2895, %v2896
      %v2898 = vrot.slane %v2897, 2
      %v2899 = vadd.f32 %v2897, %v2898
      %v2900 = vrot.slane %v2899, 1
      %v2901 = vadd.f32 %v2899, %v2900
      %v2902 = vadd.f32 %v2703, %v2704
      %v2903 = vrot.slane %v2902, 4
      %v2904 = vadd.f32 %v2902, %v2903
      %v2905 = vrot.slane %v2904, 2
      %v2906 = vadd.f32 %v2904, %v2905
      %v2907 = vrot.slane %v2906, 1
      %v2908 = vadd.f32 %v2906, %v2907
      %v2909 = vadd.f32 %v2705, %v2706
      %v2910 = vrot.slane %v2909, 4
      %v2911 = vadd.f32 %v2909, %v2910
      %v2912 = vrot.slane %v2911, 2
      %v2913 = vadd.f32 %v2911, %v2912
      %v2914 = vrot.slane %v2913, 1
      %v2915 = vadd.f32 %v2913, %v2914
      %v2916 = vadd.f32 %v2707, %v2708
      %v2917 = vrot.slane %v2916, 4
      %v2918 = vadd.f32 %v2916, %v2917
      %v2919 = vrot.slane %v2918, 2
      %v2920 = vadd.f32 %v2918, %v2919
      %v2921 = vrot.slane %v2920, 1
      %v2922 = vadd.f32 %v2920, %v2921
      %v2923 = vadd.f32 %v2709, %v2710
      %v2924 = vrot.slane %v2923, 4
      %v2925 = vadd.f32 %v2923, %v2924
      %v2926 = vrot.slane %v2925, 2
      %v2927 = vadd.f32 %v2925, %v2926
      %v2928 = vrot.slane %v2927, 1
      %v2929 = vadd.f32 %v2927, %v2928
      %v2930 = vadd.f32 %v2711, %v2712
      %v2931 = vrot.slane %v2930, 4
      %v2932 = vadd.f32 %v2930, %v2931
      %v2933 = vrot.slane %v2932, 2
      %v2934 = vadd.f32 %v2932, %v2933
      %v2935 = vrot.slane %v2934, 1
      %v2936 = vadd.f32 %v2934, %v2935
      %v2969 = vsel %vm2459, %v2726, %v2719
      %v2970 = vsel %vm2461, %v2733, %v2969
      %v2971 = vsel %vm2463, %v2740, %v2970
      %v2972 = vsel %vm2465, %v2747, %v2971
      %v2973 = vsel %vm2467, %v2754, %v2972
      %v2974 = vsel %vm2469, %v2761, %v2973
      %v2975 = vsel %vm2471, %v2768, %v2974
      %v2976 = vsel %vm2459, %v2782, %v2775
      %v2977 = vsel %vm2461, %v2789, %v2976
      %v2978 = vsel %vm2463, %v2796, %v2977
      %v2979 = vsel %vm2465, %v2803, %v2978
      %v2980 = vsel %vm2467, %v2810, %v2979
      %v2981 = vsel %vm2469, %v2817, %v2980
      %v2982 = vsel %vm2471, %v2824, %v2981
      %v2983 = vsel %vm2459, %v2838, %v2831
      %v2984 = vsel %vm2461, %v2845, %v2983
      %v2985 = vsel %vm2463, %v2852, %v2984
      %v2986 = vsel %vm2465, %v2859, %v2985
      %v2987 = vsel %vm2467, %v2866, %v2986
      %v2988 = vsel %vm2469, %v2873, %v2987
      %v2989 = vsel %vm2471, %v2880, %v2988
      %v2990 = vsel %vm2459, %v2894, %v2887
      %v2991 = vsel %vm2461, %v2901, %v2990
      %v2992 = vsel %vm2463, %v2908, %v2991
      %v2993 = vsel %vm2465, %v2915, %v2992
      %v2994 = vsel %vm2467, %v2922, %v2993
      %v2995 = vsel %vm2469, %v2929, %v2994
      %v2996 = vsel %vm2471, %v2936, %v2995
      %3001 = vmatpush.msra.mxu0 %v2422
      %3002 = vmatpush.msra.mxu0 %v2421
      %3003 = vmatpush.msra.mxu0 %v2420
      %3004 = vmatpush.msra.mxu0 %v2419
      %3005 = vmatpush.msra.mxu0 %v2418
      %3006 = vmatpush.msra.mxu0 %v2417
      %3007 = vmatpush.msra.mxu0 %v2416
      %3008 = vmatpush.msra.mxu0 %v2415
      %3009 = vmatpush.msra.mxu0 %v2414
      %3010 = vmatpush.msra.mxu0 %v2413
      %3011 = vmatpush.msra.mxu0 %v2412
      %3012 = vmatpush.msra.mxu0 %v2411
      %3013 = vmatpush.msra.mxu0 %v2410
      %3014 = vmatpush.msra.mxu0 %v2409
      %3015 = vmatpush.msra.mxu0 %v2408
      %3016 = vmatpush.msra.mxu0 %v2407
      %3017 = vmatmul.f32.gmra.mxu0 %v2975
      %v3018 = vpop.f32.mrf.mxu0
      %v3019 = vadd.f32 %v2425, %v3018
      %3020 = vmatmul.f32.gmra.mxu0 %v2982
      %v3021 = vpop.f32.mrf.mxu0
      %v3022 = vadd.f32 %v2425, %v3021
      %3023 = vmatmul.f32.gmra.mxu0 %v2989
      %v3024 = vpop.f32.mrf.mxu0
      %v3025 = vadd.f32 %v2425, %v3024
      %3026 = vmatmul.f32.gmra.mxu0 %v2996
      %v3027 = vpop.f32.mrf.mxu0
      %v3028 = vadd.f32 %v2425, %v3027
      %3029 = vdwg.mxu0
      %v3030 = vmax.f32 %v3019, 0.0
      %v3031 = vmax.f32 %v3022, 0.0
      %v3032 = vmax.f32 %v3025, 0.0
      %v3033 = vmax.f32 %v3028, 0.0
      %v3034 = vand.u32 2147483647, %v3019
      %v3035 = vand.u32 2147483647, %v3022
      %v3036 = vand.u32 2147483647, %v3025
      %v3037 = vand.u32 2147483647, %v3028
      %v3038 = vsub.f32 0.0, %v3034
      %v3039 = vsub.f32 0.0, %v3035
      %v3040 = vsub.f32 0.0, %v3036
      %v3041 = vsub.f32 0.0, %v3037
      %v3042 = vmul.f32 %v3038, 1.442695
      %v3043 = vpow.pop %v3042
      %v3044 = vmul.f32 %v3039, 1.442695
      %v3045 = vpow.pop %v3044
      %v3046 = vmul.f32 %v3040, 1.442695
      %v3047 = vpow.pop %v3046
      %v3048 = vmul.f32 %v3041, 1.442695
      %v3049 = vpow.pop %v3048
      %v3050 = vadd.f32 %v3043, 1.0
      %v3051 = vadd.f32 %v3045, 1.0
      %v3052 = vadd.f32 %v3047, 1.0
      %v3053 = vadd.f32 %v3049, 1.0
      %v3054 = vlog2.pop %v3050
      %v3055 = vmul.f32 %v3054, 0.6931472
      %v3056 = vlog2.pop %v3051
      %v3057 = vmul.f32 %v3056, 0.6931472
      %v3058 = vlog2.pop %v3052
      %v3059 = vmul.f32 %v3058, 0.6931472
      %v3060 = vlog2.pop %v3053
      %v3061 = vmul.f32 %v3060, 0.6931472
      %v3062 = vadd.f32 %v3030, %v3055
      %v3063 = vadd.f32 %v3031, %v3057
      %v3064 = vadd.f32 %v3032, %v3059
      %v3065 = vadd.f32 %v3033, %v3061
      %v3066 = vsub.f32 %v3062, 0.6931472
      %v3067 = vsub.f32 %v3063, 0.6931472
      %v3068 = vsub.f32 %v3064, 0.6931472
      %v3069 = vsub.f32 %v3065, 0.6931472
      %3070 = vmatpush.msra.mxu0 %v2582
      %3071 = vmatpush.msra.mxu0 %v2581
      %3072 = vmatpush.msra.mxu0 %v2580
      %3073 = vmatpush.msra.mxu0 %v2579
      %3074 = vmatpush.msra.mxu0 %v2578
      %3075 = vmatpush.msra.mxu0 %v2577
      %3076 = vmatpush.msra.mxu0 %v2576
      %3077 = vmatpush.msra.mxu0 %v2575
      %3078 = vmatpush.msra.mxu0 %v2574
      %3079 = vmatpush.msra.mxu0 %v2573
      %3080 = vmatpush.msra.mxu0 %v2572
      %3081 = vmatpush.msra.mxu0 %v2571
      %3082 = vmatpush.msra.mxu0 %v2570
      %3083 = vmatpush.msra.mxu0 %v2569
      %3084 = vmatpush.msra.mxu0 %v2568
      %3085 = vmatpush.msra.mxu0 %v2567
      %3086 = vmatmul.f32.gmra.mxu0 %v3066
      %v3087 = vpop.f32.mrf.mxu0
      %v3088 = vadd.f32 %v2585, %v3087
      %3089 = vmatmul.f32.gmra.mxu0 %v3067
      %v3090 = vpop.f32.mrf.mxu0
      %v3091 = vadd.f32 %v2585, %v3090
      %3092 = vmatmul.f32.gmra.mxu0 %v3068
      %v3093 = vpop.f32.mrf.mxu0
      %v3094 = vadd.f32 %v2585, %v3093
      %3095 = vmatmul.f32.gmra.mxu0 %v3069
      %v3096 = vpop.f32.mrf.mxu0
      %v3097 = vadd.f32 %v2585, %v3096
      %3098 = vdwg.mxu0
      %v3099 = vadd.f32 %v2616, %v3088
      %v3100 = vadd.f32 %v2617, %v3091
      %v3101 = vadd.f32 %v2618, %v3094
      %v3102 = vadd.f32 %v2619, %v3097
      %3103 = vmatpush.msra.mxu0 %v2025
      %3104 = vmatpush.msra.mxu0 %v2024
      %3105 = vmatpush.msra.mxu0 %v2023
      %3106 = vmatpush.msra.mxu0 %v2022
      %3107 = vmatpush.msra.mxu0 %v2021
      %3108 = vmatpush.msra.mxu0 %v2020
      %3109 = vmatpush.msra.mxu0 %v2019
      %3110 = vmatpush.msra.mxu0 %v2018
      %3111 = vmatpush.msra.mxu0 %v2017
      %3112 = vmatpush.msra.mxu0 %v2016
      %3113 = vmatpush.msra.mxu0 %v2015
      %3114 = vmatpush.msra.mxu0 %v2014
      %3115 = vmatpush.msra.mxu0 %v2013
      %3116 = vmatpush.msra.mxu0 %v2012
      %3117 = vmatpush.msra.mxu0 %v2011
      %3118 = vmatpush.msra.mxu0 %v2010
      %3119 = vmatmul.f32.gmra.mxu0 %v3099
      %v3120 = vpop.f32.mrf.mxu0
      %v3121 = vadd.f32 0.0, %v3120
      %3122 = vmatmul.f32.gmra.mxu0 %v3100
      %v3123 = vpop.f32.mrf.mxu0
      %v3124 = vadd.f32 0.0, %v3123
      %3125 = vmatmul.f32.gmra.mxu0 %v3101
      %v3126 = vpop.f32.mrf.mxu0
      %v3127 = vadd.f32 0.0, %v3126
      %3128 = vmatmul.f32.gmra.mxu0 %v3102
      %v3129 = vpop.f32.mrf.mxu0
      %v3130 = vadd.f32 0.0, %v3129
      %3131 = vdwg.mxu0
      %v3132 = vmul.f32 %v2055, %v3121
      %v3133 = vmul.f32 %v2056, %v3124
      %v3134 = vmul.f32 %v2057, %v3121
      %v3135 = vmul.f32 %v2058, %v3124
      %v3136 = vmul.f32 %v2059, %v3121
      %v3137 = vmul.f32 %v2060, %v3124
      %v3138 = vmul.f32 %v2061, %v3121
      %v3139 = vmul.f32 %v2062, %v3124
      %v3140 = vmul.f32 %v2063, %v3121
      %v3141 = vmul.f32 %v2064, %v3124
      %v3142 = vmul.f32 %v2065, %v3121
      %v3143 = vmul.f32 %v2066, %v3124
      %v3144 = vmul.f32 %v2067, %v3121
      %v3145 = vmul.f32 %v2068, %v3124
      %v3146 = vmul.f32 %v2069, %v3121
      %v3147 = vmul.f32 %v2070, %v3124
      %v3148 = vmul.f32 %v2071, %v3121
      %v3149 = vmul.f32 %v2072, %v3124
      %v3150 = vmul.f32 %v2073, %v3121
      %v3151 = vmul.f32 %v2074, %v3124
      %v3152 = vmul.f32 %v2075, %v3121
      %v3153 = vmul.f32 %v2076, %v3124
      %v3154 = vmul.f32 %v2077, %v3121
      %v3155 = vmul.f32 %v2078, %v3124
      %v3156 = vmul.f32 %v2079, %v3121
      %v3157 = vmul.f32 %v2080, %v3124
      %v3158 = vmul.f32 %v2081, %v3121
      %v3159 = vmul.f32 %v2082, %v3124
      %v3160 = vmul.f32 %v2083, %v3121
      %v3161 = vmul.f32 %v2084, %v3124
      %v3162 = vmul.f32 %v2085, %v3121
      %v3163 = vmul.f32 %v2086, %v3124
      %v3164 = vmul.f32 %v2087, %v3127
      %v3165 = vmul.f32 %v2088, %v3130
      %v3166 = vmul.f32 %v2089, %v3127
      %v3167 = vmul.f32 %v2090, %v3130
      %v3168 = vmul.f32 %v2091, %v3127
      %v3169 = vmul.f32 %v2092, %v3130
      %v3170 = vmul.f32 %v2093, %v3127
      %v3171 = vmul.f32 %v2094, %v3130
      %v3172 = vmul.f32 %v2095, %v3127
      %v3173 = vmul.f32 %v2096, %v3130
      %v3174 = vmul.f32 %v2097, %v3127
      %v3175 = vmul.f32 %v2098, %v3130
      %v3176 = vmul.f32 %v2099, %v3127
      %v3177 = vmul.f32 %v2100, %v3130
      %v3178 = vmul.f32 %v2101, %v3127
      %v3179 = vmul.f32 %v2102, %v3130
      %v3180 = vmul.f32 %v2103, %v3127
      %v3181 = vmul.f32 %v2104, %v3130
      %v3182 = vmul.f32 %v2105, %v3127
      %v3183 = vmul.f32 %v2106, %v3130
      %v3184 = vmul.f32 %v2107, %v3127
      %v3185 = vmul.f32 %v2108, %v3130
      %v3186 = vmul.f32 %v2109, %v3127
      %v3187 = vmul.f32 %v2110, %v3130
      %v3188 = vmul.f32 %v2111, %v3127
      %v3189 = vmul.f32 %v2112, %v3130
      %v3190 = vmul.f32 %v2113, %v3127
      %v3191 = vmul.f32 %v2114, %v3130
      %v3192 = vmul.f32 %v2115, %v3127
      %v3193 = vmul.f32 %v2116, %v3130
      %v3194 = vmul.f32 %v2117, %v3127
      %v3195 = vmul.f32 %v2118, %v3130
      %v3196 = vadd.f32 %v3132, %v3133
      %v3197 = vrot.slane %v3196, 4
      %v3198 = vadd.f32 %v3196, %v3197
      %v3199 = vrot.slane %v3198, 2
      %v3200 = vadd.f32 %v3198, %v3199
      %v3201 = vrot.slane %v3200, 1
      %v3202 = vadd.f32 %v3200, %v3201
      %v3203 = vadd.f32 %v3134, %v3135
      %v3204 = vrot.slane %v3203, 4
      %v3205 = vadd.f32 %v3203, %v3204
      %v3206 = vrot.slane %v3205, 2
      %v3207 = vadd.f32 %v3205, %v3206
      %v3208 = vrot.slane %v3207, 1
      %v3209 = vadd.f32 %v3207, %v3208
      %v3210 = vadd.f32 %v3136, %v3137
      %v3211 = vrot.slane %v3210, 4
      %v3212 = vadd.f32 %v3210, %v3211
      %v3213 = vrot.slane %v3212, 2
      %v3214 = vadd.f32 %v3212, %v3213
      %v3215 = vrot.slane %v3214, 1
      %v3216 = vadd.f32 %v3214, %v3215
      %v3217 = vadd.f32 %v3138, %v3139
      %v3218 = vrot.slane %v3217, 4
      %v3219 = vadd.f32 %v3217, %v3218
      %v3220 = vrot.slane %v3219, 2
      %v3221 = vadd.f32 %v3219, %v3220
      %v3222 = vrot.slane %v3221, 1
      %v3223 = vadd.f32 %v3221, %v3222
      %v3224 = vadd.f32 %v3140, %v3141
      %v3225 = vrot.slane %v3224, 4
      %v3226 = vadd.f32 %v3224, %v3225
      %v3227 = vrot.slane %v3226, 2
      %v3228 = vadd.f32 %v3226, %v3227
      %v3229 = vrot.slane %v3228, 1
      %v3230 = vadd.f32 %v3228, %v3229
      %v3231 = vadd.f32 %v3142, %v3143
      %v3232 = vrot.slane %v3231, 4
      %v3233 = vadd.f32 %v3231, %v3232
      %v3234 = vrot.slane %v3233, 2
      %v3235 = vadd.f32 %v3233, %v3234
      %v3236 = vrot.slane %v3235, 1
      %v3237 = vadd.f32 %v3235, %v3236
      %v3238 = vadd.f32 %v3144, %v3145
      %v3239 = vrot.slane %v3238, 4
      %v3240 = vadd.f32 %v3238, %v3239
      %v3241 = vrot.slane %v3240, 2
      %v3242 = vadd.f32 %v3240, %v3241
      %v3243 = vrot.slane %v3242, 1
      %v3244 = vadd.f32 %v3242, %v3243
      %v3245 = vadd.f32 %v3146, %v3147
      %v3246 = vrot.slane %v3245, 4
      %v3247 = vadd.f32 %v3245, %v3246
      %v3248 = vrot.slane %v3247, 2
      %v3249 = vadd.f32 %v3247, %v3248
      %v3250 = vrot.slane %v3249, 1
      %v3251 = vadd.f32 %v3249, %v3250
      %v3252 = vadd.f32 %v3148, %v3149
      %v3253 = vrot.slane %v3252, 4
      %v3254 = vadd.f32 %v3252, %v3253
      %v3255 = vrot.slane %v3254, 2
      %v3256 = vadd.f32 %v3254, %v3255
      %v3257 = vrot.slane %v3256, 1
      %v3258 = vadd.f32 %v3256, %v3257
      %v3259 = vadd.f32 %v3150, %v3151
      %v3260 = vrot.slane %v3259, 4
      %v3261 = vadd.f32 %v3259, %v3260
      %v3262 = vrot.slane %v3261, 2
      %v3263 = vadd.f32 %v3261, %v3262
      %v3264 = vrot.slane %v3263, 1
      %v3265 = vadd.f32 %v3263, %v3264
      %v3266 = vadd.f32 %v3152, %v3153
      %v3267 = vrot.slane %v3266, 4
      %v3268 = vadd.f32 %v3266, %v3267
      %v3269 = vrot.slane %v3268, 2
      %v3270 = vadd.f32 %v3268, %v3269
      %v3271 = vrot.slane %v3270, 1
      %v3272 = vadd.f32 %v3270, %v3271
      %v3273 = vadd.f32 %v3154, %v3155
      %v3274 = vrot.slane %v3273, 4
      %v3275 = vadd.f32 %v3273, %v3274
      %v3276 = vrot.slane %v3275, 2
      %v3277 = vadd.f32 %v3275, %v3276
      %v3278 = vrot.slane %v3277, 1
      %v3279 = vadd.f32 %v3277, %v3278
      %v3280 = vadd.f32 %v3156, %v3157
      %v3281 = vrot.slane %v3280, 4
      %v3282 = vadd.f32 %v3280, %v3281
      %v3283 = vrot.slane %v3282, 2
      %v3284 = vadd.f32 %v3282, %v3283
      %v3285 = vrot.slane %v3284, 1
      %v3286 = vadd.f32 %v3284, %v3285
      %v3287 = vadd.f32 %v3158, %v3159
      %v3288 = vrot.slane %v3287, 4
      %v3289 = vadd.f32 %v3287, %v3288
      %v3290 = vrot.slane %v3289, 2
      %v3291 = vadd.f32 %v3289, %v3290
      %v3292 = vrot.slane %v3291, 1
      %v3293 = vadd.f32 %v3291, %v3292
      %v3294 = vadd.f32 %v3160, %v3161
      %v3295 = vrot.slane %v3294, 4
      %v3296 = vadd.f32 %v3294, %v3295
      %v3297 = vrot.slane %v3296, 2
      %v3298 = vadd.f32 %v3296, %v3297
      %v3299 = vrot.slane %v3298, 1
      %v3300 = vadd.f32 %v3298, %v3299
      %v3301 = vadd.f32 %v3162, %v3163
      %v3302 = vrot.slane %v3301, 4
      %v3303 = vadd.f32 %v3301, %v3302
      %v3304 = vrot.slane %v3303, 2
      %v3305 = vadd.f32 %v3303, %v3304
      %v3306 = vrot.slane %v3305, 1
      %v3307 = vadd.f32 %v3305, %v3306
      %v3308 = vadd.f32 %v3164, %v3165
      %v3309 = vrot.slane %v3308, 4
      %v3310 = vadd.f32 %v3308, %v3309
      %v3311 = vrot.slane %v3310, 2
      %v3312 = vadd.f32 %v3310, %v3311
      %v3313 = vrot.slane %v3312, 1
      %v3314 = vadd.f32 %v3312, %v3313
      %v3315 = vadd.f32 %v3166, %v3167
      %v3316 = vrot.slane %v3315, 4
      %v3317 = vadd.f32 %v3315, %v3316
      %v3318 = vrot.slane %v3317, 2
      %v3319 = vadd.f32 %v3317, %v3318
      %v3320 = vrot.slane %v3319, 1
      %v3321 = vadd.f32 %v3319, %v3320
      %v3322 = vadd.f32 %v3168, %v3169
      %v3323 = vrot.slane %v3322, 4
      %v3324 = vadd.f32 %v3322, %v3323
      %v3325 = vrot.slane %v3324, 2
      %v3326 = vadd.f32 %v3324, %v3325
      %v3327 = vrot.slane %v3326, 1
      %v3328 = vadd.f32 %v3326, %v3327
      %v3329 = vadd.f32 %v3170, %v3171
      %v3330 = vrot.slane %v3329, 4
      %v3331 = vadd.f32 %v3329, %v3330
      %v3332 = vrot.slane %v3331, 2
      %v3333 = vadd.f32 %v3331, %v3332
      %v3334 = vrot.slane %v3333, 1
      %v3335 = vadd.f32 %v3333, %v3334
      %v3336 = vadd.f32 %v3172, %v3173
      %v3337 = vrot.slane %v3336, 4
      %v3338 = vadd.f32 %v3336, %v3337
      %v3339 = vrot.slane %v3338, 2
      %v3340 = vadd.f32 %v3338, %v3339
      %v3341 = vrot.slane %v3340, 1
      %v3342 = vadd.f32 %v3340, %v3341
      %v3343 = vadd.f32 %v3174, %v3175
      %v3344 = vrot.slane %v3343, 4
      %v3345 = vadd.f32 %v3343, %v3344
      %v3346 = vrot.slane %v3345, 2
      %v3347 = vadd.f32 %v3345, %v3346
      %v3348 = vrot.slane %v3347, 1
      %v3349 = vadd.f32 %v3347, %v3348
      %v3350 = vadd.f32 %v3176, %v3177
      %v3351 = vrot.slane %v3350, 4
      %v3352 = vadd.f32 %v3350, %v3351
      %v3353 = vrot.slane %v3352, 2
      %v3354 = vadd.f32 %v3352, %v3353
      %v3355 = vrot.slane %v3354, 1
      %v3356 = vadd.f32 %v3354, %v3355
      %v3357 = vadd.f32 %v3178, %v3179
      %v3358 = vrot.slane %v3357, 4
      %v3359 = vadd.f32 %v3357, %v3358
      %v3360 = vrot.slane %v3359, 2
      %v3361 = vadd.f32 %v3359, %v3360
      %v3362 = vrot.slane %v3361, 1
      %v3363 = vadd.f32 %v3361, %v3362
      %v3364 = vadd.f32 %v3180, %v3181
      %v3365 = vrot.slane %v3364, 4
      %v3366 = vadd.f32 %v3364, %v3365
      %v3367 = vrot.slane %v3366, 2
      %v3368 = vadd.f32 %v3366, %v3367
      %v3369 = vrot.slane %v3368, 1
      %v3370 = vadd.f32 %v3368, %v3369
      %v3371 = vadd.f32 %v3182, %v3183
      %v3372 = vrot.slane %v3371, 4
      %v3373 = vadd.f32 %v3371, %v3372
      %v3374 = vrot.slane %v3373, 2
      %v3375 = vadd.f32 %v3373, %v3374
      %v3376 = vrot.slane %v3375, 1
      %v3377 = vadd.f32 %v3375, %v3376
      %v3378 = vadd.f32 %v3184, %v3185
      %v3379 = vrot.slane %v3378, 4
      %v3380 = vadd.f32 %v3378, %v3379
      %v3381 = vrot.slane %v3380, 2
      %v3382 = vadd.f32 %v3380, %v3381
      %v3383 = vrot.slane %v3382, 1
      %v3384 = vadd.f32 %v3382, %v3383
      %v3385 = vadd.f32 %v3186, %v3187
      %v3386 = vrot.slane %v3385, 4
      %v3387 = vadd.f32 %v3385, %v3386
      %v3388 = vrot.slane %v3387, 2
      %v3389 = vadd.f32 %v3387, %v3388
      %v3390 = vrot.slane %v3389, 1
      %v3391 = vadd.f32 %v3389, %v3390
      %v3392 = vadd.f32 %v3188, %v3189
      %v3393 = vrot.slane %v3392, 4
      %v3394 = vadd.f32 %v3392, %v3393
      %v3395 = vrot.slane %v3394, 2
      %v3396 = vadd.f32 %v3394, %v3395
      %v3397 = vrot.slane %v3396, 1
      %v3398 = vadd.f32 %v3396, %v3397
      %v3399 = vadd.f32 %v3190, %v3191
      %v3400 = vrot.slane %v3399, 4
      %v3401 = vadd.f32 %v3399, %v3400
      %v3402 = vrot.slane %v3401, 2
      %v3403 = vadd.f32 %v3401, %v3402
      %v3404 = vrot.slane %v3403, 1
      %v3405 = vadd.f32 %v3403, %v3404
      %v3406 = vadd.f32 %v3192, %v3193
      %v3407 = vrot.slane %v3406, 4
      %v3408 = vadd.f32 %v3406, %v3407
      %v3409 = vrot.slane %v3408, 2
      %v3410 = vadd.f32 %v3408, %v3409
      %v3411 = vrot.slane %v3410, 1
      %v3412 = vadd.f32 %v3410, %v3411
      %v3413 = vadd.f32 %v3194, %v3195
      %v3414 = vrot.slane %v3413, 4
      %v3415 = vadd.f32 %v3413, %v3414
      %v3416 = vrot.slane %v3415, 2
      %v3417 = vadd.f32 %v3415, %v3416
      %v3418 = vrot.slane %v3417, 1
      %v3419 = vadd.f32 %v3417, %v3418
      %v3452 = vsel %vm2459, %v3209, %v3202
      %v3453 = vsel %vm2461, %v3216, %v3452
      %v3454 = vsel %vm2463, %v3223, %v3453
      %v3455 = vsel %vm2465, %v3230, %v3454
      %v3456 = vsel %vm2467, %v3237, %v3455
      %v3457 = vsel %vm2469, %v3244, %v3456
      %v3458 = vsel %vm2471, %v3251, %v3457
      %v3459 = vsel %vm2459, %v3265, %v3258
      %v3460 = vsel %vm2461, %v3272, %v3459
      %v3461 = vsel %vm2463, %v3279, %v3460
      %v3462 = vsel %vm2465, %v3286, %v3461
      %v3463 = vsel %vm2467, %v3293, %v3462
      %v3464 = vsel %vm2469, %v3300, %v3463
      %v3465 = vsel %vm2471, %v3307, %v3464
      %v3466 = vsel %vm2459, %v3321, %v3314
      %v3467 = vsel %vm2461, %v3328, %v3466
      %v3468 = vsel %vm2463, %v3335, %v3467
      %v3469 = vsel %vm2465, %v3342, %v3468
      %v3470 = vsel %vm2467, %v3349, %v3469
      %v3471 = vsel %vm2469, %v3356, %v3470
      %v3472 = vsel %vm2471, %v3363, %v3471
      %v3473 = vsel %vm2459, %v3377, %v3370
      %v3474 = vsel %vm2461, %v3384, %v3473
      %v3475 = vsel %vm2463, %v3391, %v3474
      %v3476 = vsel %vm2465, %v3398, %v3475
      %v3477 = vsel %vm2467, %v3405, %v3476
      %v3478 = vsel %vm2469, %v3412, %v3477
      %v3479 = vsel %vm2471, %v3419, %v3478
      %3484 = vmatpush.msra.mxu0 %v2422
      %3485 = vmatpush.msra.mxu0 %v2421
      %3486 = vmatpush.msra.mxu0 %v2420
      %3487 = vmatpush.msra.mxu0 %v2419
      %3488 = vmatpush.msra.mxu0 %v2418
      %3489 = vmatpush.msra.mxu0 %v2417
      %3490 = vmatpush.msra.mxu0 %v2416
      %3491 = vmatpush.msra.mxu0 %v2415
      %3492 = vmatpush.msra.mxu0 %v2414
      %3493 = vmatpush.msra.mxu0 %v2413
      %3494 = vmatpush.msra.mxu0 %v2412
      %3495 = vmatpush.msra.mxu0 %v2411
      %3496 = vmatpush.msra.mxu0 %v2410
      %3497 = vmatpush.msra.mxu0 %v2409
      %3498 = vmatpush.msra.mxu0 %v2408
      %3499 = vmatpush.msra.mxu0 %v2407
      %3500 = vmatmul.f32.gmra.mxu0 %v3458
      %v3501 = vpop.f32.mrf.mxu0
      %v3502 = vadd.f32 %v2425, %v3501
      %3503 = vmatmul.f32.gmra.mxu0 %v3465
      %v3504 = vpop.f32.mrf.mxu0
      %v3505 = vadd.f32 %v2425, %v3504
      %3506 = vmatmul.f32.gmra.mxu0 %v3472
      %v3507 = vpop.f32.mrf.mxu0
      %v3508 = vadd.f32 %v2425, %v3507
      %3509 = vmatmul.f32.gmra.mxu0 %v3479
      %v3510 = vpop.f32.mrf.mxu0
      %v3511 = vadd.f32 %v2425, %v3510
      %3512 = vdwg.mxu0
      %v3513 = vmax.f32 %v3502, 0.0
      %v3514 = vmax.f32 %v3505, 0.0
      %v3515 = vmax.f32 %v3508, 0.0
      %v3516 = vmax.f32 %v3511, 0.0
      %v3517 = vand.u32 2147483647, %v3502
      %v3518 = vand.u32 2147483647, %v3505
      %v3519 = vand.u32 2147483647, %v3508
      %v3520 = vand.u32 2147483647, %v3511
      %v3521 = vsub.f32 0.0, %v3517
      %v3522 = vsub.f32 0.0, %v3518
      %v3523 = vsub.f32 0.0, %v3519
      %v3524 = vsub.f32 0.0, %v3520
      %v3525 = vmul.f32 %v3521, 1.442695
      %v3526 = vpow.pop %v3525
      %v3527 = vmul.f32 %v3522, 1.442695
      %v3528 = vpow.pop %v3527
      %v3529 = vmul.f32 %v3523, 1.442695
      %v3530 = vpow.pop %v3529
      %v3531 = vmul.f32 %v3524, 1.442695
      %v3532 = vpow.pop %v3531
      %v3533 = vadd.f32 %v3526, 1.0
      %v3534 = vadd.f32 %v3528, 1.0
      %v3535 = vadd.f32 %v3530, 1.0
      %v3536 = vadd.f32 %v3532, 1.0
      %v3537 = vlog2.pop %v3533
      %v3538 = vmul.f32 %v3537, 0.6931472
      %v3539 = vlog2.pop %v3534
      %v3540 = vmul.f32 %v3539, 0.6931472
      %v3541 = vlog2.pop %v3535
      %v3542 = vmul.f32 %v3541, 0.6931472
      %v3543 = vlog2.pop %v3536
      %v3544 = vmul.f32 %v3543, 0.6931472
      %v3545 = vadd.f32 %v3513, %v3538
      %v3546 = vadd.f32 %v3514, %v3540
      %v3547 = vadd.f32 %v3515, %v3542
      %v3548 = vadd.f32 %v3516, %v3544
      %v3549 = vsub.f32 %v3545, 0.6931472
      %v3550 = vsub.f32 %v3546, 0.6931472
      %v3551 = vsub.f32 %v3547, 0.6931472
      %v3552 = vsub.f32 %v3548, 0.6931472
      %3553 = vmatpush.msra.mxu0 %v2582
      %3554 = vmatpush.msra.mxu0 %v2581
      %3555 = vmatpush.msra.mxu0 %v2580
      %3556 = vmatpush.msra.mxu0 %v2579
      %3557 = vmatpush.msra.mxu0 %v2578
      %3558 = vmatpush.msra.mxu0 %v2577
      %3559 = vmatpush.msra.mxu0 %v2576
      %3560 = vmatpush.msra.mxu0 %v2575
      %3561 = vmatpush.msra.mxu0 %v2574
      %3562 = vmatpush.msra.mxu0 %v2573
      %3563 = vmatpush.msra.mxu0 %v2572
      %3564 = vmatpush.msra.mxu0 %v2571
      %3565 = vmatpush.msra.mxu0 %v2570
      %3566 = vmatpush.msra.mxu0 %v2569
      %3567 = vmatpush.msra.mxu0 %v2568
      %3568 = vmatpush.msra.mxu0 %v2567
      %3569 = vmatmul.f32.gmra.mxu0 %v3549
      %v3570 = vpop.f32.mrf.mxu0
      %v3571 = vadd.f32 %v2585, %v3570
      %3572 = vmatmul.f32.gmra.mxu0 %v3550
      %v3573 = vpop.f32.mrf.mxu0
      %v3574 = vadd.f32 %v2585, %v3573
      %3575 = vmatmul.f32.gmra.mxu0 %v3551
      %v3576 = vpop.f32.mrf.mxu0
      %v3577 = vadd.f32 %v2585, %v3576
      %3578 = vmatmul.f32.gmra.mxu0 %v3552
      %v3579 = vpop.f32.mrf.mxu0
      %v3580 = vadd.f32 %v2585, %v3579
      %3581 = vdwg.mxu0
      %v3582 = vadd.f32 %v3099, %v3571
      %v3583 = vadd.f32 %v3100, %v3574
      %v3584 = vadd.f32 %v3101, %v3577
      %v3585 = vadd.f32 %v3102, %v3580
      %v3586 = vld [vmem:[%s11] sm:$0xff]
      %v3587 = vld [vmem:[%s11 + $0x8] sm:$0xff]
      %v3588 = vld [vmem:[%s11 + $0x10] sm:$0xff]
      %v3589 = vld [vmem:[%s11 + $0x18] sm:$0xff]
      %v3590 = vld [vmem:[%s11 + $0x20] sm:$0xff]
      %v3591 = vld [vmem:[%s11 + $0x28] sm:$0xff]
      %v3592 = vld [vmem:[%s11 + $0x30] sm:$0xff]
      %v3593 = vld [vmem:[%s11 + $0x38] sm:$0xff]
      %v3594 = vld [vmem:[%s11 + $0x40] sm:$0xff]
      %v3595 = vld [vmem:[%s11 + $0x48] sm:$0xff]
      %v3596 = vld [vmem:[%s11 + $0x50] sm:$0xff]
      %v3597 = vld [vmem:[%s11 + $0x58] sm:$0xff]
      %v3598 = vld [vmem:[%s11 + $0x60] sm:$0xff]
      %v3599 = vld [vmem:[%s11 + $0x68] sm:$0xff]
      %v3600 = vld [vmem:[%s11 + $0x70] sm:$0xff]
      %v3601 = vld [vmem:[%s11 + $0x78] sm:$0xff]
      %v3602 = vld [vmem:[%s12] sm:$0x1]
      %v3604 = vperm.slane %v3602, 0
      %3606 = vmatpush.msra.mxu0 %v3601
      %3607 = vmatpush.msra.mxu0 %v3600
      %3608 = vmatpush.msra.mxu0 %v3599
      %3609 = vmatpush.msra.mxu0 %v3598
      %3610 = vmatpush.msra.mxu0 %v3597
      %3611 = vmatpush.msra.mxu0 %v3596
      %3612 = vmatpush.msra.mxu0 %v3595
      %3613 = vmatpush.msra.mxu0 %v3594
      %3614 = vmatpush.msra.mxu0 %v3593
      %3615 = vmatpush.msra.mxu0 %v3592
      %3616 = vmatpush.msra.mxu0 %v3591
      %3617 = vmatpush.msra.mxu0 %v3590
      %3618 = vmatpush.msra.mxu0 %v3589
      %3619 = vmatpush.msra.mxu0 %v3588
      %3620 = vmatpush.msra.mxu0 %v3587
      %3621 = vmatpush.msra.mxu0 %v3586
      %3622 = vmatmul.f32.gmra.mxu0 %v3582
      %v3623 = vpop.f32.mrf.mxu0
      %v3624 = vadd.f32 %v3604, %v3623
      %3625 = vmatmul.f32.gmra.mxu0 %v3583
      %v3626 = vpop.f32.mrf.mxu0
      %v3627 = vadd.f32 %v3604, %v3626
      %3628 = vmatmul.f32.gmra.mxu0 %v3584
      %v3629 = vpop.f32.mrf.mxu0
      %v3630 = vadd.f32 %v3604, %v3629
      %3631 = vmatmul.f32.gmra.mxu0 %v3585
      %v3632 = vpop.f32.mrf.mxu0
      %v3633 = vadd.f32 %v3604, %v3632
      %3634 = vdwg.mxu0
      %v3635 = vmax.f32 %v3624, 0.0
      %v3636 = vmax.f32 %v3627, 0.0
      %v3637 = vmax.f32 %v3630, 0.0
      %v3638 = vmax.f32 %v3633, 0.0
      %v3639 = vand.u32 2147483647, %v3624
      %v3640 = vand.u32 2147483647, %v3627
      %v3641 = vand.u32 2147483647, %v3630
      %v3642 = vand.u32 2147483647, %v3633
      %v3643 = vsub.f32 0.0, %v3639
      %v3644 = vsub.f32 0.0, %v3640
      %v3645 = vsub.f32 0.0, %v3641
      %v3646 = vsub.f32 0.0, %v3642
      %v3647 = vmul.f32 %v3643, 1.442695
      %v3648 = vpow.pop %v3647
      %v3649 = vmul.f32 %v3644, 1.442695
      %v3650 = vpow.pop %v3649
      %v3651 = vmul.f32 %v3645, 1.442695
      %v3652 = vpow.pop %v3651
      %v3653 = vmul.f32 %v3646, 1.442695
      %v3654 = vpow.pop %v3653
      %v3655 = vadd.f32 %v3648, 1.0
      %v3656 = vadd.f32 %v3650, 1.0
      %v3657 = vadd.f32 %v3652, 1.0
      %v3658 = vadd.f32 %v3654, 1.0
      %v3659 = vlog2.pop %v3655
      %v3660 = vmul.f32 %v3659, 0.6931472
      %v3661 = vlog2.pop %v3656
      %v3662 = vmul.f32 %v3661, 0.6931472
      %v3663 = vlog2.pop %v3657
      %v3664 = vmul.f32 %v3663, 0.6931472
      %v3665 = vlog2.pop %v3658
      %v3666 = vmul.f32 %v3665, 0.6931472
      %v3667 = vadd.f32 %v3635, %v3660
      %v3668 = vadd.f32 %v3636, %v3662
      %v3669 = vadd.f32 %v3637, %v3664
      %v3670 = vadd.f32 %v3638, %v3666
      %v3671 = vsub.f32 %v3667, 0.6931472
      %v3672 = vsub.f32 %v3668, 0.6931472
      %v3673 = vsub.f32 %v3669, 0.6931472
      %v3674 = vsub.f32 %v3670, 0.6931472
      %v3675 = vld [vmem:[%s13] sm:$0xff]
      %v3676 = vld [vmem:[%s13 + $0x8] sm:$0xff]
      %v3677 = vld [vmem:[%s13 + $0x10] sm:$0xff]
      %v3678 = vld [vmem:[%s13 + $0x18] sm:$0xff]
      %v3679 = vld [vmem:[%s13 + $0x20] sm:$0xff]
      %v3680 = vld [vmem:[%s13 + $0x28] sm:$0xff]
      %v3681 = vld [vmem:[%s13 + $0x30] sm:$0xff]
      %v3682 = vld [vmem:[%s13 + $0x38] sm:$0xff]
      %v3683 = vld [vmem:[%s13 + $0x40] sm:$0xff]
      %v3684 = vld [vmem:[%s13 + $0x48] sm:$0xff]
      %v3685 = vld [vmem:[%s13 + $0x50] sm:$0xff]
      %v3686 = vld [vmem:[%s13 + $0x58] sm:$0xff]
      %v3687 = vld [vmem:[%s13 + $0x60] sm:$0xff]
      %v3688 = vld [vmem:[%s13 + $0x68] sm:$0xff]
      %v3689 = vld [vmem:[%s13 + $0x70] sm:$0xff]
      %v3690 = vld [vmem:[%s13 + $0x78] sm:$0xff]
      %v3691 = vld [vmem:[%s14] sm:$0x1]
      %v3693 = vperm.slane %v3691, 0
      %3695 = vmatpush.msra.mxu0 %v3690
      %3696 = vmatpush.msra.mxu0 %v3689
      %3697 = vmatpush.msra.mxu0 %v3688
      %3698 = vmatpush.msra.mxu0 %v3687
      %3699 = vmatpush.msra.mxu0 %v3686
      %3700 = vmatpush.msra.mxu0 %v3685
      %3701 = vmatpush.msra.mxu0 %v3684
      %3702 = vmatpush.msra.mxu0 %v3683
      %3703 = vmatpush.msra.mxu0 %v3682
      %3704 = vmatpush.msra.mxu0 %v3681
      %3705 = vmatpush.msra.mxu0 %v3680
      %3706 = vmatpush.msra.mxu0 %v3679
      %3707 = vmatpush.msra.mxu0 %v3678
      %3708 = vmatpush.msra.mxu0 %v3677
      %3709 = vmatpush.msra.mxu0 %v3676
      %3710 = vmatpush.msra.mxu0 %v3675
      %3711 = vmatmul.f32.gmra.mxu0 %v3671
      %v3712 = vpop.f32.mrf.mxu0
      %v3713 = vadd.f32 %v3693, %v3712
      %3714 = vmatmul.f32.gmra.mxu0 %v3672
      %v3715 = vpop.f32.mrf.mxu0
      %v3716 = vadd.f32 %v3693, %v3715
      %3717 = vmatmul.f32.gmra.mxu0 %v3673
      %v3718 = vpop.f32.mrf.mxu0
      %v3719 = vadd.f32 %v3693, %v3718
      %3720 = vmatmul.f32.gmra.mxu0 %v3674
      %v3721 = vpop.f32.mrf.mxu0
      %v3722 = vadd.f32 %v3693, %v3721
      %3723 = vdwg.mxu0
      %3724 = vst [vmem:[%s526] sm:$0xff] %v3713
      %3725 = vst [vmem:[%s526 + $0x8] sm:$0xff] %v3716
      %3726 = vst [vmem:[%s526 + $0x10] sm:$0xff] %v3719
      %3727 = vst [vmem:[%s526 + $0x18] sm:$0xff] %v3722
      %s3728 = smul.u32 2, %s26
      %p3729 = scmp.lt.s32.totalorder %s3728, 3
      %s3730 = scalar_select %p3729, %s3728, 3
      %s3731 = smul.addr %s3730, 2
      %s3732 = smul.addr %s3731, 8
      %s3733 = scalar_lea.vmem %s15, %s3732
      // Predicated region
      $region81: #{schnet_forward.1} parent=79 // pred_check
        %p3734 = pneg %p369
      $region82: #{schnet_forward.1} parent=79 // pred_check_branch
        %3736 = sbr.rel (%p3734) target = $region84
      $region83: #{schnet_forward.1} parent=79 // pred_region
        %s3737 = smul.u32 2, %s26
      $region84: #{schnet_forward.1} parent=79 // pred_fallthru
        _
    $region80: #{schnet_forward.1} parent=5 // pred_fallthru
      _
    %p3738 = scmp.le.s32.totalorder 2, %s21
    // Predicated region
    $region85: #{schnet_forward.1} parent=5 // pred_check
      %p3739 = pneg %p3738
    $region86: #{schnet_forward.1} parent=5 // pred_check_branch
      %3741 = sbr.rel (%p3739) target = $region88
    $region87: #{schnet_forward.1} parent=5 // pred_region
      %s3742 = ssub.s32 %s21, 2
      // Predicated region
      $region89: #{schnet_forward.1} parent=87 // pred_check
        %p3743 = pneg %p375
      $region90: #{schnet_forward.1} parent=87 // pred_check_branch
        %3745 = sbr.rel (%p3743) target = $region92
      $region91: #{schnet_forward.1} parent=87 // pred_region
        %s3746 = smul.u32 2, %s27
        %p3747 = scmp.lt.s32.totalorder %s3746, 3
        %s3748 = scalar_select %p3747, %s3746, 3
        %s3749 = smul.addr %s3748, 2
        %s3750 = smul.addr %s3749, 8
        %s3751 = scalar_lea.vmem %s15, %s3750
      $region92: #{schnet_forward.1} parent=87 // pred_fallthru
        _
    $region88: #{schnet_forward.1} parent=5 // pred_fallthru
      _
  $region6: #{schnet_forward.1} parent=0 // loop_footer
    %s25 = sadd.s32 1, %s21
  $region7: #{schnet_forward.1} parent=0 // loop_footer_branch
    %20 = sbr.rel target = $region3
  $region8: #{schnet_forward.1} parent=0 // loop_exit
    _

</llo_original>
